<compile_context>
chip_gen: v5e
topology: v5e:2x2
jax: 0.10.0
libtpu: 0.0.40
codegen_flags: <defaults>
</compile_context>

<pallas_src>
import jax
import jax.numpy as jnp
from jax.experimental import pallas as pl
from jax.experimental.pallas import tpu as pltpu


def _conv1x1_kernel(x_ref, w_ref, o_ref):
    # x_ref: [C_in, HW]   bf16 (batch dim squeezed, resident across C_out tiles)
    # w_ref: [TC_out, C_in] bf16 (one C_out tile of the weight)
    # o_ref: [TC_out, HW] f32
    o_ref[...] = jnp.dot(
        w_ref[...], x_ref[...], preferred_element_type=jnp.float32
    ).astype(o_ref.dtype)


def conv1x1_pallas(x_nchw: jax.Array, weight: jax.Array, *, tile_cout: int = 384) -> jax.Array:
    """1x1 conv, stride 1, no bias.

    x_nchw : [N, C_in, H, W]
    weight : [C_out, C_in, 1, 1]   (PyTorch Conv2d weight layout)
    returns: [N, C_out, H, W]  float32
    """
    n, c_in, h, w = x_nchw.shape
    c_out = weight.shape[0]
    hw = h * w

    # Free reshapes only (no transposes): NCHW keeps channels leading, so the
    # 1x1 conv is W[C_out, C_in] @ X[C_in, HW] per batch element.
    x3 = x_nchw.reshape(n, c_in, hw).astype(jnp.bfloat16)
    w2 = weight.reshape(c_out, c_in).astype(jnp.bfloat16)

    tile_cout = min(tile_cout, c_out)
    grid = (n, pl.cdiv(c_out, tile_cout))

    cost = pl.CostEstimate(
        flops=2 * n * hw * c_in * c_out,
        transcendentals=0,
        bytes_accessed=(n * c_in * hw * 2) + (c_out * c_in * 2) + (n * c_out * hw * 4),
    )

    y3 = pl.pallas_call(
        _conv1x1_kernel,
        out_shape=jax.ShapeDtypeStruct((n, c_out, hw), jnp.float32),
        grid_spec=pltpu.PrefetchScalarGridSpec(
            num_scalar_prefetch=0,
            grid=grid,
            in_specs=[
                # X: batch-indexed, constant across C_out tiles -> stays resident.
                pl.BlockSpec((None, c_in, hw), lambda b, j: (b, 0, 0)),
                # W: one C_out tile per grid step (partial last tile only pads
                # output rows that are never written back -> safe).
                pl.BlockSpec((tile_cout, c_in), lambda b, j: (j, 0)),
            ],
            out_specs=pl.BlockSpec((None, tile_cout, hw), lambda b, j: (b, j, 0)),
        ),
        compiler_params=pltpu.CompilerParams(
            dimension_semantics=("parallel", "parallel"),
        ),
        cost_estimate=cost,
    )(x3, w2)

    return y3.reshape(n, c_out, h, w)


if __name__ == "__main__":
    # Shapes implied by the module: Conv2d(1344, 1344, 1x1) on [1, 1344, 14, 14].
    N, C_IN, C_OUT, H, W = 1, 1344, 1344, 14, 14

    key = jax.random.PRNGKey(0)
    kx, kw = jax.random.split(key)

    x135 = jax.random.normal(kx, (N, C_IN, H, W), dtype=jnp.float32)

    # Deterministic Conv2d-style weight init (fan_in-scaled uniform).
    fan_in = C_IN * 1 * 1
    bound = 1.0 / (fan_in ** 0.5)
    weight = jax.random.uniform(
        kw, (C_OUT, C_IN, 1, 1), dtype=jnp.float32, minval=-bound, maxval=bound
    )

    y = conv1x1_pallas(x135, weight)
    jax.block_until_ready(y)
    assert y.shape == (N, C_OUT, H, W)
    assert y.dtype == jnp.float32

    # Reference with the same math as the kernel (bf16 inputs, f32 accumulate).
    xb = x135.astype(jnp.bfloat16).astype(jnp.float32)
    wb = weight.reshape(C_OUT, C_IN).astype(jnp.bfloat16).astype(jnp.float32)
    y_ref = jnp.einsum("oc,nchw->nohw", wb, xb)
    assert jnp.allclose(y, y_ref, atol=1e-2, rtol=1e-2), float(
        jnp.max(jnp.abs(y - y_ref))
    )

    # Looser sanity check against the pure-f32 conv (bf16 input rounding error).
    y_f32 = jnp.einsum("oc,nchw->nohw", weight.reshape(C_OUT, C_IN), x135)
    assert jnp.allclose(y, y_f32, atol=1e-1, rtol=1e-1)

    print("KERNEL_OK")
</pallas_src>

<mosaic_0001>
module attributes {stable_mosaic.version = 11 : i64} {
  func.func @_conv1x1_kernel(%arg0: i32, %arg1: i32, %arg2: memref<1x1344x196xbf16, #tpu.memory_space<vmem>>, %arg3: memref<384x1344xbf16, #tpu.memory_space<vmem>>, %arg4: memref<1x384x196xf32, #tpu.memory_space<vmem>>) attributes {dimension_semantics = [#tpu.dimension_semantics<parallel>, #tpu.dimension_semantics<parallel>], iteration_bounds = array<i64: 1, 4>, scalar_prefetch = 0 : i64, scratch_operands = 0 : i64, tpu.core_type = #tpu.core_type<tc>, window_params = [{transform_indices = @transform_0, window_bounds = array<i64: 1, 1344, 196>}, {transform_indices = @transform_1, window_bounds = array<i64: 384, 1344>}, {transform_indices = @transform_2, window_bounds = array<i64: 1, 384, 196>}]} {
    %c0 = arith.constant 0 : index
    %c0_0 = arith.constant 0 : index
    %0 = vector.load %arg3[%c0, %c0_0] : memref<384x1344xbf16, #tpu.memory_space<vmem>>, vector<384x1344xbf16>
    %c0_1 = arith.constant 0 : index
    %c0_2 = arith.constant 0 : index
    %c0_3 = arith.constant 0 : index
    %1 = vector.load %arg2[%c0_1, %c0_2, %c0_3] : memref<1x1344x196xbf16, #tpu.memory_space<vmem>>, vector<1x1344x196xbf16>
    %2 = vector.shape_cast %1 : vector<1x1344x196xbf16> to vector<1344x196xbf16>
    %cst = arith.constant dense<0.000000e+00> : vector<384x196xf32>
    %3 = tpu.matmul %0, %2, %cst {dimension_numbers = #tpu.dot_dimension_numbers<[1], [0], [0], [1], [0, 0, 1, 1], [], []>} : vector<384x1344xbf16>, vector<1344x196xbf16>, vector<384x196xf32> -> vector<384x196xf32>
    %c0_4 = arith.constant 0 : index
    %c0_5 = arith.constant 0 : index
    %c0_6 = arith.constant 0 : index
    %4 = vector.load %arg4[%c0_4, %c0_5, %c0_6] : memref<1x384x196xf32, #tpu.memory_space<vmem>>, vector<1x384x196xf32>
    %5 = vector.shape_cast %4 : vector<1x384x196xf32> to vector<384x196xf32>
    %6 = vector.shape_cast %3 : vector<384x196xf32> to vector<1x384x196xf32>
    tpu.vector_store %arg4[%c0_4, %c0_5, %c0_6], %6 {strides = array<i32>} : memref<1x384x196xf32, #tpu.memory_space<vmem>>, vector<1x384x196xf32>,
    return
  }
  func.func @transform_0(%arg0: i32, %arg1: i32) -> (i32, i32, i32) {
    %c0_i32 = arith.constant 0 : i32
    %c0_i32_0 = arith.constant 0 : i32
    %c0_i32_1 = arith.constant 0 : i32
    return %arg0, %c0_i32, %c0_i32_0 : i32, i32, i32
  }
  func.func @transform_1(%arg0: i32, %arg1: i32) -> (i32, i32) {
    %c0_i32 = arith.constant 0 : i32
    %c0_i32_0 = arith.constant 0 : i32
    return %arg1, %c0_i32 : i32, i32
  }
  func.func @transform_2(%arg0: i32, %arg1: i32) -> (i32, i32, i32) {
    %c0_i32 = arith.constant 0 : i32
    %c0_i32_0 = arith.constant 0 : i32
    return %arg0, %arg1, %c0_i32 : i32, i32, i32
  }
}

</mosaic_0001>

<llo_original>
// kernel: tpu_custom_call.1
$region0: #{tpu_custom_call.1}
  #allocation0 [shape = 'u32[]', space=smem, size = 0x4, offset = 0x4, fixed_abs, tag = 'smem constant byte address 0x4 - core index']
  #allocation1 [shape = 'u32[72,128]{1,0:T(1,128)}', space=vmem, size = 0x9000, scoped, tag = 'internal scratch']
  %s0 = inlined_call_operand.vmem [shape: bf16[1,1344,196], index: 0, kind: input, shape index: {}]
  %s1 = inlined_call_operand.hbm [shape: bf16[1344,1344], index: 1, kind: input, shape index: {}]
  %s2 = inlined_call_operand.vmem [shape: f32[1,1344,196], index: 2, kind: output, shape index: {}]
  %s3 = sld [smem:[#allocation0]]
  $region71: #{tpu_custom_call.1} parent=0
    _
  %s5 = ssub.s32 1, %s3
  %s6 = scalar_select 0, %s5, %s3
  $region1: #{tpu_custom_call.1} parent=0
    #allocation2 [shape = 'u8[2162688]{0}', space=vmem, size = 0x210000, scoped, tag = 'input window, operand 1']
    #allocation3 [shape = 's32[2]{0}', space=sflag, size = 0x8, scoped, tag = 'scoped memory for tpu_custom_call.1']
    #allocation4 [shape = 'u8[786432]{0}', space=vmem, size = 0xc0000, scoped, tag = 'output window, operand 0']
    %7 = vsyncpa [#allocation3], 0
    %s8 = scalar_lea.sflag [#allocation3], 1
    %9 = vsyncpa %s8, 0
    loop: start=0, step=1, limit=6
    $region2: #{tpu_custom_call.1} parent=1 // loop_pre_header
      _
    $region3: #{tpu_custom_call.1} parent=1 // loop_header
      %s11 = sphi 0, %s15
      %p12 = scmp.ge.s32.totalorder %s11, 6
      %s18 = sphi 0, %s30
      %s19 = sphi 0, %s26
      %s20 = sphi 0, %s18
      %s21 = sphi 0, %s19
      %s22 = sphi 0, %s20
      %s23 = sphi 0, %s21
      %s33 = sphi 0, %s35
      %s36 = sphi 0, %s33
      %s37 = sphi 0, %s36
      %s53 = sphi 0, %s37
      %s59 = sphi 0, %s61
      %s62 = sphi 0, %s59
      %s63 = sphi 0, %s62
      %s79 = sphi 0, %s63
      %s87 = sphi 0, %s89
      %s90 = sphi 0, %s87
      %s91 = sphi 0, %s90
      %s107 = sphi 0, %s91
    $region4: #{tpu_custom_call.1} parent=1 // loop_header_branch
      %14 = sbr.rel (%p12) target = $region8
    $region5: #{tpu_custom_call.1} parent=1 // loop_body
      %s16 = ssub.s32 %s11, 1
      %s17 = ssub.s32 %s11, 2
      %s24 = sadd.s32 1, %s19
      %p25 = scmp.ge.s32.totalorder %s24, 4
      %s26 = scalar_select %p25, 0, %s24
      %s27 = sadd.s32 1, %s18
      %s28 = scalar_select %p25, %s27, %s18
      %p29 = scmp.ge.s32.totalorder %s28, 1
      %s30 = scalar_select %p29, 0, %s28
      %s31 = ssub.s32 %s18, %s30
      %p32 = scmp.eq.s32.totalorder %s31, 0
      %s34 = sadd.s32 %s33, 1
      %s35 = scalar_select %p32, %s33, %s34
      %p38 = pneg %p32
      %p39 = scmp.eq.s32.totalorder %s11, 3
      %p40 = por %p38, %p39
      %p41 = scmp.ne.s32.totalorder %s33, %s36
      %p42 = scmp.eq.s32.totalorder %s11, 0
      %p43 = por %p41, %p42
      %p44 = scmp.ne.s32.totalorder %s33, %s36
      %p45 = scmp.eq.s32.totalorder %s16, 3
      %p46 = por %p44, %p45
      %p47 = scmp.ne.s32.totalorder %s36, %s37
      %p48 = scmp.eq.s32.totalorder %s16, 0
      %p49 = por %p47, %p48
      %p50 = scmp.ne.s32.totalorder %s36, %s37
      %p51 = scmp.eq.s32.totalorder %s17, 3
      %p52 = por %p50, %p51
      %p54 = scmp.ne.s32.totalorder %s37, %s53
      %p55 = scmp.eq.s32.totalorder %s17, 0
      %p56 = por %p54, %p55
      %s57 = ssub.s32 %s19, %s26
      %p58 = scmp.eq.s32.totalorder %s57, 0
      %s60 = sadd.s32 %s59, 1
      %s61 = scalar_select %p58, %s59, %s60
      %p64 = pneg %p58
      %p65 = scmp.eq.s32.totalorder %s11, 3
      %p66 = por %p64, %p65
      %p67 = scmp.ne.s32.totalorder %s59, %s62
      %p68 = scmp.eq.s32.totalorder %s11, 0
      %p69 = por %p67, %p68
      %p70 = scmp.ne.s32.totalorder %s59, %s62
      %p71 = scmp.eq.s32.totalorder %s16, 3
      %p72 = por %p70, %p71
      %p73 = scmp.ne.s32.totalorder %s62, %s63
      %p74 = scmp.eq.s32.totalorder %s16, 0
      %p75 = por %p73, %p74
      %p76 = scmp.ne.s32.totalorder %s62, %s63
      %p77 = scmp.eq.s32.totalorder %s17, 3
      %p78 = por %p76, %p77
      %p80 = scmp.ne.s32.totalorder %s63, %s79
      %p81 = scmp.eq.s32.totalorder %s17, 0
      %p82 = por %p80, %p81
      %s83 = ssub.s32 %s18, %s30
      %s84 = ssub.s32 %s19, %s26
      %s85 = sor.u32 %s83, %s84
      %p86 = scmp.eq.s32.totalorder %s85, 0
      %s88 = sadd.s32 %s87, 1
      %s89 = scalar_select %p86, %s87, %s88
      %p92 = pneg %p86
      %p93 = scmp.eq.s32.totalorder %s11, 3
      %p94 = por %p92, %p93
      %p95 = scmp.ne.s32.totalorder %s87, %s90
      %p96 = scmp.eq.s32.totalorder %s11, 0
      %p97 = por %p95, %p96
      %p98 = scmp.ne.s32.totalorder %s87, %s90
      %p99 = scmp.eq.s32.totalorder %s16, 3
      %p100 = por %p98, %p99
      %p101 = scmp.ne.s32.totalorder %s90, %s91
      %p102 = scmp.eq.s32.totalorder %s16, 0
      %p103 = por %p101, %p102
      %p104 = scmp.ne.s32.totalorder %s90, %s91
      %p105 = scmp.eq.s32.totalorder %s17, 3
      %p106 = por %p104, %p105
      %p108 = scmp.ne.s32.totalorder %s91, %s107
      %p109 = scmp.eq.s32.totalorder %s17, 0
      %p110 = por %p108, %p109
      %p111 = scmp.le.s32.totalorder 1, %s11
      %p112 = scmp.lt.s32.totalorder %s11, 5
      %p113 = pnand %p111, %p112
      %p114 = pneg %p113
      // Predicated region
      $region9: #{tpu_custom_call.1} parent=5 // pred_check
        _
      $region10: #{tpu_custom_call.1} parent=5 // pred_check_branch
        %116 = sbr.rel (%p113) target = $region12
      $region11: #{tpu_custom_call.1} parent=5 // pred_region
        %s117 = ssub.s32 %s11, 1
        // Predicated region
        $region13: #{tpu_custom_call.1} parent=11 // pred_check
          %p118 = pneg %p49
        $region14: #{tpu_custom_call.1} parent=11 // pred_check_branch
          %120 = sbr.rel (%p118) target = $region16
        $region15: #{tpu_custom_call.1} parent=11 // pred_region
          %p121 = scmp.lt.s32.totalorder %s20, 0
          %s122 = scalar_select %p121, %s20, 0
          %s123 = smul.addr %s122, 336
          %s124 = smul.addr %s123, 4
          %s125 = scalar_lea.vmem %s0, %s124
        $region16: #{tpu_custom_call.1} parent=11 // pred_fallthru
          _
      $region12: #{tpu_custom_call.1} parent=5 // pred_fallthru
        _
      %p126 = scmp.lt.s32.totalorder %s11, 4
      // Predicated region
      $region17: #{tpu_custom_call.1} parent=5 // pred_check
        %p127 = pneg %p126
      $region18: #{tpu_custom_call.1} parent=5 // pred_check_branch
        %129 = sbr.rel (%p127) target = $region20
      $region19: #{tpu_custom_call.1} parent=5 // pred_region
        // Predicated region
        $region21: #{tpu_custom_call.1} parent=19 // pred_check
          %p130 = pneg %p69
        $region22: #{tpu_custom_call.1} parent=19 // pred_check_branch
          %132 = sbr.rel (%p130) target = $region24
        $region23: #{tpu_custom_call.1} parent=19 // pred_region
          %s133 = sand.u32 %s59, 1
          %s134 = scalar_lea.sflag [#allocation3], %s133
          %s135 = sand.u32 %s59, 1
          %s136 = smul.addr %s135, 2112
          %s137 = scalar_lea.vmem [#allocation2], %s136
          %s138 = smul.u32 48, %s19
          %s139 = ssub.s32 168, %s138
          %p140 = scmp.lt.s32.totalorder %s139, 48
          %s141 = scalar_select %p140, %s139, 48
          %s142 = smul.u32 4, %s141
          %s143 = smul.u32 %s142, 11
          %s144 = ssub.s32 2112, %s143
          %s145 = sshll.u32 %s144, 4
          %146 = vsyncadd %s134, %s145
          %p147 = scmp.ne.s32.totalorder 0, %s143
          %s148 = smul.addr %s138, 11
          %s149 = smul.addr %s148, 4
          %s150 = scalar_lea.hbm %s1, %s149
          %s151 = smul.u32 44, %s141
          %s152 = sshll.u32 %s150, 4
          %s153 = int_to_ptr.hbm [resolvable:$true] %s152
          %s154 = sshll.u32 %s137, 4
          %s155 = int_to_ptr.vmem [resolvable:$true] %s154
          %s156 = sshll.u32 %s151, 4
          %160 = dma.hbm_to_vmem [thread:$0]  (%p147), %s153, %s156, %s155, %s134, 704, 704, 44
        $region24: #{tpu_custom_call.1} parent=19 // pred_fallthru
          _
      $region20: #{tpu_custom_call.1} parent=5 // pred_fallthru
        _
      %p161 = scmp.le.s32.totalorder 1, %s11
      %p162 = scmp.lt.s32.totalorder %s11, 5
      %p163 = pnand %p161, %p162
      %p164 = pneg %p163
      // Predicated region
      $region25: #{tpu_custom_call.1} parent=5 // pred_check
        _
      $region26: #{tpu_custom_call.1} parent=5 // pred_check_branch
        %166 = sbr.rel (%p163) target = $region28
      $region27: #{tpu_custom_call.1} parent=5 // pred_region
        %s167 = ssub.s32 %s11, 1
        %s168 = sand.u32 %s62, 1
        %s169 = scalar_lea.sflag [#allocation3], %s168
        %s170 = sand.u32 %s62, 1
        %s171 = smul.addr %s170, 2112
        %s172 = scalar_lea.vmem [#allocation2], %s171
        // Predicated region
        $region29: #{tpu_custom_call.1} parent=27 // pred_check
          %p173 = pneg %p75
        $region30: #{tpu_custom_call.1} parent=27 // pred_check_branch
          %175 = sbr.rel (%p173) target = $region32
        $region31: #{tpu_custom_call.1} parent=27 // pred_region
          %177 = dma.done %s169, 33792
        $region32: #{tpu_custom_call.1} parent=27 // pred_fallthru
          _
        %p178 = scmp.lt.s32.totalorder %s20, 0
        %s179 = scalar_select %p178, %s20, 0
        %s180 = smul.addr %s179, 336
        %s181 = smul.addr %s180, 4
        %s182 = scalar_lea.vmem %s0, %s181
        %p183 = pneg %p49
        %p184 = pneg %p46
        %s185 = sand.u32 %s62, 1
        %s186 = scalar_lea.sflag [#allocation3], %s185
        %s187 = sand.u32 %s62, 1
        %s188 = smul.addr %s187, 2112
        %s189 = scalar_lea.vmem [#allocation2], %s188
        %p190 = pneg %p75
        %p191 = pneg %p72
        %p192 = pneg %p103
        %p193 = pneg %p100
        %s194 = sand.u32 %s90, 1
        %s195 = sand.u32 %s90, 1
        %s196 = smul.addr %s195, 768
        %s197 = scalar_lea.vmem [#allocation4], %s196
        %p198 = scmp.lt.s32.totalorder %s20, 0
        %s199 = scalar_select %p198, %s20, 0
        %s200 = smul.addr %s199, 336
        %s201 = smul.addr %s200, 4
        %s202 = scalar_lea.vmem %s0, %s201
        %s203 = smul.u32 48, %s21
        %s204 = ssub.s32 168, %s203
        %p205 = scmp.lt.s32.totalorder %s204, 48
        %s206 = scalar_select %p205, %s204, 48
        %s207 = smul.u32 4, %s206
        %s208 = smul.u32 %s207, 11
        %s209 = smul.u32 48, %s21
        %s210 = ssub.s32 168, %s209
        %p211 = scmp.lt.s32.totalorder %s210, 48
        %s212 = scalar_select %p211, %s210, 48
        %s213 = smul.u32 8, %s212
        %s214 = smul.u32 %s213, 2
        %v216 = vld [vmem:[%s172] sm:$0xff]
        %v217 = vld [vmem:[%s172 + $0x8] sm:$0xff]
        %v218 = vld [vmem:[%s172 + $0x10] sm:$0xff]
        %v219 = vld [vmem:[%s172 + $0x18] sm:$0xff]
        %v220 = vld [vmem:[%s172 + $0x20] sm:$0xff]
        %v221 = vld [vmem:[%s172 + $0x28] sm:$0xf]
        %v222 = vld [vmem:[%s172 + $0x2c] sm:$0xff]
        %v223 = vld [vmem:[%s172 + $0x34] sm:$0xff]
        %v224 = vld [vmem:[%s172 + $0x3c] sm:$0xff]
        %v225 = vld [vmem:[%s172 + $0x44] sm:$0xff]
        %v226 = vld [vmem:[%s172 + $0x4c] sm:$0xff]
        %v227 = vld [vmem:[%s172 + $0x54] sm:$0xf]
        %v228 = vld [vmem:[%s172 + $0x58] sm:$0xff]
        %v229 = vld [vmem:[%s172 + $0x60] sm:$0xff]
        %v230 = vld [vmem:[%s172 + $0x68] sm:$0xff]
        %v231 = vld [vmem:[%s172 + $0x70] sm:$0xff]
        %v232 = vld [vmem:[%s172 + $0x78] sm:$0xff]
        %v233 = vld [vmem:[%s172 + $0x80] sm:$0xf]
        %v234 = vld [vmem:[%s172 + $0x84] sm:$0xff]
        %v235 = vld [vmem:[%s172 + $0x8c] sm:$0xff]
        %v236 = vld [vmem:[%s172 + $0x94] sm:$0xff]
        %v237 = vld [vmem:[%s172 + $0x9c] sm:$0xff]
        %v238 = vld [vmem:[%s172 + $0xa4] sm:$0xff]
        %v239 = vld [vmem:[%s172 + $0xac] sm:$0xf]
        %v240 = vld [vmem:[%s172 + $0xb0] sm:$0xff]
        %v241 = vld [vmem:[%s172 + $0xb8] sm:$0xff]
        %v242 = vld [vmem:[%s172 + $0xc0] sm:$0xff]
        %v243 = vld [vmem:[%s172 + $0xc8] sm:$0xff]
        %v244 = vld [vmem:[%s172 + $0xd0] sm:$0xff]
        %v245 = vld [vmem:[%s172 + $0xd8] sm:$0xf]
        %v246 = vld [vmem:[%s172 + $0xdc] sm:$0xff]
        %v247 = vld [vmem:[%s172 + $0xe4] sm:$0xff]
        %v248 = vld [vmem:[%s172 + $0xec] sm:$0xff]
        %v249 = vld [vmem:[%s172 + $0xf4] sm:$0xff]
        %v250 = vld [vmem:[%s172 + $0xfc] sm:$0xff]
        %v251 = vld [vmem:[%s172 + $0x104] sm:$0xf]
        %v252 = vld [vmem:[%s172 + $0x108] sm:$0xff]
        %v253 = vld [vmem:[%s172 + $0x110] sm:$0xff]
        %v254 = vld [vmem:[%s172 + $0x118] sm:$0xff]
        %v255 = vld [vmem:[%s172 + $0x120] sm:$0xff]
        %v256 = vld [vmem:[%s172 + $0x128] sm:$0xff]
        %v257 = vld [vmem:[%s172 + $0x130] sm:$0xf]
        %v258 = vld [vmem:[%s172 + $0x134] sm:$0xff]
        %v259 = vld [vmem:[%s172 + $0x13c] sm:$0xff]
        %v260 = vld [vmem:[%s172 + $0x144] sm:$0xff]
        %v261 = vld [vmem:[%s172 + $0x14c] sm:$0xff]
        %v262 = vld [vmem:[%s172 + $0x154] sm:$0xff]
        %v263 = vld [vmem:[%s172 + $0x15c] sm:$0xf]
        %v264 = vld [vmem:[%s172 + $0x160] sm:$0xff]
        %v265 = vld [vmem:[%s172 + $0x168] sm:$0xff]
        %v266 = vld [vmem:[%s172 + $0x170] sm:$0xff]
        %v267 = vld [vmem:[%s172 + $0x178] sm:$0xff]
        %v268 = vld [vmem:[%s172 + $0x180] sm:$0xff]
        %v269 = vld [vmem:[%s172 + $0x188] sm:$0xf]
        %v270 = vld [vmem:[%s172 + $0x18c] sm:$0xff]
        %v271 = vld [vmem:[%s172 + $0x194] sm:$0xff]
        %v272 = vld [vmem:[%s172 + $0x19c] sm:$0xff]
        %v273 = vld [vmem:[%s172 + $0x1a4] sm:$0xff]
        %v274 = vld [vmem:[%s172 + $0x1ac] sm:$0xff]
        %v275 = vld [vmem:[%s172 + $0x1b4] sm:$0xf]
        %v276 = vld [vmem:[%s172 + $0x1b8] sm:$0xff]
        %v277 = vld [vmem:[%s172 + $0x1c0] sm:$0xff]
        %v278 = vld [vmem:[%s172 + $0x1c8] sm:$0xff]
        %v279 = vld [vmem:[%s172 + $0x1d0] sm:$0xff]
        %v280 = vld [vmem:[%s172 + $0x1d8] sm:$0xff]
        %v281 = vld [vmem:[%s172 + $0x1e0] sm:$0xf]
        %v282 = vld [vmem:[%s172 + $0x1e4] sm:$0xff]
        %v283 = vld [vmem:[%s172 + $0x1ec] sm:$0xff]
        %v284 = vld [vmem:[%s172 + $0x1f4] sm:$0xff]
        %v285 = vld [vmem:[%s172 + $0x1fc] sm:$0xff]
        %v286 = vld [vmem:[%s172 + $0x204] sm:$0xff]
        %v287 = vld [vmem:[%s172 + $0x20c] sm:$0xf]
        %v288 = vld [vmem:[%s172 + $0x210] sm:$0xff]
        %v289 = vld [vmem:[%s172 + $0x218] sm:$0xff]
        %v290 = vld [vmem:[%s172 + $0x220] sm:$0xff]
        %v291 = vld [vmem:[%s172 + $0x228] sm:$0xff]
        %v292 = vld [vmem:[%s172 + $0x230] sm:$0xff]
        %v293 = vld [vmem:[%s172 + $0x238] sm:$0xf]
        %v294 = vld [vmem:[%s172 + $0x23c] sm:$0xff]
        %v295 = vld [vmem:[%s172 + $0x244] sm:$0xff]
        %v296 = vld [vmem:[%s172 + $0x24c] sm:$0xff]
        %v297 = vld [vmem:[%s172 + $0x254] sm:$0xff]
        %v298 = vld [vmem:[%s172 + $0x25c] sm:$0xff]
        %v299 = vld [vmem:[%s172 + $0x264] sm:$0xf]
        %v300 = vld [vmem:[%s172 + $0x268] sm:$0xff]
        %v301 = vld [vmem:[%s172 + $0x270] sm:$0xff]
        %v302 = vld [vmem:[%s172 + $0x278] sm:$0xff]
        %v303 = vld [vmem:[%s172 + $0x280] sm:$0xff]
        %v304 = vld [vmem:[%s172 + $0x288] sm:$0xff]
        %v305 = vld [vmem:[%s172 + $0x290] sm:$0xf]
        %v306 = vld [vmem:[%s172 + $0x294] sm:$0xff]
        %v307 = vld [vmem:[%s172 + $0x29c] sm:$0xff]
        %v308 = vld [vmem:[%s172 + $0x2a4] sm:$0xff]
        %v309 = vld [vmem:[%s172 + $0x2ac] sm:$0xff]
        %v310 = vld [vmem:[%s172 + $0x2b4] sm:$0xff]
        %v311 = vld [vmem:[%s172 + $0x2bc] sm:$0xf]
        %v312 = vld [vmem:[%s172 + $0x2c0] sm:$0xff]
        %v313 = vld [vmem:[%s172 + $0x2c8] sm:$0xff]
        %v314 = vld [vmem:[%s172 + $0x2d0] sm:$0xff]
        %v315 = vld [vmem:[%s172 + $0x2d8] sm:$0xff]
        %v316 = vld [vmem:[%s172 + $0x2e0] sm:$0xff]
        %v317 = vld [vmem:[%s172 + $0x2e8] sm:$0xf]
        %v318 = vld [vmem:[%s172 + $0x2ec] sm:$0xff]
        %v319 = vld [vmem:[%s172 + $0x2f4] sm:$0xff]
        %v320 = vld [vmem:[%s172 + $0x2fc] sm:$0xff]
        %v321 = vld [vmem:[%s172 + $0x304] sm:$0xff]
        %v322 = vld [vmem:[%s172 + $0x30c] sm:$0xff]
        %v323 = vld [vmem:[%s172 + $0x314] sm:$0xf]
        %v324 = vld [vmem:[%s172 + $0x318] sm:$0xff]
        %v325 = vld [vmem:[%s172 + $0x320] sm:$0xff]
        %v326 = vld [vmem:[%s172 + $0x328] sm:$0xff]
        %v327 = vld [vmem:[%s172 + $0x330] sm:$0xff]
        %v328 = vld [vmem:[%s172 + $0x338] sm:$0xff]
        %v329 = vld [vmem:[%s172 + $0x340] sm:$0xf]
        %v330 = vld [vmem:[%s172 + $0x344] sm:$0xff]
        %v331 = vld [vmem:[%s172 + $0x34c] sm:$0xff]
        %v332 = vld [vmem:[%s172 + $0x354] sm:$0xff]
        %v333 = vld [vmem:[%s172 + $0x35c] sm:$0xff]
        %v334 = vld [vmem:[%s172 + $0x364] sm:$0xff]
        %v335 = vld [vmem:[%s172 + $0x36c] sm:$0xf]
        %v336 = vld [vmem:[%s172 + $0x370] sm:$0xff]
        %v337 = vld [vmem:[%s172 + $0x378] sm:$0xff]
        %v338 = vld [vmem:[%s172 + $0x380] sm:$0xff]
        %v339 = vld [vmem:[%s172 + $0x388] sm:$0xff]
        %v340 = vld [vmem:[%s172 + $0x390] sm:$0xff]
        %v341 = vld [vmem:[%s172 + $0x398] sm:$0xf]
        %v342 = vld [vmem:[%s172 + $0x39c] sm:$0xff]
        %v343 = vld [vmem:[%s172 + $0x3a4] sm:$0xff]
        %v344 = vld [vmem:[%s172 + $0x3ac] sm:$0xff]
        %v345 = vld [vmem:[%s172 + $0x3b4] sm:$0xff]
        %v346 = vld [vmem:[%s172 + $0x3bc] sm:$0xff]
        %v347 = vld [vmem:[%s172 + $0x3c4] sm:$0xf]
        %v348 = vld [vmem:[%s172 + $0x3c8] sm:$0xff]
        %v349 = vld [vmem:[%s172 + $0x3d0] sm:$0xff]
        %v350 = vld [vmem:[%s172 + $0x3d8] sm:$0xff]
        %v351 = vld [vmem:[%s172 + $0x3e0] sm:$0xff]
        %v352 = vld [vmem:[%s172 + $0x3e8] sm:$0xff]
        %v353 = vld [vmem:[%s172 + $0x3f0] sm:$0xf]
        %v354 = vld [vmem:[%s172 + $0x3f4] sm:$0xff]
        %v355 = vld [vmem:[%s172 + $0x3fc] sm:$0xff]
        %v356 = vld [vmem:[%s172 + $0x404] sm:$0xff]
        %v357 = vld [vmem:[%s172 + $0x40c] sm:$0xff]
        %v358 = vld [vmem:[%s172 + $0x414] sm:$0xff]
        %v359 = vld [vmem:[%s172 + $0x41c] sm:$0xf]
        %v360 = vld [vmem:[%s172 + $0x420] sm:$0xff]
        %v361 = vld [vmem:[%s172 + $0x428] sm:$0xff]
        %v362 = vld [vmem:[%s172 + $0x430] sm:$0xff]
        %v363 = vld [vmem:[%s172 + $0x438] sm:$0xff]
        %v364 = vld [vmem:[%s172 + $0x440] sm:$0xff]
        %v365 = vld [vmem:[%s172 + $0x448] sm:$0xf]
        %v366 = vld [vmem:[%s172 + $0x44c] sm:$0xff]
        %v367 = vld [vmem:[%s172 + $0x454] sm:$0xff]
        %v368 = vld [vmem:[%s172 + $0x45c] sm:$0xff]
        %v369 = vld [vmem:[%s172 + $0x464] sm:$0xff]
        %v370 = vld [vmem:[%s172 + $0x46c] sm:$0xff]
        %v371 = vld [vmem:[%s172 + $0x474] sm:$0xf]
        %v372 = vld [vmem:[%s172 + $0x478] sm:$0xff]
        %v373 = vld [vmem:[%s172 + $0x480] sm:$0xff]
        %v374 = vld [vmem:[%s172 + $0x488] sm:$0xff]
        %v375 = vld [vmem:[%s172 + $0x490] sm:$0xff]
        %v376 = vld [vmem:[%s172 + $0x498] sm:$0xff]
        %v377 = vld [vmem:[%s172 + $0x4a0] sm:$0xf]
        %v378 = vld [vmem:[%s172 + $0x4a4] sm:$0xff]
        %v379 = vld [vmem:[%s172 + $0x4ac] sm:$0xff]
        %v380 = vld [vmem:[%s172 + $0x4b4] sm:$0xff]
        %v381 = vld [vmem:[%s172 + $0x4bc] sm:$0xff]
        %v382 = vld [vmem:[%s172 + $0x4c4] sm:$0xff]
        %v383 = vld [vmem:[%s172 + $0x4cc] sm:$0xf]
        %v384 = vld [vmem:[%s172 + $0x4d0] sm:$0xff]
        %v385 = vld [vmem:[%s172 + $0x4d8] sm:$0xff]
        %v386 = vld [vmem:[%s172 + $0x4e0] sm:$0xff]
        %v387 = vld [vmem:[%s172 + $0x4e8] sm:$0xff]
        %v388 = vld [vmem:[%s172 + $0x4f0] sm:$0xff]
        %v389 = vld [vmem:[%s172 + $0x4f8] sm:$0xf]
        %v390 = vld [vmem:[%s172 + $0x4fc] sm:$0xff]
        %v391 = vld [vmem:[%s172 + $0x504] sm:$0xff]
        %v392 = vld [vmem:[%s172 + $0x50c] sm:$0xff]
        %v393 = vld [vmem:[%s172 + $0x514] sm:$0xff]
        %v394 = vld [vmem:[%s172 + $0x51c] sm:$0xff]
        %v395 = vld [vmem:[%s172 + $0x524] sm:$0xf]
        %v396 = vld [vmem:[%s172 + $0x528] sm:$0xff]
        %v397 = vld [vmem:[%s172 + $0x530] sm:$0xff]
        %v398 = vld [vmem:[%s172 + $0x538] sm:$0xff]
        %v399 = vld [vmem:[%s172 + $0x540] sm:$0xff]
        %v400 = vld [vmem:[%s172 + $0x548] sm:$0xff]
        %v401 = vld [vmem:[%s172 + $0x550] sm:$0xf]
        %v402 = vld [vmem:[%s172 + $0x554] sm:$0xff]
        %v403 = vld [vmem:[%s172 + $0x55c] sm:$0xff]
        %v404 = vld [vmem:[%s172 + $0x564] sm:$0xff]
        %v405 = vld [vmem:[%s172 + $0x56c] sm:$0xff]
        %v406 = vld [vmem:[%s172 + $0x574] sm:$0xff]
        %v407 = vld [vmem:[%s172 + $0x57c] sm:$0xf]
        %v408 = vld [vmem:[%s172 + $0x580] sm:$0xff]
        %v409 = vld [vmem:[%s172 + $0x588] sm:$0xff]
        %v410 = vld [vmem:[%s172 + $0x590] sm:$0xff]
        %v411 = vld [vmem:[%s172 + $0x598] sm:$0xff]
        %v412 = vld [vmem:[%s172 + $0x5a0] sm:$0xff]
        %v413 = vld [vmem:[%s172 + $0x5a8] sm:$0xf]
        %v414 = vld [vmem:[%s172 + $0x5ac] sm:$0xff]
        %v415 = vld [vmem:[%s172 + $0x5b4] sm:$0xff]
        %v416 = vld [vmem:[%s172 + $0x5bc] sm:$0xff]
        %v417 = vld [vmem:[%s172 + $0x5c4] sm:$0xff]
        %v418 = vld [vmem:[%s172 + $0x5cc] sm:$0xff]
        %v419 = vld [vmem:[%s172 + $0x5d4] sm:$0xf]
        %v420 = vld [vmem:[%s172 + $0x5d8] sm:$0xff]
        %v421 = vld [vmem:[%s172 + $0x5e0] sm:$0xff]
        %v422 = vld [vmem:[%s172 + $0x5e8] sm:$0xff]
        %v423 = vld [vmem:[%s172 + $0x5f0] sm:$0xff]
        %v424 = vld [vmem:[%s172 + $0x5f8] sm:$0xff]
        %v425 = vld [vmem:[%s172 + $0x600] sm:$0xf]
        %v426 = vld [vmem:[%s172 + $0x604] sm:$0xff]
        %v427 = vld [vmem:[%s172 + $0x60c] sm:$0xff]
        %v428 = vld [vmem:[%s172 + $0x614] sm:$0xff]
        %v429 = vld [vmem:[%s172 + $0x61c] sm:$0xff]
        %v430 = vld [vmem:[%s172 + $0x624] sm:$0xff]
        %v431 = vld [vmem:[%s172 + $0x62c] sm:$0xf]
        %v432 = vld [vmem:[%s172 + $0x630] sm:$0xff]
        %v433 = vld [vmem:[%s172 + $0x638] sm:$0xff]
        %v434 = vld [vmem:[%s172 + $0x640] sm:$0xff]
        %v435 = vld [vmem:[%s172 + $0x648] sm:$0xff]
        %v436 = vld [vmem:[%s172 + $0x650] sm:$0xff]
        %v437 = vld [vmem:[%s172 + $0x658] sm:$0xf]
        %v438 = vld [vmem:[%s172 + $0x65c] sm:$0xff]
        %v439 = vld [vmem:[%s172 + $0x664] sm:$0xff]
        %v440 = vld [vmem:[%s172 + $0x66c] sm:$0xff]
        %v441 = vld [vmem:[%s172 + $0x674] sm:$0xff]
        %v442 = vld [vmem:[%s172 + $0x67c] sm:$0xff]
        %v443 = vld [vmem:[%s172 + $0x684] sm:$0xf]
        %v444 = vld [vmem:[%s172 + $0x688] sm:$0xff]
        %v445 = vld [vmem:[%s172 + $0x690] sm:$0xff]
        %v446 = vld [vmem:[%s172 + $0x698] sm:$0xff]
        %v447 = vld [vmem:[%s172 + $0x6a0] sm:$0xff]
        %v448 = vld [vmem:[%s172 + $0x6a8] sm:$0xff]
        %v449 = vld [vmem:[%s172 + $0x6b0] sm:$0xf]
        %v450 = vld [vmem:[%s172 + $0x6b4] sm:$0xff]
        %v451 = vld [vmem:[%s172 + $0x6bc] sm:$0xff]
        %v452 = vld [vmem:[%s172 + $0x6c4] sm:$0xff]
        %v453 = vld [vmem:[%s172 + $0x6cc] sm:$0xff]
        %v454 = vld [vmem:[%s172 + $0x6d4] sm:$0xff]
        %v455 = vld [vmem:[%s172 + $0x6dc] sm:$0xf]
        %v456 = vld [vmem:[%s172 + $0x6e0] sm:$0xff]
        %v457 = vld [vmem:[%s172 + $0x6e8] sm:$0xff]
        %v458 = vld [vmem:[%s172 + $0x6f0] sm:$0xff]
        %v459 = vld [vmem:[%s172 + $0x6f8] sm:$0xff]
        %v460 = vld [vmem:[%s172 + $0x700] sm:$0xff]
        %v461 = vld [vmem:[%s172 + $0x708] sm:$0xf]
        %v462 = vld [vmem:[%s172 + $0x70c] sm:$0xff]
        %v463 = vld [vmem:[%s172 + $0x714] sm:$0xff]
        %v464 = vld [vmem:[%s172 + $0x71c] sm:$0xff]
        %v465 = vld [vmem:[%s172 + $0x724] sm:$0xff]
        %v466 = vld [vmem:[%s172 + $0x72c] sm:$0xff]
        %v467 = vld [vmem:[%s172 + $0x734] sm:$0xf]
        %v468 = vld [vmem:[%s172 + $0x738] sm:$0xff]
        %v469 = vld [vmem:[%s172 + $0x740] sm:$0xff]
        %v470 = vld [vmem:[%s172 + $0x748] sm:$0xff]
        %v471 = vld [vmem:[%s172 + $0x750] sm:$0xff]
        %v472 = vld [vmem:[%s172 + $0x758] sm:$0xff]
        %v473 = vld [vmem:[%s172 + $0x760] sm:$0xf]
        %v474 = vld [vmem:[%s172 + $0x764] sm:$0xff]
        %v475 = vld [vmem:[%s172 + $0x76c] sm:$0xff]
        %v476 = vld [vmem:[%s172 + $0x774] sm:$0xff]
        %v477 = vld [vmem:[%s172 + $0x77c] sm:$0xff]
        %v478 = vld [vmem:[%s172 + $0x784] sm:$0xff]
        %v479 = vld [vmem:[%s172 + $0x78c] sm:$0xf]
        %v480 = vld [vmem:[%s172 + $0x790] sm:$0xff]
        %v481 = vld [vmem:[%s172 + $0x798] sm:$0xff]
        %v482 = vld [vmem:[%s172 + $0x7a0] sm:$0xff]
        %v483 = vld [vmem:[%s172 + $0x7a8] sm:$0xff]
        %v484 = vld [vmem:[%s172 + $0x7b0] sm:$0xff]
        %v485 = vld [vmem:[%s172 + $0x7b8] sm:$0xf]
        %v486 = vld [vmem:[%s172 + $0x7bc] sm:$0xff]
        %v487 = vld [vmem:[%s172 + $0x7c4] sm:$0xff]
        %v488 = vld [vmem:[%s172 + $0x7cc] sm:$0xff]
        %v489 = vld [vmem:[%s172 + $0x7d4] sm:$0xff]
        %v490 = vld [vmem:[%s172 + $0x7dc] sm:$0xff]
        %v491 = vld [vmem:[%s172 + $0x7e4] sm:$0xf]
        %v492 = vld [vmem:[%s172 + $0x7e8] sm:$0xff]
        %v493 = vld [vmem:[%s172 + $0x7f0] sm:$0xff]
        %v494 = vld [vmem:[%s172 + $0x7f8] sm:$0xff]
        %v495 = vld [vmem:[%s172 + $0x800] sm:$0xff]
        %v496 = vld [vmem:[%s172 + $0x808] sm:$0xff]
        %v497 = vld [vmem:[%s172 + $0x810] sm:$0xf]
        %v498 = vld [vmem:[%s172 + $0x814] sm:$0xff]
        %v499 = vld [vmem:[%s172 + $0x81c] sm:$0xff]
        %v500 = vld [vmem:[%s172 + $0x824] sm:$0xff]
        %v501 = vld [vmem:[%s172 + $0x82c] sm:$0xff]
        %v502 = vld [vmem:[%s172 + $0x834] sm:$0xff]
        %v503 = vld [vmem:[%s172 + $0x83c] sm:$0xf]
        %v504 = vld [vmem:[%s202] sm:$0xff]
        %v505 = vld [vmem:[%s202 + $0x8] sm:$0xff]
        %v506 = vld [vmem:[%s202 + $0x10] sm:$0xff]
        %v507 = vld [vmem:[%s202 + $0x18] sm:$0xff]
        %v508 = vld [vmem:[%s202 + $0x20] sm:$0xff]
        %v509 = vld [vmem:[%s202 + $0x28] sm:$0xff]
        %v510 = vld [vmem:[%s202 + $0x30] sm:$0xff]
        %v511 = vld [vmem:[%s202 + $0x38] sm:$0xff]
        %v512 = vld [vmem:[%s202 + $0x40] sm:$0xff]
        %v513 = vld [vmem:[%s202 + $0x48] sm:$0xff]
        %v514 = vld [vmem:[%s202 + $0x50] sm:$0xff]
        %v515 = vld [vmem:[%s202 + $0x58] sm:$0xff]
        %v516 = vld [vmem:[%s202 + $0x60] sm:$0xff]
        %v517 = vld [vmem:[%s202 + $0x68] sm:$0xff]
        %v518 = vld [vmem:[%s202 + $0x70] sm:$0xff]
        %v519 = vld [vmem:[%s202 + $0x78] sm:$0xff]
        %v520 = vld [vmem:[%s202 + $0x80] sm:$0xff]
        %v521 = vld [vmem:[%s202 + $0x88] sm:$0xff]
        %v522 = vld [vmem:[%s202 + $0x90] sm:$0xff]
        %v523 = vld [vmem:[%s202 + $0x98] sm:$0xff]
        %v524 = vld [vmem:[%s202 + $0xa0] sm:$0xff]
        %v525 = vld [vmem:[%s202 + $0xa8] sm:$0xff]
        %v526 = vld [vmem:[%s202 + $0xb0] sm:$0xff]
        %v527 = vld [vmem:[%s202 + $0xb8] sm:$0xff]
        %v528 = vld [vmem:[%s202 + $0xc0] sm:$0xff]
        %v529 = vld [vmem:[%s202 + $0xc8] sm:$0xff]
        %v530 = vld [vmem:[%s202 + $0xd0] sm:$0xff]
        %v531 = vld [vmem:[%s202 + $0xd8] sm:$0xff]
        %v532 = vld [vmem:[%s202 + $0xe0] sm:$0xff]
        %v533 = vld [vmem:[%s202 + $0xe8] sm:$0xff]
        %v534 = vld [vmem:[%s202 + $0xf0] sm:$0xff]
        %v535 = vld [vmem:[%s202 + $0xf8] sm:$0xff]
        %v536 = vld [vmem:[%s202 + $0x100] sm:$0xff]
        %v537 = vld [vmem:[%s202 + $0x108] sm:$0xff]
        %v538 = vld [vmem:[%s202 + $0x110] sm:$0xff]
        %v539 = vld [vmem:[%s202 + $0x118] sm:$0xff]
        %v540 = vld [vmem:[%s202 + $0x120] sm:$0xff]
        %v541 = vld [vmem:[%s202 + $0x128] sm:$0xff]
        %v542 = vld [vmem:[%s202 + $0x130] sm:$0xff]
        %v543 = vld [vmem:[%s202 + $0x138] sm:$0xff]
        %v544 = vld [vmem:[%s202 + $0x140] sm:$0xff]
        %v545 = vld [vmem:[%s202 + $0x148] sm:$0xff]
        %v546 = vld [vmem:[%s202 + $0x150] sm:$0xff]
        %v547 = vld [vmem:[%s202 + $0x158] sm:$0xff]
        %v548 = vld [vmem:[%s202 + $0x160] sm:$0xff]
        %v549 = vld [vmem:[%s202 + $0x168] sm:$0xff]
        %v550 = vld [vmem:[%s202 + $0x170] sm:$0xff]
        %v551 = vld [vmem:[%s202 + $0x178] sm:$0xff]
        %v552 = vld [vmem:[%s202 + $0x180] sm:$0xff]
        %v553 = vld [vmem:[%s202 + $0x188] sm:$0xff]
        %v554 = vld [vmem:[%s202 + $0x190] sm:$0xff]
        %v555 = vld [vmem:[%s202 + $0x198] sm:$0xff]
        %v556 = vld [vmem:[%s202 + $0x1a0] sm:$0xff]
        %v557 = vld [vmem:[%s202 + $0x1a8] sm:$0xff]
        %v558 = vld [vmem:[%s202 + $0x1b0] sm:$0xff]
        %v559 = vld [vmem:[%s202 + $0x1b8] sm:$0xff]
        %v560 = vld [vmem:[%s202 + $0x1c0] sm:$0xff]
        %v561 = vld [vmem:[%s202 + $0x1c8] sm:$0xff]
        %v562 = vld [vmem:[%s202 + $0x1d0] sm:$0xff]
        %v563 = vld [vmem:[%s202 + $0x1d8] sm:$0xff]
        %v564 = vld [vmem:[%s202 + $0x1e0] sm:$0xff]
        %v565 = vld [vmem:[%s202 + $0x1e8] sm:$0xff]
        %v566 = vld [vmem:[%s202 + $0x1f0] sm:$0xff]
        %v567 = vld [vmem:[%s202 + $0x1f8] sm:$0xff]
        %v568 = vld [vmem:[%s202 + $0x200] sm:$0xff]
        %v569 = vld [vmem:[%s202 + $0x208] sm:$0xff]
        %v570 = vld [vmem:[%s202 + $0x210] sm:$0xff]
        %v571 = vld [vmem:[%s202 + $0x218] sm:$0xff]
        %v572 = vld [vmem:[%s202 + $0x220] sm:$0xff]
        %v573 = vld [vmem:[%s202 + $0x228] sm:$0xff]
        %v574 = vld [vmem:[%s202 + $0x230] sm:$0xff]
        %v575 = vld [vmem:[%s202 + $0x238] sm:$0xff]
        %v576 = vld [vmem:[%s202 + $0x240] sm:$0xff]
        %v577 = vld [vmem:[%s202 + $0x248] sm:$0xff]
        %v578 = vld [vmem:[%s202 + $0x250] sm:$0xff]
        %v579 = vld [vmem:[%s202 + $0x258] sm:$0xff]
        %v580 = vld [vmem:[%s202 + $0x260] sm:$0xff]
        %v581 = vld [vmem:[%s202 + $0x268] sm:$0xff]
        %v582 = vld [vmem:[%s202 + $0x270] sm:$0xff]
        %v583 = vld [vmem:[%s202 + $0x278] sm:$0xff]
        %v584 = vld [vmem:[%s202 + $0x280] sm:$0xff]
        %v585 = vld [vmem:[%s202 + $0x288] sm:$0xff]
        %v586 = vld [vmem:[%s202 + $0x290] sm:$0xff]
        %v587 = vld [vmem:[%s202 + $0x298] sm:$0xff]
        %v588 = vld [vmem:[%s202 + $0x2a0] sm:$0xff]
        %v589 = vld [vmem:[%s202 + $0x2a8] sm:$0xff]
        %v590 = vld [vmem:[%s202 + $0x2b0] sm:$0xff]
        %v591 = vld [vmem:[%s202 + $0x2b8] sm:$0xff]
        %v592 = vld [vmem:[%s202 + $0x2c0] sm:$0xff]
        %v593 = vld [vmem:[%s202 + $0x2c8] sm:$0xff]
        %v594 = vld [vmem:[%s202 + $0x2d0] sm:$0xff]
        %v595 = vld [vmem:[%s202 + $0x2d8] sm:$0xff]
        %v596 = vld [vmem:[%s202 + $0x2e0] sm:$0xff]
        %v597 = vld [vmem:[%s202 + $0x2e8] sm:$0xff]
        %v598 = vld [vmem:[%s202 + $0x2f0] sm:$0xff]
        %v599 = vld [vmem:[%s202 + $0x2f8] sm:$0xff]
        %v600 = vld [vmem:[%s202 + $0x300] sm:$0xff]
        %v601 = vld [vmem:[%s202 + $0x308] sm:$0xff]
        %v602 = vld [vmem:[%s202 + $0x310] sm:$0xff]
        %v603 = vld [vmem:[%s202 + $0x318] sm:$0xff]
        %v604 = vld [vmem:[%s202 + $0x320] sm:$0xff]
        %v605 = vld [vmem:[%s202 + $0x328] sm:$0xff]
        %v606 = vld [vmem:[%s202 + $0x330] sm:$0xff]
        %v607 = vld [vmem:[%s202 + $0x338] sm:$0xff]
        %v608 = vld [vmem:[%s202 + $0x340] sm:$0xff]
        %v609 = vld [vmem:[%s202 + $0x348] sm:$0xff]
        %v610 = vld [vmem:[%s202 + $0x350] sm:$0xff]
        %v611 = vld [vmem:[%s202 + $0x358] sm:$0xff]
        %v612 = vld [vmem:[%s202 + $0x360] sm:$0xff]
        %v613 = vld [vmem:[%s202 + $0x368] sm:$0xff]
        %v614 = vld [vmem:[%s202 + $0x370] sm:$0xff]
        %v615 = vld [vmem:[%s202 + $0x378] sm:$0xff]
        %v616 = vld [vmem:[%s202 + $0x380] sm:$0xff]
        %v617 = vld [vmem:[%s202 + $0x388] sm:$0xff]
        %v618 = vld [vmem:[%s202 + $0x390] sm:$0xff]
        %v619 = vld [vmem:[%s202 + $0x398] sm:$0xff]
        %v620 = vld [vmem:[%s202 + $0x3a0] sm:$0xff]
        %v621 = vld [vmem:[%s202 + $0x3a8] sm:$0xff]
        %v622 = vld [vmem:[%s202 + $0x3b0] sm:$0xff]
        %v623 = vld [vmem:[%s202 + $0x3b8] sm:$0xff]
        %v624 = vld [vmem:[%s202 + $0x3c0] sm:$0xff]
        %v625 = vld [vmem:[%s202 + $0x3c8] sm:$0xff]
        %v626 = vld [vmem:[%s202 + $0x3d0] sm:$0xff]
        %v627 = vld [vmem:[%s202 + $0x3d8] sm:$0xff]
        %v628 = vld [vmem:[%s202 + $0x3e0] sm:$0xff]
        %v629 = vld [vmem:[%s202 + $0x3e8] sm:$0xff]
        %v630 = vld [vmem:[%s202 + $0x3f0] sm:$0xff]
        %v631 = vld [vmem:[%s202 + $0x3f8] sm:$0xff]
        %v632 = vld [vmem:[%s202 + $0x400] sm:$0xff]
        %v633 = vld [vmem:[%s202 + $0x408] sm:$0xff]
        %v634 = vld [vmem:[%s202 + $0x410] sm:$0xff]
        %v635 = vld [vmem:[%s202 + $0x418] sm:$0xff]
        %v636 = vld [vmem:[%s202 + $0x420] sm:$0xff]
        %v637 = vld [vmem:[%s202 + $0x428] sm:$0xff]
        %v638 = vld [vmem:[%s202 + $0x430] sm:$0xff]
        %v639 = vld [vmem:[%s202 + $0x438] sm:$0xff]
        %v640 = vld [vmem:[%s202 + $0x440] sm:$0xff]
        %v641 = vld [vmem:[%s202 + $0x448] sm:$0xff]
        %v642 = vld [vmem:[%s202 + $0x450] sm:$0xff]
        %v643 = vld [vmem:[%s202 + $0x458] sm:$0xff]
        %v644 = vld [vmem:[%s202 + $0x460] sm:$0xff]
        %v645 = vld [vmem:[%s202 + $0x468] sm:$0xff]
        %v646 = vld [vmem:[%s202 + $0x470] sm:$0xff]
        %v647 = vld [vmem:[%s202 + $0x478] sm:$0xff]
        %v648 = vld [vmem:[%s202 + $0x480] sm:$0xff]
        %v649 = vld [vmem:[%s202 + $0x488] sm:$0xff]
        %v650 = vld [vmem:[%s202 + $0x490] sm:$0xff]
        %v651 = vld [vmem:[%s202 + $0x498] sm:$0xff]
        %v652 = vld [vmem:[%s202 + $0x4a0] sm:$0xff]
        %v653 = vld [vmem:[%s202 + $0x4a8] sm:$0xff]
        %v654 = vld [vmem:[%s202 + $0x4b0] sm:$0xff]
        %v655 = vld [vmem:[%s202 + $0x4b8] sm:$0xff]
        %v656 = vld [vmem:[%s202 + $0x4c0] sm:$0xff]
        %v657 = vld [vmem:[%s202 + $0x4c8] sm:$0xff]
        %v658 = vld [vmem:[%s202 + $0x4d0] sm:$0xff]
        %v659 = vld [vmem:[%s202 + $0x4d8] sm:$0xff]
        %v660 = vld [vmem:[%s202 + $0x4e0] sm:$0xff]
        %v661 = vld [vmem:[%s202 + $0x4e8] sm:$0xff]
        %v662 = vld [vmem:[%s202 + $0x4f0] sm:$0xff]
        %v663 = vld [vmem:[%s202 + $0x4f8] sm:$0xff]
        %v664 = vld [vmem:[%s202 + $0x500] sm:$0xff]
        %v665 = vld [vmem:[%s202 + $0x508] sm:$0xff]
        %v666 = vld [vmem:[%s202 + $0x510] sm:$0xff]
        %v667 = vld [vmem:[%s202 + $0x518] sm:$0xff]
        %v668 = vld [vmem:[%s202 + $0x520] sm:$0xff]
        %v669 = vld [vmem:[%s202 + $0x528] sm:$0xff]
        %v670 = vld [vmem:[%s202 + $0x530] sm:$0xff]
        %v671 = vld [vmem:[%s202 + $0x538] sm:$0xff]
        %v960 = vunpack.c.l.b16 %v216
        %v961 = vunpack.c.h.b16 %v216
        %v962 = vunpack.c.l.b16 %v217
        %v963 = vunpack.c.h.b16 %v217
        %v964 = vunpack.c.l.b16 %v218
        %v965 = vunpack.c.h.b16 %v218
        %v966 = vunpack.c.l.b16 %v219
        %v967 = vunpack.c.h.b16 %v219
        %v968 = vunpack.c.l.b16 %v220
        %v969 = vunpack.c.h.b16 %v220
        %v970 = vunpack.c.l.b16 %v221
        %v971 = vunpack.c.l.b16 %v222
        %v972 = vunpack.c.h.b16 %v222
        %v973 = vunpack.c.l.b16 %v223
        %v974 = vunpack.c.h.b16 %v223
        %v975 = vunpack.c.l.b16 %v224
        %v976 = vunpack.c.h.b16 %v224
        %v977 = vunpack.c.l.b16 %v225
        %v978 = vunpack.c.h.b16 %v225
        %v979 = vunpack.c.l.b16 %v226
        %v980 = vunpack.c.h.b16 %v226
        %v981 = vunpack.c.l.b16 %v227
        %v982 = vunpack.c.l.b16 %v228
        %v983 = vunpack.c.h.b16 %v228
        %v984 = vunpack.c.l.b16 %v229
        %v985 = vunpack.c.h.b16 %v229
        %v986 = vunpack.c.l.b16 %v230
        %v987 = vunpack.c.h.b16 %v230
        %v988 = vunpack.c.l.b16 %v231
        %v989 = vunpack.c.h.b16 %v231
        %v990 = vunpack.c.l.b16 %v232
        %v991 = vunpack.c.h.b16 %v232
        %v992 = vunpack.c.l.b16 %v233
        %v993 = vunpack.c.l.b16 %v234
        %v994 = vunpack.c.h.b16 %v234
        %v995 = vunpack.c.l.b16 %v235
        %v996 = vunpack.c.h.b16 %v235
        %v997 = vunpack.c.l.b16 %v236
        %v998 = vunpack.c.h.b16 %v236
        %v999 = vunpack.c.l.b16 %v237
        %v1000 = vunpack.c.h.b16 %v237
        %v1001 = vunpack.c.l.b16 %v238
        %v1002 = vunpack.c.h.b16 %v238
        %v1003 = vunpack.c.l.b16 %v239
        %v1004 = vunpack.c.l.b16 %v240
        %v1005 = vunpack.c.h.b16 %v240
        %v1006 = vunpack.c.l.b16 %v241
        %v1007 = vunpack.c.h.b16 %v241
        %v1008 = vunpack.c.l.b16 %v242
        %v1009 = vunpack.c.h.b16 %v242
        %v1010 = vunpack.c.l.b16 %v243
        %v1011 = vunpack.c.h.b16 %v243
        %v1012 = vunpack.c.l.b16 %v244
        %v1013 = vunpack.c.h.b16 %v244
        %v1014 = vunpack.c.l.b16 %v245
        %v1015 = vunpack.c.l.b16 %v246
        %v1016 = vunpack.c.h.b16 %v246
        %v1017 = vunpack.c.l.b16 %v247
        %v1018 = vunpack.c.h.b16 %v247
        %v1019 = vunpack.c.l.b16 %v248
        %v1020 = vunpack.c.h.b16 %v248
        %v1021 = vunpack.c.l.b16 %v249
        %v1022 = vunpack.c.h.b16 %v249
        %v1023 = vunpack.c.l.b16 %v250
        %v1024 = vunpack.c.h.b16 %v250
        %v1025 = vunpack.c.l.b16 %v251
        %v1026 = vunpack.c.l.b16 %v252
        %v1027 = vunpack.c.h.b16 %v252
        %v1028 = vunpack.c.l.b16 %v253
        %v1029 = vunpack.c.h.b16 %v253
        %v1030 = vunpack.c.l.b16 %v254
        %v1031 = vunpack.c.h.b16 %v254
        %v1032 = vunpack.c.l.b16 %v255
        %v1033 = vunpack.c.h.b16 %v255
        %v1034 = vunpack.c.l.b16 %v256
        %v1035 = vunpack.c.h.b16 %v256
        %v1036 = vunpack.c.l.b16 %v257
        %v1037 = vunpack.c.l.b16 %v258
        %v1038 = vunpack.c.h.b16 %v258
        %v1039 = vunpack.c.l.b16 %v259
        %v1040 = vunpack.c.h.b16 %v259
        %v1041 = vunpack.c.l.b16 %v260
        %v1042 = vunpack.c.h.b16 %v260
        %v1043 = vunpack.c.l.b16 %v261
        %v1044 = vunpack.c.h.b16 %v261
        %v1045 = vunpack.c.l.b16 %v262
        %v1046 = vunpack.c.h.b16 %v262
        %v1047 = vunpack.c.l.b16 %v263
        %v1048 = vunpack.c.l.b16 %v264
        %v1049 = vunpack.c.h.b16 %v264
        %v1050 = vunpack.c.l.b16 %v265
        %v1051 = vunpack.c.h.b16 %v265
        %v1052 = vunpack.c.l.b16 %v266
        %v1053 = vunpack.c.h.b16 %v266
        %v1054 = vunpack.c.l.b16 %v267
        %v1055 = vunpack.c.h.b16 %v267
        %v1056 = vunpack.c.l.b16 %v268
        %v1057 = vunpack.c.h.b16 %v268
        %v1058 = vunpack.c.l.b16 %v269
        %v1059 = vunpack.c.l.b16 %v270
        %v1060 = vunpack.c.h.b16 %v270
        %v1061 = vunpack.c.l.b16 %v271
        %v1062 = vunpack.c.h.b16 %v271
        %v1063 = vunpack.c.l.b16 %v272
        %v1064 = vunpack.c.h.b16 %v272
        %v1065 = vunpack.c.l.b16 %v273
        %v1066 = vunpack.c.h.b16 %v273
        %v1067 = vunpack.c.l.b16 %v274
        %v1068 = vunpack.c.h.b16 %v274
        %v1069 = vunpack.c.l.b16 %v275
        %v1070 = vunpack.c.l.b16 %v276
        %v1071 = vunpack.c.h.b16 %v276
        %v1072 = vunpack.c.l.b16 %v277
        %v1073 = vunpack.c.h.b16 %v277
        %v1074 = vunpack.c.l.b16 %v278
        %v1075 = vunpack.c.h.b16 %v278
        %v1076 = vunpack.c.l.b16 %v279
        %v1077 = vunpack.c.h.b16 %v279
        %v1078 = vunpack.c.l.b16 %v280
        %v1079 = vunpack.c.h.b16 %v280
        %v1080 = vunpack.c.l.b16 %v281
        %v1081 = vunpack.c.l.b16 %v282
        %v1082 = vunpack.c.h.b16 %v282
        %v1083 = vunpack.c.l.b16 %v283
        %v1084 = vunpack.c.h.b16 %v283
        %v1085 = vunpack.c.l.b16 %v284
        %v1086 = vunpack.c.h.b16 %v284
        %v1087 = vunpack.c.l.b16 %v285
        %v1088 = vunpack.c.h.b16 %v285
        %v1089 = vunpack.c.l.b16 %v286
        %v1090 = vunpack.c.h.b16 %v286
        %v1091 = vunpack.c.l.b16 %v287
        %v1092 = vunpack.c.l.b16 %v288
        %v1093 = vunpack.c.h.b16 %v288
        %v1094 = vunpack.c.l.b16 %v289
        %v1095 = vunpack.c.h.b16 %v289
        %v1096 = vunpack.c.l.b16 %v290
        %v1097 = vunpack.c.h.b16 %v290
        %v1098 = vunpack.c.l.b16 %v291
        %v1099 = vunpack.c.h.b16 %v291
        %v1100 = vunpack.c.l.b16 %v292
        %v1101 = vunpack.c.h.b16 %v292
        %v1102 = vunpack.c.l.b16 %v293
        %v1103 = vunpack.c.l.b16 %v294
        %v1104 = vunpack.c.h.b16 %v294
        %v1105 = vunpack.c.l.b16 %v295
        %v1106 = vunpack.c.h.b16 %v295
        %v1107 = vunpack.c.l.b16 %v296
        %v1108 = vunpack.c.h.b16 %v296
        %v1109 = vunpack.c.l.b16 %v297
        %v1110 = vunpack.c.h.b16 %v297
        %v1111 = vunpack.c.l.b16 %v298
        %v1112 = vunpack.c.h.b16 %v298
        %v1113 = vunpack.c.l.b16 %v299
        %v1114 = vunpack.c.l.b16 %v300
        %v1115 = vunpack.c.h.b16 %v300
        %v1116 = vunpack.c.l.b16 %v301
        %v1117 = vunpack.c.h.b16 %v301
        %v1118 = vunpack.c.l.b16 %v302
        %v1119 = vunpack.c.h.b16 %v302
        %v1120 = vunpack.c.l.b16 %v303
        %v1121 = vunpack.c.h.b16 %v303
        %v1122 = vunpack.c.l.b16 %v304
        %v1123 = vunpack.c.h.b16 %v304
        %v1124 = vunpack.c.l.b16 %v305
        %v1125 = vunpack.c.l.b16 %v306
        %v1126 = vunpack.c.h.b16 %v306
        %v1127 = vunpack.c.l.b16 %v307
        %v1128 = vunpack.c.h.b16 %v307
        %v1129 = vunpack.c.l.b16 %v308
        %v1130 = vunpack.c.h.b16 %v308
        %v1131 = vunpack.c.l.b16 %v309
        %v1132 = vunpack.c.h.b16 %v309
        %v1133 = vunpack.c.l.b16 %v310
        %v1134 = vunpack.c.h.b16 %v310
        %v1135 = vunpack.c.l.b16 %v311
        %v1136 = vunpack.c.l.b16 %v312
        %v1137 = vunpack.c.h.b16 %v312
        %v1138 = vunpack.c.l.b16 %v313
        %v1139 = vunpack.c.h.b16 %v313
        %v1140 = vunpack.c.l.b16 %v314
        %v1141 = vunpack.c.h.b16 %v314
        %v1142 = vunpack.c.l.b16 %v315
        %v1143 = vunpack.c.h.b16 %v315
        %v1144 = vunpack.c.l.b16 %v316
        %v1145 = vunpack.c.h.b16 %v316
        %v1146 = vunpack.c.l.b16 %v317
        %v1147 = vunpack.c.l.b16 %v318
        %v1148 = vunpack.c.h.b16 %v318
        %v1149 = vunpack.c.l.b16 %v319
        %v1150 = vunpack.c.h.b16 %v319
        %v1151 = vunpack.c.l.b16 %v320
        %v1152 = vunpack.c.h.b16 %v320
        %v1153 = vunpack.c.l.b16 %v321
        %v1154 = vunpack.c.h.b16 %v321
        %v1155 = vunpack.c.l.b16 %v322
        %v1156 = vunpack.c.h.b16 %v322
        %v1157 = vunpack.c.l.b16 %v323
        %v1158 = vunpack.c.l.b16 %v324
        %v1159 = vunpack.c.h.b16 %v324
        %v1160 = vunpack.c.l.b16 %v325
        %v1161 = vunpack.c.h.b16 %v325
        %v1162 = vunpack.c.l.b16 %v326
        %v1163 = vunpack.c.h.b16 %v326
        %v1164 = vunpack.c.l.b16 %v327
        %v1165 = vunpack.c.h.b16 %v327
        %v1166 = vunpack.c.l.b16 %v328
        %v1167 = vunpack.c.h.b16 %v328
        %v1168 = vunpack.c.l.b16 %v329
        %v1169 = vunpack.c.l.b16 %v330
        %v1170 = vunpack.c.h.b16 %v330
        %v1171 = vunpack.c.l.b16 %v331
        %v1172 = vunpack.c.h.b16 %v331
        %v1173 = vunpack.c.l.b16 %v332
        %v1174 = vunpack.c.h.b16 %v332
        %v1175 = vunpack.c.l.b16 %v333
        %v1176 = vunpack.c.h.b16 %v333
        %v1177 = vunpack.c.l.b16 %v334
        %v1178 = vunpack.c.h.b16 %v334
        %v1179 = vunpack.c.l.b16 %v335
        %v1180 = vunpack.c.l.b16 %v336
        %v1181 = vunpack.c.h.b16 %v336
        %v1182 = vunpack.c.l.b16 %v337
        %v1183 = vunpack.c.h.b16 %v337
        %v1184 = vunpack.c.l.b16 %v338
        %v1185 = vunpack.c.h.b16 %v338
        %v1186 = vunpack.c.l.b16 %v339
        %v1187 = vunpack.c.h.b16 %v339
        %v1188 = vunpack.c.l.b16 %v340
        %v1189 = vunpack.c.h.b16 %v340
        %v1190 = vunpack.c.l.b16 %v341
        %v1191 = vunpack.c.l.b16 %v342
        %v1192 = vunpack.c.h.b16 %v342
        %v1193 = vunpack.c.l.b16 %v343
        %v1194 = vunpack.c.h.b16 %v343
        %v1195 = vunpack.c.l.b16 %v344
        %v1196 = vunpack.c.h.b16 %v344
        %v1197 = vunpack.c.l.b16 %v345
        %v1198 = vunpack.c.h.b16 %v345
        %v1199 = vunpack.c.l.b16 %v346
        %v1200 = vunpack.c.h.b16 %v346
        %v1201 = vunpack.c.l.b16 %v347
        %v1202 = vunpack.c.l.b16 %v348
        %v1203 = vunpack.c.h.b16 %v348
        %v1204 = vunpack.c.l.b16 %v349
        %v1205 = vunpack.c.h.b16 %v349
        %v1206 = vunpack.c.l.b16 %v350
        %v1207 = vunpack.c.h.b16 %v350
        %v1208 = vunpack.c.l.b16 %v351
        %v1209 = vunpack.c.h.b16 %v351
        %v1210 = vunpack.c.l.b16 %v352
        %v1211 = vunpack.c.h.b16 %v352
        %v1212 = vunpack.c.l.b16 %v353
        %v1213 = vunpack.c.l.b16 %v354
        %v1214 = vunpack.c.h.b16 %v354
        %v1215 = vunpack.c.l.b16 %v355
        %v1216 = vunpack.c.h.b16 %v355
        %v1217 = vunpack.c.l.b16 %v356
        %v1218 = vunpack.c.h.b16 %v356
        %v1219 = vunpack.c.l.b16 %v357
        %v1220 = vunpack.c.h.b16 %v357
        %v1221 = vunpack.c.l.b16 %v358
        %v1222 = vunpack.c.h.b16 %v358
        %v1223 = vunpack.c.l.b16 %v359
        %v1224 = vunpack.c.l.b16 %v360
        %v1225 = vunpack.c.h.b16 %v360
        %v1226 = vunpack.c.l.b16 %v361
        %v1227 = vunpack.c.h.b16 %v361
        %v1228 = vunpack.c.l.b16 %v362
        %v1229 = vunpack.c.h.b16 %v362
        %v1230 = vunpack.c.l.b16 %v363
        %v1231 = vunpack.c.h.b16 %v363
        %v1232 = vunpack.c.l.b16 %v364
        %v1233 = vunpack.c.h.b16 %v364
        %v1234 = vunpack.c.l.b16 %v365
        %v1235 = vunpack.c.l.b16 %v366
        %v1236 = vunpack.c.h.b16 %v366
        %v1237 = vunpack.c.l.b16 %v367
        %v1238 = vunpack.c.h.b16 %v367
        %v1239 = vunpack.c.l.b16 %v368
        %v1240 = vunpack.c.h.b16 %v368
        %v1241 = vunpack.c.l.b16 %v369
        %v1242 = vunpack.c.h.b16 %v369
        %v1243 = vunpack.c.l.b16 %v370
        %v1244 = vunpack.c.h.b16 %v370
        %v1245 = vunpack.c.l.b16 %v371
        %v1246 = vunpack.c.l.b16 %v372
        %v1247 = vunpack.c.h.b16 %v372
        %v1248 = vunpack.c.l.b16 %v373
        %v1249 = vunpack.c.h.b16 %v373
        %v1250 = vunpack.c.l.b16 %v374
        %v1251 = vunpack.c.h.b16 %v374
        %v1252 = vunpack.c.l.b16 %v375
        %v1253 = vunpack.c.h.b16 %v375
        %v1254 = vunpack.c.l.b16 %v376
        %v1255 = vunpack.c.h.b16 %v376
        %v1256 = vunpack.c.l.b16 %v377
        %v1257 = vunpack.c.l.b16 %v378
        %v1258 = vunpack.c.h.b16 %v378
        %v1259 = vunpack.c.l.b16 %v379
        %v1260 = vunpack.c.h.b16 %v379
        %v1261 = vunpack.c.l.b16 %v380
        %v1262 = vunpack.c.h.b16 %v380
        %v1263 = vunpack.c.l.b16 %v381
        %v1264 = vunpack.c.h.b16 %v381
        %v1265 = vunpack.c.l.b16 %v382
        %v1266 = vunpack.c.h.b16 %v382
        %v1267 = vunpack.c.l.b16 %v383
        %v1268 = vunpack.c.l.b16 %v384
        %v1269 = vunpack.c.h.b16 %v384
        %v1270 = vunpack.c.l.b16 %v385
        %v1271 = vunpack.c.h.b16 %v385
        %v1272 = vunpack.c.l.b16 %v386
        %v1273 = vunpack.c.h.b16 %v386
        %v1274 = vunpack.c.l.b16 %v387
        %v1275 = vunpack.c.h.b16 %v387
        %v1276 = vunpack.c.l.b16 %v388
        %v1277 = vunpack.c.h.b16 %v388
        %v1278 = vunpack.c.l.b16 %v389
        %v1279 = vunpack.c.l.b16 %v390
        %v1280 = vunpack.c.h.b16 %v390
        %v1281 = vunpack.c.l.b16 %v391
        %v1282 = vunpack.c.h.b16 %v391
        %v1283 = vunpack.c.l.b16 %v392
        %v1284 = vunpack.c.h.b16 %v392
        %v1285 = vunpack.c.l.b16 %v393
        %v1286 = vunpack.c.h.b16 %v393
        %v1287 = vunpack.c.l.b16 %v394
        %v1288 = vunpack.c.h.b16 %v394
        %v1289 = vunpack.c.l.b16 %v395
        %v1290 = vunpack.c.l.b16 %v396
        %v1291 = vunpack.c.h.b16 %v396
        %v1292 = vunpack.c.l.b16 %v397
        %v1293 = vunpack.c.h.b16 %v397
        %v1294 = vunpack.c.l.b16 %v398
        %v1295 = vunpack.c.h.b16 %v398
        %v1296 = vunpack.c.l.b16 %v399
        %v1297 = vunpack.c.h.b16 %v399
        %v1298 = vunpack.c.l.b16 %v400
        %v1299 = vunpack.c.h.b16 %v400
        %v1300 = vunpack.c.l.b16 %v401
        %v1301 = vunpack.c.l.b16 %v402
        %v1302 = vunpack.c.h.b16 %v402
        %v1303 = vunpack.c.l.b16 %v403
        %v1304 = vunpack.c.h.b16 %v403
        %v1305 = vunpack.c.l.b16 %v404
        %v1306 = vunpack.c.h.b16 %v404
        %v1307 = vunpack.c.l.b16 %v405
        %v1308 = vunpack.c.h.b16 %v405
        %v1309 = vunpack.c.l.b16 %v406
        %v1310 = vunpack.c.h.b16 %v406
        %v1311 = vunpack.c.l.b16 %v407
        %v1312 = vunpack.c.l.b16 %v408
        %v1313 = vunpack.c.h.b16 %v408
        %v1314 = vunpack.c.l.b16 %v409
        %v1315 = vunpack.c.h.b16 %v409
        %v1316 = vunpack.c.l.b16 %v410
        %v1317 = vunpack.c.h.b16 %v410
        %v1318 = vunpack.c.l.b16 %v411
        %v1319 = vunpack.c.h.b16 %v411
        %v1320 = vunpack.c.l.b16 %v412
        %v1321 = vunpack.c.h.b16 %v412
        %v1322 = vunpack.c.l.b16 %v413
        %v1323 = vunpack.c.l.b16 %v414
        %v1324 = vunpack.c.h.b16 %v414
        %v1325 = vunpack.c.l.b16 %v415
        %v1326 = vunpack.c.h.b16 %v415
        %v1327 = vunpack.c.l.b16 %v416
        %v1328 = vunpack.c.h.b16 %v416
        %v1329 = vunpack.c.l.b16 %v417
        %v1330 = vunpack.c.h.b16 %v417
        %v1331 = vunpack.c.l.b16 %v418
        %v1332 = vunpack.c.h.b16 %v418
        %v1333 = vunpack.c.l.b16 %v419
        %v1334 = vunpack.c.l.b16 %v420
        %v1335 = vunpack.c.h.b16 %v420
        %v1336 = vunpack.c.l.b16 %v421
        %v1337 = vunpack.c.h.b16 %v421
        %v1338 = vunpack.c.l.b16 %v422
        %v1339 = vunpack.c.h.b16 %v422
        %v1340 = vunpack.c.l.b16 %v423
        %v1341 = vunpack.c.h.b16 %v423
        %v1342 = vunpack.c.l.b16 %v424
        %v1343 = vunpack.c.h.b16 %v424
        %v1344 = vunpack.c.l.b16 %v425
        %v1345 = vunpack.c.l.b16 %v426
        %v1346 = vunpack.c.h.b16 %v426
        %v1347 = vunpack.c.l.b16 %v427
        %v1348 = vunpack.c.h.b16 %v427
        %v1349 = vunpack.c.l.b16 %v428
        %v1350 = vunpack.c.h.b16 %v428
        %v1351 = vunpack.c.l.b16 %v429
        %v1352 = vunpack.c.h.b16 %v429
        %v1353 = vunpack.c.l.b16 %v430
        %v1354 = vunpack.c.h.b16 %v430
        %v1355 = vunpack.c.l.b16 %v431
        %v1356 = vunpack.c.l.b16 %v432
        %v1357 = vunpack.c.h.b16 %v432
        %v1358 = vunpack.c.l.b16 %v433
        %v1359 = vunpack.c.h.b16 %v433
        %v1360 = vunpack.c.l.b16 %v434
        %v1361 = vunpack.c.h.b16 %v434
        %v1362 = vunpack.c.l.b16 %v435
        %v1363 = vunpack.c.h.b16 %v435
        %v1364 = vunpack.c.l.b16 %v436
        %v1365 = vunpack.c.h.b16 %v436
        %v1366 = vunpack.c.l.b16 %v437
        %v1367 = vunpack.c.l.b16 %v438
        %v1368 = vunpack.c.h.b16 %v438
        %v1369 = vunpack.c.l.b16 %v439
        %v1370 = vunpack.c.h.b16 %v439
        %v1371 = vunpack.c.l.b16 %v440
        %v1372 = vunpack.c.h.b16 %v440
        %v1373 = vunpack.c.l.b16 %v441
        %v1374 = vunpack.c.h.b16 %v441
        %v1375 = vunpack.c.l.b16 %v442
        %v1376 = vunpack.c.h.b16 %v442
        %v1377 = vunpack.c.l.b16 %v443
        %v1378 = vunpack.c.l.b16 %v444
        %v1379 = vunpack.c.h.b16 %v444
        %v1380 = vunpack.c.l.b16 %v445
        %v1381 = vunpack.c.h.b16 %v445
        %v1382 = vunpack.c.l.b16 %v446
        %v1383 = vunpack.c.h.b16 %v446
        %v1384 = vunpack.c.l.b16 %v447
        %v1385 = vunpack.c.h.b16 %v447
        %v1386 = vunpack.c.l.b16 %v448
        %v1387 = vunpack.c.h.b16 %v448
        %v1388 = vunpack.c.l.b16 %v449
        %v1389 = vunpack.c.l.b16 %v450
        %v1390 = vunpack.c.h.b16 %v450
        %v1391 = vunpack.c.l.b16 %v451
        %v1392 = vunpack.c.h.b16 %v451
        %v1393 = vunpack.c.l.b16 %v452
        %v1394 = vunpack.c.h.b16 %v452
        %v1395 = vunpack.c.l.b16 %v453
        %v1396 = vunpack.c.h.b16 %v453
        %v1397 = vunpack.c.l.b16 %v454
        %v1398 = vunpack.c.h.b16 %v454
        %v1399 = vunpack.c.l.b16 %v455
        %v1400 = vunpack.c.l.b16 %v456
        %v1401 = vunpack.c.h.b16 %v456
        %v1402 = vunpack.c.l.b16 %v457
        %v1403 = vunpack.c.h.b16 %v457
        %v1404 = vunpack.c.l.b16 %v458
        %v1405 = vunpack.c.h.b16 %v458
        %v1406 = vunpack.c.l.b16 %v459
        %v1407 = vunpack.c.h.b16 %v459
        %v1408 = vunpack.c.l.b16 %v460
        %v1409 = vunpack.c.h.b16 %v460
        %v1410 = vunpack.c.l.b16 %v461
        %v1411 = vunpack.c.l.b16 %v462
        %v1412 = vunpack.c.h.b16 %v462
        %v1413 = vunpack.c.l.b16 %v463
        %v1414 = vunpack.c.h.b16 %v463
        %v1415 = vunpack.c.l.b16 %v464
        %v1416 = vunpack.c.h.b16 %v464
        %v1417 = vunpack.c.l.b16 %v465
        %v1418 = vunpack.c.h.b16 %v465
        %v1419 = vunpack.c.l.b16 %v466
        %v1420 = vunpack.c.h.b16 %v466
        %v1421 = vunpack.c.l.b16 %v467
        %v1422 = vunpack.c.l.b16 %v468
        %v1423 = vunpack.c.h.b16 %v468
        %v1424 = vunpack.c.l.b16 %v469
        %v1425 = vunpack.c.h.b16 %v469
        %v1426 = vunpack.c.l.b16 %v470
        %v1427 = vunpack.c.h.b16 %v470
        %v1428 = vunpack.c.l.b16 %v471
        %v1429 = vunpack.c.h.b16 %v471
        %v1430 = vunpack.c.l.b16 %v472
        %v1431 = vunpack.c.h.b16 %v472
        %v1432 = vunpack.c.l.b16 %v473
        %v1433 = vunpack.c.l.b16 %v474
        %v1434 = vunpack.c.h.b16 %v474
        %v1435 = vunpack.c.l.b16 %v475
        %v1436 = vunpack.c.h.b16 %v475
        %v1437 = vunpack.c.l.b16 %v476
        %v1438 = vunpack.c.h.b16 %v476
        %v1439 = vunpack.c.l.b16 %v477
        %v1440 = vunpack.c.h.b16 %v477
        %v1441 = vunpack.c.l.b16 %v478
        %v1442 = vunpack.c.h.b16 %v478
        %v1443 = vunpack.c.l.b16 %v479
        %v1444 = vunpack.c.l.b16 %v480
        %v1445 = vunpack.c.h.b16 %v480
        %v1446 = vunpack.c.l.b16 %v481
        %v1447 = vunpack.c.h.b16 %v481
        %v1448 = vunpack.c.l.b16 %v482
        %v1449 = vunpack.c.h.b16 %v482
        %v1450 = vunpack.c.l.b16 %v483
        %v1451 = vunpack.c.h.b16 %v483
        %v1452 = vunpack.c.l.b16 %v484
        %v1453 = vunpack.c.h.b16 %v484
        %v1454 = vunpack.c.l.b16 %v485
        %v1455 = vunpack.c.l.b16 %v486
        %v1456 = vunpack.c.h.b16 %v486
        %v1457 = vunpack.c.l.b16 %v487
        %v1458 = vunpack.c.h.b16 %v487
        %v1459 = vunpack.c.l.b16 %v488
        %v1460 = vunpack.c.h.b16 %v488
        %v1461 = vunpack.c.l.b16 %v489
        %v1462 = vunpack.c.h.b16 %v489
        %v1463 = vunpack.c.l.b16 %v490
        %v1464 = vunpack.c.h.b16 %v490
        %v1465 = vunpack.c.l.b16 %v491
        %v1466 = vunpack.c.l.b16 %v492
        %v1467 = vunpack.c.h.b16 %v492
        %v1468 = vunpack.c.l.b16 %v493
        %v1469 = vunpack.c.h.b16 %v493
        %v1470 = vunpack.c.l.b16 %v494
        %v1471 = vunpack.c.h.b16 %v494
        %v1472 = vunpack.c.l.b16 %v495
        %v1473 = vunpack.c.h.b16 %v495
        %v1474 = vunpack.c.l.b16 %v496
        %v1475 = vunpack.c.h.b16 %v496
        %v1476 = vunpack.c.l.b16 %v497
        %v1477 = vunpack.c.l.b16 %v498
        %v1478 = vunpack.c.h.b16 %v498
        %v1479 = vunpack.c.l.b16 %v499
        %v1480 = vunpack.c.h.b16 %v499
        %v1481 = vunpack.c.l.b16 %v500
        %v1482 = vunpack.c.h.b16 %v500
        %v1483 = vunpack.c.l.b16 %v501
        %v1484 = vunpack.c.h.b16 %v501
        %v1485 = vunpack.c.l.b16 %v502
        %v1486 = vunpack.c.h.b16 %v502
        %v1487 = vunpack.c.l.b16 %v503
        %v1488 = vpack.c.b16 %v971, %v960
        %v1489 = vpack.c.b16 %v972, %v961
        %v1490 = vpack.c.b16 %v973, %v962
        %v1491 = vpack.c.b16 %v974, %v963
        %v1492 = vpack.c.b16 %v975, %v964
        %v1493 = vpack.c.b16 %v976, %v965
        %v1494 = vpack.c.b16 %v977, %v966
        %v1495 = vpack.c.b16 %v978, %v967
        %v1496 = vpack.c.b16 %v979, %v968
        %v1497 = vpack.c.b16 %v980, %v969
        %v1498 = vpack.c.b16 %v981, %v970
        %v1499 = vpack.c.b16 %v993, %v982
        %v1500 = vpack.c.b16 %v994, %v983
        %v1501 = vpack.c.b16 %v995, %v984
        %v1502 = vpack.c.b16 %v996, %v985
        %v1503 = vpack.c.b16 %v997, %v986
        %v1504 = vpack.c.b16 %v998, %v987
        %v1505 = vpack.c.b16 %v999, %v988
        %v1506 = vpack.c.b16 %v1000, %v989
        %v1507 = vpack.c.b16 %v1001, %v990
        %v1508 = vpack.c.b16 %v1002, %v991
        %v1509 = vpack.c.b16 %v1003, %v992
        %v1510 = vpack.c.b16 %v1015, %v1004
        %v1511 = vpack.c.b16 %v1016, %v1005
        %v1512 = vpack.c.b16 %v1017, %v1006
        %v1513 = vpack.c.b16 %v1018, %v1007
        %v1514 = vpack.c.b16 %v1019, %v1008
        %v1515 = vpack.c.b16 %v1020, %v1009
        %v1516 = vpack.c.b16 %v1021, %v1010
        %v1517 = vpack.c.b16 %v1022, %v1011
        %v1518 = vpack.c.b16 %v1023, %v1012
        %v1519 = vpack.c.b16 %v1024, %v1013
        %v1520 = vpack.c.b16 %v1025, %v1014
        %v1521 = vpack.c.b16 %v1037, %v1026
        %v1522 = vpack.c.b16 %v1038, %v1027
        %v1523 = vpack.c.b16 %v1039, %v1028
        %v1524 = vpack.c.b16 %v1040, %v1029
        %v1525 = vpack.c.b16 %v1041, %v1030
        %v1526 = vpack.c.b16 %v1042, %v1031
        %v1527 = vpack.c.b16 %v1043, %v1032
        %v1528 = vpack.c.b16 %v1044, %v1033
        %v1529 = vpack.c.b16 %v1045, %v1034
        %v1530 = vpack.c.b16 %v1046, %v1035
        %v1531 = vpack.c.b16 %v1047, %v1036
        %v1532 = vpack.c.b16 %v1059, %v1048
        %v1533 = vpack.c.b16 %v1060, %v1049
        %v1534 = vpack.c.b16 %v1061, %v1050
        %v1535 = vpack.c.b16 %v1062, %v1051
        %v1536 = vpack.c.b16 %v1063, %v1052
        %v1537 = vpack.c.b16 %v1064, %v1053
        %v1538 = vpack.c.b16 %v1065, %v1054
        %v1539 = vpack.c.b16 %v1066, %v1055
        %v1540 = vpack.c.b16 %v1067, %v1056
        %v1541 = vpack.c.b16 %v1068, %v1057
        %v1542 = vpack.c.b16 %v1069, %v1058
        %v1543 = vpack.c.b16 %v1081, %v1070
        %v1544 = vpack.c.b16 %v1082, %v1071
        %v1545 = vpack.c.b16 %v1083, %v1072
        %v1546 = vpack.c.b16 %v1084, %v1073
        %v1547 = vpack.c.b16 %v1085, %v1074
        %v1548 = vpack.c.b16 %v1086, %v1075
        %v1549 = vpack.c.b16 %v1087, %v1076
        %v1550 = vpack.c.b16 %v1088, %v1077
        %v1551 = vpack.c.b16 %v1089, %v1078
        %v1552 = vpack.c.b16 %v1090, %v1079
        %v1553 = vpack.c.b16 %v1091, %v1080
        %v1554 = vpack.c.b16 %v1103, %v1092
        %v1555 = vpack.c.b16 %v1104, %v1093
        %v1556 = vpack.c.b16 %v1105, %v1094
        %v1557 = vpack.c.b16 %v1106, %v1095
        %v1558 = vpack.c.b16 %v1107, %v1096
        %v1559 = vpack.c.b16 %v1108, %v1097
        %v1560 = vpack.c.b16 %v1109, %v1098
        %v1561 = vpack.c.b16 %v1110, %v1099
        %v1562 = vpack.c.b16 %v1111, %v1100
        %v1563 = vpack.c.b16 %v1112, %v1101
        %v1564 = vpack.c.b16 %v1113, %v1102
        %v1565 = vpack.c.b16 %v1125, %v1114
        %v1566 = vpack.c.b16 %v1126, %v1115
        %v1567 = vpack.c.b16 %v1127, %v1116
        %v1568 = vpack.c.b16 %v1128, %v1117
        %v1569 = vpack.c.b16 %v1129, %v1118
        %v1570 = vpack.c.b16 %v1130, %v1119
        %v1571 = vpack.c.b16 %v1131, %v1120
        %v1572 = vpack.c.b16 %v1132, %v1121
        %v1573 = vpack.c.b16 %v1133, %v1122
        %v1574 = vpack.c.b16 %v1134, %v1123
        %v1575 = vpack.c.b16 %v1135, %v1124
        %v1576 = vpack.c.b16 %v1147, %v1136
        %v1577 = vpack.c.b16 %v1148, %v1137
        %v1578 = vpack.c.b16 %v1149, %v1138
        %v1579 = vpack.c.b16 %v1150, %v1139
        %v1580 = vpack.c.b16 %v1151, %v1140
        %v1581 = vpack.c.b16 %v1152, %v1141
        %v1582 = vpack.c.b16 %v1153, %v1142
        %v1583 = vpack.c.b16 %v1154, %v1143
        %v1584 = vpack.c.b16 %v1155, %v1144
        %v1585 = vpack.c.b16 %v1156, %v1145
        %v1586 = vpack.c.b16 %v1157, %v1146
        %v1587 = vpack.c.b16 %v1169, %v1158
        %v1588 = vpack.c.b16 %v1170, %v1159
        %v1589 = vpack.c.b16 %v1171, %v1160
        %v1590 = vpack.c.b16 %v1172, %v1161
        %v1591 = vpack.c.b16 %v1173, %v1162
        %v1592 = vpack.c.b16 %v1174, %v1163
        %v1593 = vpack.c.b16 %v1175, %v1164
        %v1594 = vpack.c.b16 %v1176, %v1165
        %v1595 = vpack.c.b16 %v1177, %v1166
        %v1596 = vpack.c.b16 %v1178, %v1167
        %v1597 = vpack.c.b16 %v1179, %v1168
        %v1598 = vpack.c.b16 %v1191, %v1180
        %v1599 = vpack.c.b16 %v1192, %v1181
        %v1600 = vpack.c.b16 %v1193, %v1182
        %v1601 = vpack.c.b16 %v1194, %v1183
        %v1602 = vpack.c.b16 %v1195, %v1184
        %v1603 = vpack.c.b16 %v1196, %v1185
        %v1604 = vpack.c.b16 %v1197, %v1186
        %v1605 = vpack.c.b16 %v1198, %v1187
        %v1606 = vpack.c.b16 %v1199, %v1188
        %v1607 = vpack.c.b16 %v1200, %v1189
        %v1608 = vpack.c.b16 %v1201, %v1190
        %v1609 = vpack.c.b16 %v1213, %v1202
        %v1610 = vpack.c.b16 %v1214, %v1203
        %v1611 = vpack.c.b16 %v1215, %v1204
        %v1612 = vpack.c.b16 %v1216, %v1205
        %v1613 = vpack.c.b16 %v1217, %v1206
        %v1614 = vpack.c.b16 %v1218, %v1207
        %v1615 = vpack.c.b16 %v1219, %v1208
        %v1616 = vpack.c.b16 %v1220, %v1209
        %v1617 = vpack.c.b16 %v1221, %v1210
        %v1618 = vpack.c.b16 %v1222, %v1211
        %v1619 = vpack.c.b16 %v1223, %v1212
        %v1620 = vpack.c.b16 %v1235, %v1224
        %v1621 = vpack.c.b16 %v1236, %v1225
        %v1622 = vpack.c.b16 %v1237, %v1226
        %v1623 = vpack.c.b16 %v1238, %v1227
        %v1624 = vpack.c.b16 %v1239, %v1228
        %v1625 = vpack.c.b16 %v1240, %v1229
        %v1626 = vpack.c.b16 %v1241, %v1230
        %v1627 = vpack.c.b16 %v1242, %v1231
        %v1628 = vpack.c.b16 %v1243, %v1232
        %v1629 = vpack.c.b16 %v1244, %v1233
        %v1630 = vpack.c.b16 %v1245, %v1234
        %v1631 = vpack.c.b16 %v1257, %v1246
        %v1632 = vpack.c.b16 %v1258, %v1247
        %v1633 = vpack.c.b16 %v1259, %v1248
        %v1634 = vpack.c.b16 %v1260, %v1249
        %v1635 = vpack.c.b16 %v1261, %v1250
        %v1636 = vpack.c.b16 %v1262, %v1251
        %v1637 = vpack.c.b16 %v1263, %v1252
        %v1638 = vpack.c.b16 %v1264, %v1253
        %v1639 = vpack.c.b16 %v1265, %v1254
        %v1640 = vpack.c.b16 %v1266, %v1255
        %v1641 = vpack.c.b16 %v1267, %v1256
        %v1642 = vpack.c.b16 %v1279, %v1268
        %v1643 = vpack.c.b16 %v1280, %v1269
        %v1644 = vpack.c.b16 %v1281, %v1270
        %v1645 = vpack.c.b16 %v1282, %v1271
        %v1646 = vpack.c.b16 %v1283, %v1272
        %v1647 = vpack.c.b16 %v1284, %v1273
        %v1648 = vpack.c.b16 %v1285, %v1274
        %v1649 = vpack.c.b16 %v1286, %v1275
        %v1650 = vpack.c.b16 %v1287, %v1276
        %v1651 = vpack.c.b16 %v1288, %v1277
        %v1652 = vpack.c.b16 %v1289, %v1278
        %v1653 = vpack.c.b16 %v1301, %v1290
        %v1654 = vpack.c.b16 %v1302, %v1291
        %v1655 = vpack.c.b16 %v1303, %v1292
        %v1656 = vpack.c.b16 %v1304, %v1293
        %v1657 = vpack.c.b16 %v1305, %v1294
        %v1658 = vpack.c.b16 %v1306, %v1295
        %v1659 = vpack.c.b16 %v1307, %v1296
        %v1660 = vpack.c.b16 %v1308, %v1297
        %v1661 = vpack.c.b16 %v1309, %v1298
        %v1662 = vpack.c.b16 %v1310, %v1299
        %v1663 = vpack.c.b16 %v1311, %v1300
        %v1664 = vpack.c.b16 %v1323, %v1312
        %v1665 = vpack.c.b16 %v1324, %v1313
        %v1666 = vpack.c.b16 %v1325, %v1314
        %v1667 = vpack.c.b16 %v1326, %v1315
        %v1668 = vpack.c.b16 %v1327, %v1316
        %v1669 = vpack.c.b16 %v1328, %v1317
        %v1670 = vpack.c.b16 %v1329, %v1318
        %v1671 = vpack.c.b16 %v1330, %v1319
        %v1672 = vpack.c.b16 %v1331, %v1320
        %v1673 = vpack.c.b16 %v1332, %v1321
        %v1674 = vpack.c.b16 %v1333, %v1322
        %v1675 = vpack.c.b16 %v1345, %v1334
        %v1676 = vpack.c.b16 %v1346, %v1335
        %v1677 = vpack.c.b16 %v1347, %v1336
        %v1678 = vpack.c.b16 %v1348, %v1337
        %v1679 = vpack.c.b16 %v1349, %v1338
        %v1680 = vpack.c.b16 %v1350, %v1339
        %v1681 = vpack.c.b16 %v1351, %v1340
        %v1682 = vpack.c.b16 %v1352, %v1341
        %v1683 = vpack.c.b16 %v1353, %v1342
        %v1684 = vpack.c.b16 %v1354, %v1343
        %v1685 = vpack.c.b16 %v1355, %v1344
        %v1686 = vpack.c.b16 %v1367, %v1356
        %v1687 = vpack.c.b16 %v1368, %v1357
        %v1688 = vpack.c.b16 %v1369, %v1358
        %v1689 = vpack.c.b16 %v1370, %v1359
        %v1690 = vpack.c.b16 %v1371, %v1360
        %v1691 = vpack.c.b16 %v1372, %v1361
        %v1692 = vpack.c.b16 %v1373, %v1362
        %v1693 = vpack.c.b16 %v1374, %v1363
        %v1694 = vpack.c.b16 %v1375, %v1364
        %v1695 = vpack.c.b16 %v1376, %v1365
        %v1696 = vpack.c.b16 %v1377, %v1366
        %v1697 = vpack.c.b16 %v1389, %v1378
        %v1698 = vpack.c.b16 %v1390, %v1379
        %v1699 = vpack.c.b16 %v1391, %v1380
        %v1700 = vpack.c.b16 %v1392, %v1381
        %v1701 = vpack.c.b16 %v1393, %v1382
        %v1702 = vpack.c.b16 %v1394, %v1383
        %v1703 = vpack.c.b16 %v1395, %v1384
        %v1704 = vpack.c.b16 %v1396, %v1385
        %v1705 = vpack.c.b16 %v1397, %v1386
        %v1706 = vpack.c.b16 %v1398, %v1387
        %v1707 = vpack.c.b16 %v1399, %v1388
        %v1708 = vpack.c.b16 %v1411, %v1400
        %v1709 = vpack.c.b16 %v1412, %v1401
        %v1710 = vpack.c.b16 %v1413, %v1402
        %v1711 = vpack.c.b16 %v1414, %v1403
        %v1712 = vpack.c.b16 %v1415, %v1404
        %v1713 = vpack.c.b16 %v1416, %v1405
        %v1714 = vpack.c.b16 %v1417, %v1406
        %v1715 = vpack.c.b16 %v1418, %v1407
        %v1716 = vpack.c.b16 %v1419, %v1408
        %v1717 = vpack.c.b16 %v1420, %v1409
        %v1718 = vpack.c.b16 %v1421, %v1410
        %v1719 = vpack.c.b16 %v1433, %v1422
        %v1720 = vpack.c.b16 %v1434, %v1423
        %v1721 = vpack.c.b16 %v1435, %v1424
        %v1722 = vpack.c.b16 %v1436, %v1425
        %v1723 = vpack.c.b16 %v1437, %v1426
        %v1724 = vpack.c.b16 %v1438, %v1427
        %v1725 = vpack.c.b16 %v1439, %v1428
        %v1726 = vpack.c.b16 %v1440, %v1429
        %v1727 = vpack.c.b16 %v1441, %v1430
        %v1728 = vpack.c.b16 %v1442, %v1431
        %v1729 = vpack.c.b16 %v1443, %v1432
        %v1730 = vpack.c.b16 %v1455, %v1444
        %v1731 = vpack.c.b16 %v1456, %v1445
        %v1732 = vpack.c.b16 %v1457, %v1446
        %v1733 = vpack.c.b16 %v1458, %v1447
        %v1734 = vpack.c.b16 %v1459, %v1448
        %v1735 = vpack.c.b16 %v1460, %v1449
        %v1736 = vpack.c.b16 %v1461, %v1450
        %v1737 = vpack.c.b16 %v1462, %v1451
        %v1738 = vpack.c.b16 %v1463, %v1452
        %v1739 = vpack.c.b16 %v1464, %v1453
        %v1740 = vpack.c.b16 %v1465, %v1454
        %v1741 = vpack.c.b16 %v1477, %v1466
        %v1742 = vpack.c.b16 %v1478, %v1467
        %v1743 = vpack.c.b16 %v1479, %v1468
        %v1744 = vpack.c.b16 %v1480, %v1469
        %v1745 = vpack.c.b16 %v1481, %v1470
        %v1746 = vpack.c.b16 %v1482, %v1471
        %v1747 = vpack.c.b16 %v1483, %v1472
        %v1748 = vpack.c.b16 %v1484, %v1473
        %v1749 = vpack.c.b16 %v1485, %v1474
        %v1750 = vpack.c.b16 %v1486, %v1475
        %v1751 = vpack.c.b16 %v1487, %v1476
        %v2160 = vunpack.c.l.b16 %v504
        %v2161 = vunpack.c.h.b16 %v504
        %v2162 = vunpack.c.l.b16 %v505
        %v2163 = vunpack.c.h.b16 %v505
        %v2164 = vunpack.c.l.b16 %v506
        %v2165 = vunpack.c.h.b16 %v506
        %v2166 = vunpack.c.l.b16 %v507
        %v2167 = vunpack.c.h.b16 %v507
        %v2168 = vunpack.c.l.b16 %v508
        %v2169 = vunpack.c.h.b16 %v508
        %v2170 = vunpack.c.l.b16 %v509
        %v2171 = vunpack.c.h.b16 %v509
        %v2172 = vunpack.c.l.b16 %v510
        %v2173 = vunpack.c.h.b16 %v510
        %v2174 = vunpack.c.l.b16 %v511
        %v2175 = vunpack.c.h.b16 %v511
        %v2176 = vunpack.c.l.b16 %v512
        %v2177 = vunpack.c.h.b16 %v512
        %v2178 = vunpack.c.l.b16 %v513
        %v2179 = vunpack.c.h.b16 %v513
        %v2180 = vunpack.c.l.b16 %v514
        %v2181 = vunpack.c.h.b16 %v514
        %v2182 = vunpack.c.l.b16 %v515
        %v2183 = vunpack.c.h.b16 %v515
        %v2184 = vunpack.c.l.b16 %v516
        %v2185 = vunpack.c.h.b16 %v516
        %v2186 = vunpack.c.l.b16 %v517
        %v2187 = vunpack.c.h.b16 %v517
        %v2188 = vunpack.c.l.b16 %v518
        %v2189 = vunpack.c.h.b16 %v518
        %v2190 = vunpack.c.l.b16 %v519
        %v2191 = vunpack.c.h.b16 %v519
        %v2192 = vunpack.c.l.b16 %v520
        %v2193 = vunpack.c.h.b16 %v520
        %v2194 = vunpack.c.l.b16 %v521
        %v2195 = vunpack.c.h.b16 %v521
        %v2196 = vunpack.c.l.b16 %v522
        %v2197 = vunpack.c.h.b16 %v522
        %v2198 = vunpack.c.l.b16 %v523
        %v2199 = vunpack.c.h.b16 %v523
        %v2200 = vunpack.c.l.b16 %v524
        %v2201 = vunpack.c.h.b16 %v524
        %v2202 = vunpack.c.l.b16 %v525
        %v2203 = vunpack.c.h.b16 %v525
        %v2204 = vunpack.c.l.b16 %v526
        %v2205 = vunpack.c.h.b16 %v526
        %v2206 = vunpack.c.l.b16 %v527
        %v2207 = vunpack.c.h.b16 %v527
        %v2208 = vunpack.c.l.b16 %v528
        %v2209 = vunpack.c.h.b16 %v528
        %v2210 = vunpack.c.l.b16 %v529
        %v2211 = vunpack.c.h.b16 %v529
        %v2212 = vunpack.c.l.b16 %v530
        %v2213 = vunpack.c.h.b16 %v530
        %v2214 = vunpack.c.l.b16 %v531
        %v2215 = vunpack.c.h.b16 %v531
        %v2216 = vunpack.c.l.b16 %v532
        %v2217 = vunpack.c.h.b16 %v532
        %v2218 = vunpack.c.l.b16 %v533
        %v2219 = vunpack.c.h.b16 %v533
        %v2220 = vunpack.c.l.b16 %v534
        %v2221 = vunpack.c.h.b16 %v534
        %v2222 = vunpack.c.l.b16 %v535
        %v2223 = vunpack.c.h.b16 %v535
        %v2224 = vunpack.c.l.b16 %v536
        %v2225 = vunpack.c.h.b16 %v536
        %v2226 = vunpack.c.l.b16 %v537
        %v2227 = vunpack.c.h.b16 %v537
        %v2228 = vunpack.c.l.b16 %v538
        %v2229 = vunpack.c.h.b16 %v538
        %v2230 = vunpack.c.l.b16 %v539
        %v2231 = vunpack.c.h.b16 %v539
        %v2232 = vunpack.c.l.b16 %v540
        %v2233 = vunpack.c.h.b16 %v540
        %v2234 = vunpack.c.l.b16 %v541
        %v2235 = vunpack.c.h.b16 %v541
        %v2236 = vunpack.c.l.b16 %v542
        %v2237 = vunpack.c.h.b16 %v542
        %v2238 = vunpack.c.l.b16 %v543
        %v2239 = vunpack.c.h.b16 %v543
        %v2240 = vunpack.c.l.b16 %v544
        %v2241 = vunpack.c.h.b16 %v544
        %v2242 = vunpack.c.l.b16 %v545
        %v2243 = vunpack.c.h.b16 %v545
        %v2244 = vunpack.c.l.b16 %v546
        %v2245 = vunpack.c.h.b16 %v546
        %v2246 = vunpack.c.l.b16 %v547
        %v2247 = vunpack.c.h.b16 %v547
        %v2248 = vunpack.c.l.b16 %v548
        %v2249 = vunpack.c.h.b16 %v548
        %v2250 = vunpack.c.l.b16 %v549
        %v2251 = vunpack.c.h.b16 %v549
        %v2252 = vunpack.c.l.b16 %v550
        %v2253 = vunpack.c.h.b16 %v550
        %v2254 = vunpack.c.l.b16 %v551
        %v2255 = vunpack.c.h.b16 %v551
        %v2256 = vunpack.c.l.b16 %v552
        %v2257 = vunpack.c.h.b16 %v552
        %v2258 = vunpack.c.l.b16 %v553
        %v2259 = vunpack.c.h.b16 %v553
        %v2260 = vunpack.c.l.b16 %v554
        %v2261 = vunpack.c.h.b16 %v554
        %v2262 = vunpack.c.l.b16 %v555
        %v2263 = vunpack.c.h.b16 %v555
        %v2264 = vunpack.c.l.b16 %v556
        %v2265 = vunpack.c.h.b16 %v556
        %v2266 = vunpack.c.l.b16 %v557
        %v2267 = vunpack.c.h.b16 %v557
        %v2268 = vunpack.c.l.b16 %v558
        %v2269 = vunpack.c.h.b16 %v558
        %v2270 = vunpack.c.l.b16 %v559
        %v2271 = vunpack.c.h.b16 %v559
        %v2272 = vunpack.c.l.b16 %v560
        %v2273 = vunpack.c.h.b16 %v560
        %v2274 = vunpack.c.l.b16 %v561
        %v2275 = vunpack.c.h.b16 %v561
        %v2276 = vunpack.c.l.b16 %v562
        %v2277 = vunpack.c.h.b16 %v562
        %v2278 = vunpack.c.l.b16 %v563
        %v2279 = vunpack.c.h.b16 %v563
        %v2280 = vunpack.c.l.b16 %v564
        %v2281 = vunpack.c.h.b16 %v564
        %v2282 = vunpack.c.l.b16 %v565
        %v2283 = vunpack.c.h.b16 %v565
        %v2284 = vunpack.c.l.b16 %v566
        %v2285 = vunpack.c.h.b16 %v566
        %v2286 = vunpack.c.l.b16 %v567
        %v2287 = vunpack.c.h.b16 %v567
        %v2288 = vunpack.c.l.b16 %v568
        %v2289 = vunpack.c.h.b16 %v568
        %v2290 = vunpack.c.l.b16 %v569
        %v2291 = vunpack.c.h.b16 %v569
        %v2292 = vunpack.c.l.b16 %v570
        %v2293 = vunpack.c.h.b16 %v570
        %v2294 = vunpack.c.l.b16 %v571
        %v2295 = vunpack.c.h.b16 %v571
        %v2296 = vunpack.c.l.b16 %v572
        %v2297 = vunpack.c.h.b16 %v572
        %v2298 = vunpack.c.l.b16 %v573
        %v2299 = vunpack.c.h.b16 %v573
        %v2300 = vunpack.c.l.b16 %v574
        %v2301 = vunpack.c.h.b16 %v574
        %v2302 = vunpack.c.l.b16 %v575
        %v2303 = vunpack.c.h.b16 %v575
        %v2304 = vunpack.c.l.b16 %v576
        %v2305 = vunpack.c.h.b16 %v576
        %v2306 = vunpack.c.l.b16 %v577
        %v2307 = vunpack.c.h.b16 %v577
        %v2308 = vunpack.c.l.b16 %v578
        %v2309 = vunpack.c.h.b16 %v578
        %v2310 = vunpack.c.l.b16 %v579
        %v2311 = vunpack.c.h.b16 %v579
        %v2312 = vunpack.c.l.b16 %v580
        %v2313 = vunpack.c.h.b16 %v580
        %v2314 = vunpack.c.l.b16 %v581
        %v2315 = vunpack.c.h.b16 %v581
        %v2316 = vunpack.c.l.b16 %v582
        %v2317 = vunpack.c.h.b16 %v582
        %v2318 = vunpack.c.l.b16 %v583
        %v2319 = vunpack.c.h.b16 %v583
        %v2320 = vunpack.c.l.b16 %v584
        %v2321 = vunpack.c.h.b16 %v584
        %v2322 = vunpack.c.l.b16 %v585
        %v2323 = vunpack.c.h.b16 %v585
        %v2324 = vunpack.c.l.b16 %v586
        %v2325 = vunpack.c.h.b16 %v586
        %v2326 = vunpack.c.l.b16 %v587
        %v2327 = vunpack.c.h.b16 %v587
        %v2328 = vunpack.c.l.b16 %v588
        %v2329 = vunpack.c.h.b16 %v588
        %v2330 = vunpack.c.l.b16 %v589
        %v2331 = vunpack.c.h.b16 %v589
        %v2332 = vunpack.c.l.b16 %v590
        %v2333 = vunpack.c.h.b16 %v590
        %v2334 = vunpack.c.l.b16 %v591
        %v2335 = vunpack.c.h.b16 %v591
        %v2336 = vunpack.c.l.b16 %v592
        %v2337 = vunpack.c.h.b16 %v592
        %v2338 = vunpack.c.l.b16 %v593
        %v2339 = vunpack.c.h.b16 %v593
        %v2340 = vunpack.c.l.b16 %v594
        %v2341 = vunpack.c.h.b16 %v594
        %v2342 = vunpack.c.l.b16 %v595
        %v2343 = vunpack.c.h.b16 %v595
        %v2344 = vunpack.c.l.b16 %v596
        %v2345 = vunpack.c.h.b16 %v596
        %v2346 = vunpack.c.l.b16 %v597
        %v2347 = vunpack.c.h.b16 %v597
        %v2348 = vunpack.c.l.b16 %v598
        %v2349 = vunpack.c.h.b16 %v598
        %v2350 = vunpack.c.l.b16 %v599
        %v2351 = vunpack.c.h.b16 %v599
        %v2352 = vunpack.c.l.b16 %v600
        %v2353 = vunpack.c.h.b16 %v600
        %v2354 = vunpack.c.l.b16 %v601
        %v2355 = vunpack.c.h.b16 %v601
        %v2356 = vunpack.c.l.b16 %v602
        %v2357 = vunpack.c.h.b16 %v602
        %v2358 = vunpack.c.l.b16 %v603
        %v2359 = vunpack.c.h.b16 %v603
        %v2360 = vunpack.c.l.b16 %v604
        %v2361 = vunpack.c.h.b16 %v604
        %v2362 = vunpack.c.l.b16 %v605
        %v2363 = vunpack.c.h.b16 %v605
        %v2364 = vunpack.c.l.b16 %v606
        %v2365 = vunpack.c.h.b16 %v606
        %v2366 = vunpack.c.l.b16 %v607
        %v2367 = vunpack.c.h.b16 %v607
        %v2368 = vunpack.c.l.b16 %v608
        %v2369 = vunpack.c.h.b16 %v608
        %v2370 = vunpack.c.l.b16 %v609
        %v2371 = vunpack.c.h.b16 %v609
        %v2372 = vunpack.c.l.b16 %v610
        %v2373 = vunpack.c.h.b16 %v610
        %v2374 = vunpack.c.l.b16 %v611
        %v2375 = vunpack.c.h.b16 %v611
        %v2376 = vunpack.c.l.b16 %v612
        %v2377 = vunpack.c.h.b16 %v612
        %v2378 = vunpack.c.l.b16 %v613
        %v2379 = vunpack.c.h.b16 %v613
        %v2380 = vunpack.c.l.b16 %v614
        %v2381 = vunpack.c.h.b16 %v614
        %v2382 = vunpack.c.l.b16 %v615
        %v2383 = vunpack.c.h.b16 %v615
        %v2384 = vunpack.c.l.b16 %v616
        %v2385 = vunpack.c.h.b16 %v616
        %v2386 = vunpack.c.l.b16 %v617
        %v2387 = vunpack.c.h.b16 %v617
        %v2388 = vunpack.c.l.b16 %v618
        %v2389 = vunpack.c.h.b16 %v618
        %v2390 = vunpack.c.l.b16 %v619
        %v2391 = vunpack.c.h.b16 %v619
        %v2392 = vunpack.c.l.b16 %v620
        %v2393 = vunpack.c.h.b16 %v620
        %v2394 = vunpack.c.l.b16 %v621
        %v2395 = vunpack.c.h.b16 %v621
        %v2396 = vunpack.c.l.b16 %v622
        %v2397 = vunpack.c.h.b16 %v622
        %v2398 = vunpack.c.l.b16 %v623
        %v2399 = vunpack.c.h.b16 %v623
        %v2400 = vunpack.c.l.b16 %v624
        %v2401 = vunpack.c.h.b16 %v624
        %v2402 = vunpack.c.l.b16 %v625
        %v2403 = vunpack.c.h.b16 %v625
        %v2404 = vunpack.c.l.b16 %v626
        %v2405 = vunpack.c.h.b16 %v626
        %v2406 = vunpack.c.l.b16 %v627
        %v2407 = vunpack.c.h.b16 %v627
        %v2408 = vunpack.c.l.b16 %v628
        %v2409 = vunpack.c.h.b16 %v628
        %v2410 = vunpack.c.l.b16 %v629
        %v2411 = vunpack.c.h.b16 %v629
        %v2412 = vunpack.c.l.b16 %v630
        %v2413 = vunpack.c.h.b16 %v630
        %v2414 = vunpack.c.l.b16 %v631
        %v2415 = vunpack.c.h.b16 %v631
        %v2416 = vunpack.c.l.b16 %v632
        %v2417 = vunpack.c.h.b16 %v632
        %v2418 = vunpack.c.l.b16 %v633
        %v2419 = vunpack.c.h.b16 %v633
        %v2420 = vunpack.c.l.b16 %v634
        %v2421 = vunpack.c.h.b16 %v634
        %v2422 = vunpack.c.l.b16 %v635
        %v2423 = vunpack.c.h.b16 %v635
        %v2424 = vunpack.c.l.b16 %v636
        %v2425 = vunpack.c.h.b16 %v636
        %v2426 = vunpack.c.l.b16 %v637
        %v2427 = vunpack.c.h.b16 %v637
        %v2428 = vunpack.c.l.b16 %v638
        %v2429 = vunpack.c.h.b16 %v638
        %v2430 = vunpack.c.l.b16 %v639
        %v2431 = vunpack.c.h.b16 %v639
        %v2432 = vunpack.c.l.b16 %v640
        %v2433 = vunpack.c.h.b16 %v640
        %v2434 = vunpack.c.l.b16 %v641
        %v2435 = vunpack.c.h.b16 %v641
        %v2436 = vunpack.c.l.b16 %v642
        %v2437 = vunpack.c.h.b16 %v642
        %v2438 = vunpack.c.l.b16 %v643
        %v2439 = vunpack.c.h.b16 %v643
        %v2440 = vunpack.c.l.b16 %v644
        %v2441 = vunpack.c.h.b16 %v644
        %v2442 = vunpack.c.l.b16 %v645
        %v2443 = vunpack.c.h.b16 %v645
        %v2444 = vunpack.c.l.b16 %v646
        %v2445 = vunpack.c.h.b16 %v646
        %v2446 = vunpack.c.l.b16 %v647
        %v2447 = vunpack.c.h.b16 %v647
        %v2448 = vunpack.c.l.b16 %v648
        %v2449 = vunpack.c.h.b16 %v648
        %v2450 = vunpack.c.l.b16 %v649
        %v2451 = vunpack.c.h.b16 %v649
        %v2452 = vunpack.c.l.b16 %v650
        %v2453 = vunpack.c.h.b16 %v650
        %v2454 = vunpack.c.l.b16 %v651
        %v2455 = vunpack.c.h.b16 %v651
        %v2456 = vunpack.c.l.b16 %v652
        %v2457 = vunpack.c.h.b16 %v652
        %v2458 = vunpack.c.l.b16 %v653
        %v2459 = vunpack.c.h.b16 %v653
        %v2460 = vunpack.c.l.b16 %v654
        %v2461 = vunpack.c.h.b16 %v654
        %v2462 = vunpack.c.l.b16 %v655
        %v2463 = vunpack.c.h.b16 %v655
        %v2464 = vunpack.c.l.b16 %v656
        %v2465 = vunpack.c.h.b16 %v656
        %v2466 = vunpack.c.l.b16 %v657
        %v2467 = vunpack.c.h.b16 %v657
        %v2468 = vunpack.c.l.b16 %v658
        %v2469 = vunpack.c.h.b16 %v658
        %v2470 = vunpack.c.l.b16 %v659
        %v2471 = vunpack.c.h.b16 %v659
        %v2472 = vunpack.c.l.b16 %v660
        %v2473 = vunpack.c.h.b16 %v660
        %v2474 = vunpack.c.l.b16 %v661
        %v2475 = vunpack.c.h.b16 %v661
        %v2476 = vunpack.c.l.b16 %v662
        %v2477 = vunpack.c.h.b16 %v662
        %v2478 = vunpack.c.l.b16 %v663
        %v2479 = vunpack.c.h.b16 %v663
        %v2480 = vunpack.c.l.b16 %v664
        %v2481 = vunpack.c.h.b16 %v664
        %v2482 = vunpack.c.l.b16 %v665
        %v2483 = vunpack.c.h.b16 %v665
        %v2484 = vunpack.c.l.b16 %v666
        %v2485 = vunpack.c.h.b16 %v666
        %v2486 = vunpack.c.l.b16 %v667
        %v2487 = vunpack.c.h.b16 %v667
        %v2488 = vunpack.c.l.b16 %v668
        %v2489 = vunpack.c.h.b16 %v668
        %v2490 = vunpack.c.l.b16 %v669
        %v2491 = vunpack.c.h.b16 %v669
        %v2492 = vunpack.c.l.b16 %v670
        %v2493 = vunpack.c.h.b16 %v670
        %v2494 = vunpack.c.l.b16 %v671
        %v2495 = vunpack.c.h.b16 %v671
        %v2496 = vpack.c.b16 %v2162, %v2160
        %v2497 = vpack.c.b16 %v2163, %v2161
        %v2498 = vpack.c.b16 %v2166, %v2164
        %v2499 = vpack.c.b16 %v2167, %v2165
        %v2500 = vpack.c.b16 %v2170, %v2168
        %v2501 = vpack.c.b16 %v2171, %v2169
        %v2502 = vpack.c.b16 %v2174, %v2172
        %v2503 = vpack.c.b16 %v2175, %v2173
        %v2504 = vpack.c.b16 %v2178, %v2176
        %v2505 = vpack.c.b16 %v2179, %v2177
        %v2506 = vpack.c.b16 %v2182, %v2180
        %v2507 = vpack.c.b16 %v2183, %v2181
        %v2508 = vpack.c.b16 %v2186, %v2184
        %v2509 = vpack.c.b16 %v2187, %v2185
        %v2510 = vpack.c.b16 %v2190, %v2188
        %v2511 = vpack.c.b16 %v2191, %v2189
        %v2512 = vpack.c.b16 %v2194, %v2192
        %v2513 = vpack.c.b16 %v2195, %v2193
        %v2514 = vpack.c.b16 %v2198, %v2196
        %v2515 = vpack.c.b16 %v2199, %v2197
        %v2516 = vpack.c.b16 %v2202, %v2200
        %v2517 = vpack.c.b16 %v2203, %v2201
        %v2518 = vpack.c.b16 %v2206, %v2204
        %v2519 = vpack.c.b16 %v2207, %v2205
        %v2520 = vpack.c.b16 %v2210, %v2208
        %v2521 = vpack.c.b16 %v2211, %v2209
        %v2522 = vpack.c.b16 %v2214, %v2212
        %v2523 = vpack.c.b16 %v2215, %v2213
        %v2524 = vpack.c.b16 %v2218, %v2216
        %v2525 = vpack.c.b16 %v2219, %v2217
        %v2526 = vpack.c.b16 %v2222, %v2220
        %v2527 = vpack.c.b16 %v2223, %v2221
        %v2528 = vpack.c.b16 %v2226, %v2224
        %v2529 = vpack.c.b16 %v2227, %v2225
        %v2530 = vpack.c.b16 %v2230, %v2228
        %v2531 = vpack.c.b16 %v2231, %v2229
        %v2532 = vpack.c.b16 %v2234, %v2232
        %v2533 = vpack.c.b16 %v2235, %v2233
        %v2534 = vpack.c.b16 %v2238, %v2236
        %v2535 = vpack.c.b16 %v2239, %v2237
        %v2536 = vpack.c.b16 %v2242, %v2240
        %v2537 = vpack.c.b16 %v2243, %v2241
        %v2538 = vpack.c.b16 %v2246, %v2244
        %v2539 = vpack.c.b16 %v2247, %v2245
        %v2540 = vpack.c.b16 %v2250, %v2248
        %v2541 = vpack.c.b16 %v2251, %v2249
        %v2542 = vpack.c.b16 %v2254, %v2252
        %v2543 = vpack.c.b16 %v2255, %v2253
        %v2544 = vpack.c.b16 %v2258, %v2256
        %v2545 = vpack.c.b16 %v2259, %v2257
        %v2546 = vpack.c.b16 %v2262, %v2260
        %v2547 = vpack.c.b16 %v2263, %v2261
        %v2548 = vpack.c.b16 %v2266, %v2264
        %v2549 = vpack.c.b16 %v2267, %v2265
        %v2550 = vpack.c.b16 %v2270, %v2268
        %v2551 = vpack.c.b16 %v2271, %v2269
        %v2552 = vpack.c.b16 %v2274, %v2272
        %v2553 = vpack.c.b16 %v2275, %v2273
        %v2554 = vpack.c.b16 %v2278, %v2276
        %v2555 = vpack.c.b16 %v2279, %v2277
        %v2556 = vpack.c.b16 %v2282, %v2280
        %v2557 = vpack.c.b16 %v2283, %v2281
        %v2558 = vpack.c.b16 %v2286, %v2284
        %v2559 = vpack.c.b16 %v2287, %v2285
        %v2560 = vpack.c.b16 %v2290, %v2288
        %v2561 = vpack.c.b16 %v2291, %v2289
        %v2562 = vpack.c.b16 %v2294, %v2292
        %v2563 = vpack.c.b16 %v2295, %v2293
        %v2564 = vpack.c.b16 %v2298, %v2296
        %v2565 = vpack.c.b16 %v2299, %v2297
        %v2566 = vpack.c.b16 %v2302, %v2300
        %v2567 = vpack.c.b16 %v2303, %v2301
        %v2568 = vpack.c.b16 %v2306, %v2304
        %v2569 = vpack.c.b16 %v2307, %v2305
        %v2570 = vpack.c.b16 %v2310, %v2308
        %v2571 = vpack.c.b16 %v2311, %v2309
        %v2572 = vpack.c.b16 %v2314, %v2312
        %v2573 = vpack.c.b16 %v2315, %v2313
        %v2574 = vpack.c.b16 %v2318, %v2316
        %v2575 = vpack.c.b16 %v2319, %v2317
        %v2576 = vpack.c.b16 %v2322, %v2320
        %v2577 = vpack.c.b16 %v2323, %v2321
        %v2578 = vpack.c.b16 %v2326, %v2324
        %v2579 = vpack.c.b16 %v2327, %v2325
        %v2580 = vpack.c.b16 %v2330, %v2328
        %v2581 = vpack.c.b16 %v2331, %v2329
        %v2582 = vpack.c.b16 %v2334, %v2332
        %v2583 = vpack.c.b16 %v2335, %v2333
        %v2584 = vpack.c.b16 %v2338, %v2336
        %v2585 = vpack.c.b16 %v2339, %v2337
        %v2586 = vpack.c.b16 %v2342, %v2340
        %v2587 = vpack.c.b16 %v2343, %v2341
        %v2588 = vpack.c.b16 %v2346, %v2344
        %v2589 = vpack.c.b16 %v2347, %v2345
        %v2590 = vpack.c.b16 %v2350, %v2348
        %v2591 = vpack.c.b16 %v2351, %v2349
        %v2592 = vpack.c.b16 %v2354, %v2352
        %v2593 = vpack.c.b16 %v2355, %v2353
        %v2594 = vpack.c.b16 %v2358, %v2356
        %v2595 = vpack.c.b16 %v2359, %v2357
        %v2596 = vpack.c.b16 %v2362, %v2360
        %v2597 = vpack.c.b16 %v2363, %v2361
        %v2598 = vpack.c.b16 %v2366, %v2364
        %v2599 = vpack.c.b16 %v2367, %v2365
        %v2600 = vpack.c.b16 %v2370, %v2368
        %v2601 = vpack.c.b16 %v2371, %v2369
        %v2602 = vpack.c.b16 %v2374, %v2372
        %v2603 = vpack.c.b16 %v2375, %v2373
        %v2604 = vpack.c.b16 %v2378, %v2376
        %v2605 = vpack.c.b16 %v2379, %v2377
        %v2606 = vpack.c.b16 %v2382, %v2380
        %v2607 = vpack.c.b16 %v2383, %v2381
        %v2608 = vpack.c.b16 %v2386, %v2384
        %v2609 = vpack.c.b16 %v2387, %v2385
        %v2610 = vpack.c.b16 %v2390, %v2388
        %v2611 = vpack.c.b16 %v2391, %v2389
        %v2612 = vpack.c.b16 %v2394, %v2392
        %v2613 = vpack.c.b16 %v2395, %v2393
        %v2614 = vpack.c.b16 %v2398, %v2396
        %v2615 = vpack.c.b16 %v2399, %v2397
        %v2616 = vpack.c.b16 %v2402, %v2400
        %v2617 = vpack.c.b16 %v2403, %v2401
        %v2618 = vpack.c.b16 %v2406, %v2404
        %v2619 = vpack.c.b16 %v2407, %v2405
        %v2620 = vpack.c.b16 %v2410, %v2408
        %v2621 = vpack.c.b16 %v2411, %v2409
        %v2622 = vpack.c.b16 %v2414, %v2412
        %v2623 = vpack.c.b16 %v2415, %v2413
        %v2624 = vpack.c.b16 %v2418, %v2416
        %v2625 = vpack.c.b16 %v2419, %v2417
        %v2626 = vpack.c.b16 %v2422, %v2420
        %v2627 = vpack.c.b16 %v2423, %v2421
        %v2628 = vpack.c.b16 %v2426, %v2424
        %v2629 = vpack.c.b16 %v2427, %v2425
        %v2630 = vpack.c.b16 %v2430, %v2428
        %v2631 = vpack.c.b16 %v2431, %v2429
        %v2632 = vpack.c.b16 %v2434, %v2432
        %v2633 = vpack.c.b16 %v2435, %v2433
        %v2634 = vpack.c.b16 %v2438, %v2436
        %v2635 = vpack.c.b16 %v2439, %v2437
        %v2636 = vpack.c.b16 %v2442, %v2440
        %v2637 = vpack.c.b16 %v2443, %v2441
        %v2638 = vpack.c.b16 %v2446, %v2444
        %v2639 = vpack.c.b16 %v2447, %v2445
        %v2640 = vpack.c.b16 %v2450, %v2448
        %v2641 = vpack.c.b16 %v2451, %v2449
        %v2642 = vpack.c.b16 %v2454, %v2452
        %v2643 = vpack.c.b16 %v2455, %v2453
        %v2644 = vpack.c.b16 %v2458, %v2456
        %v2645 = vpack.c.b16 %v2459, %v2457
        %v2646 = vpack.c.b16 %v2462, %v2460
        %v2647 = vpack.c.b16 %v2463, %v2461
        %v2648 = vpack.c.b16 %v2466, %v2464
        %v2649 = vpack.c.b16 %v2467, %v2465
        %v2650 = vpack.c.b16 %v2470, %v2468
        %v2651 = vpack.c.b16 %v2471, %v2469
        %v2652 = vpack.c.b16 %v2474, %v2472
        %v2653 = vpack.c.b16 %v2475, %v2473
        %v2654 = vpack.c.b16 %v2478, %v2476
        %v2655 = vpack.c.b16 %v2479, %v2477
        %v2656 = vpack.c.b16 %v2482, %v2480
        %v2657 = vpack.c.b16 %v2483, %v2481
        %v2658 = vpack.c.b16 %v2486, %v2484
        %v2659 = vpack.c.b16 %v2487, %v2485
        %v2660 = vpack.c.b16 %v2490, %v2488
        %v2661 = vpack.c.b16 %v2491, %v2489
        %v2662 = vpack.c.b16 %v2494, %v2492
        %v2663 = vpack.c.b16 %v2495, %v2493
        %vm2832 = vcmask 523264
        %v2834 = vsel %vm2832, %v1498, 0
        %v2837 = vsel %vm2832, %v1509, 0
        %v2840 = vsel %vm2832, %v1520, 0
        %v2843 = vsel %vm2832, %v1531, 0
        %v2846 = vsel %vm2832, %v1542, 0
        %v2849 = vsel %vm2832, %v1553, 0
        %v2852 = vsel %vm2832, %v1564, 0
        %v2855 = vsel %vm2832, %v1575, 0
        %v2858 = vsel %vm2832, %v1586, 0
        %v2861 = vsel %vm2832, %v1597, 0
        %v2864 = vsel %vm2832, %v1608, 0
        %v2867 = vsel %vm2832, %v1619, 0
        %v2870 = vsel %vm2832, %v1630, 0
        %v2873 = vsel %vm2832, %v1641, 0
        %v2876 = vsel %vm2832, %v1652, 0
        %v2879 = vsel %vm2832, %v1663, 0
        %v2882 = vsel %vm2832, %v1674, 0
        %v2885 = vsel %vm2832, %v1685, 0
        %v2888 = vsel %vm2832, %v1696, 0
        %v2891 = vsel %vm2832, %v1707, 0
        %v2894 = vsel %vm2832, %v1718, 0
        %v2897 = vsel %vm2832, %v1729, 0
        %v2900 = vsel %vm2832, %v1740, 0
        %v2903 = vsel %vm2832, %v1751, 0
        %2905 = vmatpush.bf16.msra.mxu0 %v2510
        %2906 = vmatpush.bf16.msra.mxu0 %v2508
        %2907 = vmatpush.bf16.msra.mxu0 %v2506
        %2908 = vmatpush.bf16.msra.mxu0 %v2504
        %2909 = vmatpush.bf16.msra.mxu0 %v2502
        %2910 = vmatpush.bf16.msra.mxu0 %v2500
        %2911 = vmatpush.bf16.msra.mxu0 %v2498
        %2912 = vmatpush.bf16.msra.mxu0 %v2496
        %2913 = vmatmul.bf16.gmra.mxu0 %v1488
        %v2914 = vpop.f32.mrf.mxu0
        %v2915 = vadd.f32 0.0, %v2914
        %v2916 = vpop.f32.mrf.mxu0
        %v2917 = vadd.f32 0.0, %v2916
        %2918 = vmatmul.bf16.gmra.mxu0 %v1499
        %v2919 = vpop.f32.mrf.mxu0
        %v2920 = vadd.f32 0.0, %v2919
        %v2921 = vpop.f32.mrf.mxu0
        %v2922 = vadd.f32 0.0, %v2921
        %2923 = vmatmul.bf16.gmra.mxu0 %v1510
        %v2924 = vpop.f32.mrf.mxu0
        %v2925 = vadd.f32 0.0, %v2924
        %v2926 = vpop.f32.mrf.mxu0
        %v2927 = vadd.f32 0.0, %v2926
        %2928 = vmatmul.bf16.gmra.mxu0 %v1521
        %v2929 = vpop.f32.mrf.mxu0
        %v2930 = vadd.f32 0.0, %v2929
        %v2931 = vpop.f32.mrf.mxu0
        %v2932 = vadd.f32 0.0, %v2931
        %2933 = vmatmul.bf16.gmra.mxu0 %v1532
        %v2934 = vpop.f32.mrf.mxu0
        %v2935 = vadd.f32 0.0, %v2934
        %v2936 = vpop.f32.mrf.mxu0
        %v2937 = vadd.f32 0.0, %v2936
        %2938 = vmatmul.bf16.gmra.mxu0 %v1543
        %v2939 = vpop.f32.mrf.mxu0
        %v2940 = vadd.f32 0.0, %v2939
        %v2941 = vpop.f32.mrf.mxu0
        %v2942 = vadd.f32 0.0, %v2941
        %2943 = vmatmul.bf16.gmra.mxu0 %v1554
        %v2944 = vpop.f32.mrf.mxu0
        %v2945 = vadd.f32 0.0, %v2944
        %v2946 = vpop.f32.mrf.mxu0
        %v2947 = vadd.f32 0.0, %v2946
        %2948 = vmatmul.bf16.gmra.mxu0 %v1565
        %v2949 = vpop.f32.mrf.mxu0
        %v2950 = vadd.f32 0.0, %v2949
        %v2951 = vpop.f32.mrf.mxu0
        %v2952 = vadd.f32 0.0, %v2951
        %2953 = vmatmul.bf16.gmra.mxu0 %v1576
        %v2954 = vpop.f32.mrf.mxu0
        %v2955 = vadd.f32 0.0, %v2954
        %v2956 = vpop.f32.mrf.mxu0
        %v2957 = vadd.f32 0.0, %v2956
        %2958 = vmatmul.bf16.gmra.mxu0 %v1587
        %v2959 = vpop.f32.mrf.mxu0
        %v2960 = vadd.f32 0.0, %v2959
        %v2961 = vpop.f32.mrf.mxu0
        %v2962 = vadd.f32 0.0, %v2961
        %2963 = vmatmul.bf16.gmra.mxu0 %v1598
        %v2964 = vpop.f32.mrf.mxu0
        %v2965 = vadd.f32 0.0, %v2964
        %v2966 = vpop.f32.mrf.mxu0
        %v2967 = vadd.f32 0.0, %v2966
        %2968 = vmatmul.bf16.gmra.mxu0 %v1609
        %v2969 = vpop.f32.mrf.mxu0
        %v2970 = vadd.f32 0.0, %v2969
        %v2971 = vpop.f32.mrf.mxu0
        %v2972 = vadd.f32 0.0, %v2971
        %2973 = vmatmul.bf16.gmra.mxu0 %v1620
        %v2974 = vpop.f32.mrf.mxu0
        %v2975 = vadd.f32 0.0, %v2974
        %v2976 = vpop.f32.mrf.mxu0
        %v2977 = vadd.f32 0.0, %v2976
        %2978 = vmatmul.bf16.gmra.mxu0 %v1631
        %v2979 = vpop.f32.mrf.mxu0
        %v2980 = vadd.f32 0.0, %v2979
        %v2981 = vpop.f32.mrf.mxu0
        %v2982 = vadd.f32 0.0, %v2981
        %2983 = vmatmul.bf16.gmra.mxu0 %v1642
        %v2984 = vpop.f32.mrf.mxu0
        %v2985 = vadd.f32 0.0, %v2984
        %v2986 = vpop.f32.mrf.mxu0
        %v2987 = vadd.f32 0.0, %v2986
        %2988 = vmatmul.bf16.gmra.mxu0 %v1653
        %v2989 = vpop.f32.mrf.mxu0
        %v2990 = vadd.f32 0.0, %v2989
        %v2991 = vpop.f32.mrf.mxu0
        %v2992 = vadd.f32 0.0, %v2991
        %2993 = vmatmul.bf16.gmra.mxu0 %v1664
        %v2994 = vpop.f32.mrf.mxu0
        %v2995 = vadd.f32 0.0, %v2994
        %v2996 = vpop.f32.mrf.mxu0
        %v2997 = vadd.f32 0.0, %v2996
        %2998 = vmatmul.bf16.gmra.mxu0 %v1675
        %v2999 = vpop.f32.mrf.mxu0
        %v3000 = vadd.f32 0.0, %v2999
        %v3001 = vpop.f32.mrf.mxu0
        %v3002 = vadd.f32 0.0, %v3001
        %3003 = vmatmul.bf16.gmra.mxu0 %v1686
        %v3004 = vpop.f32.mrf.mxu0
        %v3005 = vadd.f32 0.0, %v3004
        %v3006 = vpop.f32.mrf.mxu0
        %v3007 = vadd.f32 0.0, %v3006
        %3008 = vmatmul.bf16.gmra.mxu0 %v1697
        %v3009 = vpop.f32.mrf.mxu0
        %v3010 = vadd.f32 0.0, %v3009
        %v3011 = vpop.f32.mrf.mxu0
        %v3012 = vadd.f32 0.0, %v3011
        %3013 = vmatmul.bf16.gmra.mxu0 %v1708
        %v3014 = vpop.f32.mrf.mxu0
        %v3015 = vadd.f32 0.0, %v3014
        %v3016 = vpop.f32.mrf.mxu0
        %v3017 = vadd.f32 0.0, %v3016
        %3018 = vmatmul.bf16.gmra.mxu0 %v1719
        %v3019 = vpop.f32.mrf.mxu0
        %v3020 = vadd.f32 0.0, %v3019
        %v3021 = vpop.f32.mrf.mxu0
        %v3022 = vadd.f32 0.0, %v3021
        %3023 = vmatmul.bf16.gmra.mxu0 %v1730
        %v3024 = vpop.f32.mrf.mxu0
        %v3025 = vadd.f32 0.0, %v3024
        %v3026 = vpop.f32.mrf.mxu0
        %v3027 = vadd.f32 0.0, %v3026
        %3028 = vmatmul.bf16.gmra.mxu0 %v1741
        %v3029 = vpop.f32.mrf.mxu0
        %v3030 = vadd.f32 0.0, %v3029
        %v3031 = vpop.f32.mrf.mxu0
        %v3032 = vadd.f32 0.0, %v3031
        %3033 = vdwg.mxu0
        %3034 = vmatpush.bf16.msra.mxu0 %v2526
        %3035 = vmatpush.bf16.msra.mxu0 %v2524
        %3036 = vmatpush.bf16.msra.mxu0 %v2522
        %3037 = vmatpush.bf16.msra.mxu0 %v2520
        %3038 = vmatpush.bf16.msra.mxu0 %v2518
        %3039 = vmatpush.bf16.msra.mxu0 %v2516
        %3040 = vmatpush.bf16.msra.mxu0 %v2514
        %3041 = vmatpush.bf16.msra.mxu0 %v2512
        %3042 = vmatmul.bf16.gmra.mxu0 %v1489
        %v3043 = vpop.f32.mrf.mxu0
        %v3044 = vadd.f32 %v2915, %v3043
        %v3045 = vpop.f32.mrf.mxu0
        %v3046 = vadd.f32 %v2917, %v3045
        %3047 = vmatmul.bf16.gmra.mxu0 %v1500
        %v3048 = vpop.f32.mrf.mxu0
        %v3049 = vadd.f32 %v2920, %v3048
        %v3050 = vpop.f32.mrf.mxu0
        %v3051 = vadd.f32 %v2922, %v3050
        %3052 = vmatmul.bf16.gmra.mxu0 %v1511
        %v3053 = vpop.f32.mrf.mxu0
        %v3054 = vadd.f32 %v2925, %v3053
        %v3055 = vpop.f32.mrf.mxu0
        %v3056 = vadd.f32 %v2927, %v3055
        %3057 = vmatmul.bf16.gmra.mxu0 %v1522
        %v3058 = vpop.f32.mrf.mxu0
        %v3059 = vadd.f32 %v2930, %v3058
        %v3060 = vpop.f32.mrf.mxu0
        %v3061 = vadd.f32 %v2932, %v3060
        %3062 = vmatmul.bf16.gmra.mxu0 %v1533
        %v3063 = vpop.f32.mrf.mxu0
        %v3064 = vadd.f32 %v2935, %v3063
        %v3065 = vpop.f32.mrf.mxu0
        %v3066 = vadd.f32 %v2937, %v3065
        %3067 = vmatmul.bf16.gmra.mxu0 %v1544
        %v3068 = vpop.f32.mrf.mxu0
        %v3069 = vadd.f32 %v2940, %v3068
        %v3070 = vpop.f32.mrf.mxu0
        %v3071 = vadd.f32 %v2942, %v3070
        %3072 = vmatmul.bf16.gmra.mxu0 %v1555
        %v3073 = vpop.f32.mrf.mxu0
        %v3074 = vadd.f32 %v2945, %v3073
        %v3075 = vpop.f32.mrf.mxu0
        %v3076 = vadd.f32 %v2947, %v3075
        %3077 = vmatmul.bf16.gmra.mxu0 %v1566
        %v3078 = vpop.f32.mrf.mxu0
        %v3079 = vadd.f32 %v2950, %v3078
        %v3080 = vpop.f32.mrf.mxu0
        %v3081 = vadd.f32 %v2952, %v3080
        %3082 = vmatmul.bf16.gmra.mxu0 %v1577
        %v3083 = vpop.f32.mrf.mxu0
        %v3084 = vadd.f32 %v2955, %v3083
        %v3085 = vpop.f32.mrf.mxu0
        %v3086 = vadd.f32 %v2957, %v3085
        %3087 = vmatmul.bf16.gmra.mxu0 %v1588
        %v3088 = vpop.f32.mrf.mxu0
        %v3089 = vadd.f32 %v2960, %v3088
        %v3090 = vpop.f32.mrf.mxu0
        %v3091 = vadd.f32 %v2962, %v3090
        %3092 = vmatmul.bf16.gmra.mxu0 %v1599
        %v3093 = vpop.f32.mrf.mxu0
        %v3094 = vadd.f32 %v2965, %v3093
        %v3095 = vpop.f32.mrf.mxu0
        %v3096 = vadd.f32 %v2967, %v3095
        %3097 = vmatmul.bf16.gmra.mxu0 %v1610
        %v3098 = vpop.f32.mrf.mxu0
        %v3099 = vadd.f32 %v2970, %v3098
        %v3100 = vpop.f32.mrf.mxu0
        %v3101 = vadd.f32 %v2972, %v3100
        %3102 = vmatmul.bf16.gmra.mxu0 %v1621
        %v3103 = vpop.f32.mrf.mxu0
        %v3104 = vadd.f32 %v2975, %v3103
        %v3105 = vpop.f32.mrf.mxu0
        %v3106 = vadd.f32 %v2977, %v3105
        %3107 = vmatmul.bf16.gmra.mxu0 %v1632
        %v3108 = vpop.f32.mrf.mxu0
        %v3109 = vadd.f32 %v2980, %v3108
        %v3110 = vpop.f32.mrf.mxu0
        %v3111 = vadd.f32 %v2982, %v3110
        %3112 = vmatmul.bf16.gmra.mxu0 %v1643
        %v3113 = vpop.f32.mrf.mxu0
        %v3114 = vadd.f32 %v2985, %v3113
        %v3115 = vpop.f32.mrf.mxu0
        %v3116 = vadd.f32 %v2987, %v3115
        %3117 = vmatmul.bf16.gmra.mxu0 %v1654
        %v3118 = vpop.f32.mrf.mxu0
        %v3119 = vadd.f32 %v2990, %v3118
        %v3120 = vpop.f32.mrf.mxu0
        %v3121 = vadd.f32 %v2992, %v3120
        %3122 = vmatmul.bf16.gmra.mxu0 %v1665
        %v3123 = vpop.f32.mrf.mxu0
        %v3124 = vadd.f32 %v2995, %v3123
        %v3125 = vpop.f32.mrf.mxu0
        %v3126 = vadd.f32 %v2997, %v3125
        %3127 = vmatmul.bf16.gmra.mxu0 %v1676
        %v3128 = vpop.f32.mrf.mxu0
        %v3129 = vadd.f32 %v3000, %v3128
        %v3130 = vpop.f32.mrf.mxu0
        %v3131 = vadd.f32 %v3002, %v3130
        %3132 = vmatmul.bf16.gmra.mxu0 %v1687
        %v3133 = vpop.f32.mrf.mxu0
        %v3134 = vadd.f32 %v3005, %v3133
        %v3135 = vpop.f32.mrf.mxu0
        %v3136 = vadd.f32 %v3007, %v3135
        %3137 = vmatmul.bf16.gmra.mxu0 %v1698
        %v3138 = vpop.f32.mrf.mxu0
        %v3139 = vadd.f32 %v3010, %v3138
        %v3140 = vpop.f32.mrf.mxu0
        %v3141 = vadd.f32 %v3012, %v3140
        %3142 = vmatmul.bf16.gmra.mxu0 %v1709
        %v3143 = vpop.f32.mrf.mxu0
        %v3144 = vadd.f32 %v3015, %v3143
        %v3145 = vpop.f32.mrf.mxu0
        %v3146 = vadd.f32 %v3017, %v3145
        %3147 = vmatmul.bf16.gmra.mxu0 %v1720
        %v3148 = vpop.f32.mrf.mxu0
        %v3149 = vadd.f32 %v3020, %v3148
        %v3150 = vpop.f32.mrf.mxu0
        %v3151 = vadd.f32 %v3022, %v3150
        %3152 = vmatmul.bf16.gmra.mxu0 %v1731
        %v3153 = vpop.f32.mrf.mxu0
        %v3154 = vadd.f32 %v3025, %v3153
        %v3155 = vpop.f32.mrf.mxu0
        %v3156 = vadd.f32 %v3027, %v3155
        %3157 = vmatmul.bf16.gmra.mxu0 %v1742
        %v3158 = vpop.f32.mrf.mxu0
        %v3159 = vadd.f32 %v3030, %v3158
        %v3160 = vpop.f32.mrf.mxu0
        %v3161 = vadd.f32 %v3032, %v3160
        %3162 = vdwg.mxu0
        %3163 = vmatpush.bf16.msra.mxu0 %v2542
        %3164 = vmatpush.bf16.msra.mxu0 %v2540
        %3165 = vmatpush.bf16.msra.mxu0 %v2538
        %3166 = vmatpush.bf16.msra.mxu0 %v2536
        %3167 = vmatpush.bf16.msra.mxu0 %v2534
        %3168 = vmatpush.bf16.msra.mxu0 %v2532
        %3169 = vmatpush.bf16.msra.mxu0 %v2530
        %3170 = vmatpush.bf16.msra.mxu0 %v2528
        %3171 = vmatmul.bf16.gmra.mxu0 %v1490
        %v3172 = vpop.f32.mrf.mxu0
        %v3173 = vadd.f32 %v3044, %v3172
        %v3174 = vpop.f32.mrf.mxu0
        %v3175 = vadd.f32 %v3046, %v3174
        %3176 = vmatmul.bf16.gmra.mxu0 %v1501
        %v3177 = vpop.f32.mrf.mxu0
        %v3178 = vadd.f32 %v3049, %v3177
        %v3179 = vpop.f32.mrf.mxu0
        %v3180 = vadd.f32 %v3051, %v3179
        %3181 = vmatmul.bf16.gmra.mxu0 %v1512
        %v3182 = vpop.f32.mrf.mxu0
        %v3183 = vadd.f32 %v3054, %v3182
        %v3184 = vpop.f32.mrf.mxu0
        %v3185 = vadd.f32 %v3056, %v3184
        %3186 = vmatmul.bf16.gmra.mxu0 %v1523
        %v3187 = vpop.f32.mrf.mxu0
        %v3188 = vadd.f32 %v3059, %v3187
        %v3189 = vpop.f32.mrf.mxu0
        %v3190 = vadd.f32 %v3061, %v3189
        %3191 = vmatmul.bf16.gmra.mxu0 %v1534
        %v3192 = vpop.f32.mrf.mxu0
        %v3193 = vadd.f32 %v3064, %v3192
        %v3194 = vpop.f32.mrf.mxu0
        %v3195 = vadd.f32 %v3066, %v3194
        %3196 = vmatmul.bf16.gmra.mxu0 %v1545
        %v3197 = vpop.f32.mrf.mxu0
        %v3198 = vadd.f32 %v3069, %v3197
        %v3199 = vpop.f32.mrf.mxu0
        %v3200 = vadd.f32 %v3071, %v3199
        %3201 = vmatmul.bf16.gmra.mxu0 %v1556
        %v3202 = vpop.f32.mrf.mxu0
        %v3203 = vadd.f32 %v3074, %v3202
        %v3204 = vpop.f32.mrf.mxu0
        %v3205 = vadd.f32 %v3076, %v3204
        %3206 = vmatmul.bf16.gmra.mxu0 %v1567
        %v3207 = vpop.f32.mrf.mxu0
        %v3208 = vadd.f32 %v3079, %v3207
        %v3209 = vpop.f32.mrf.mxu0
        %v3210 = vadd.f32 %v3081, %v3209
        %3211 = vmatmul.bf16.gmra.mxu0 %v1578
        %v3212 = vpop.f32.mrf.mxu0
        %v3213 = vadd.f32 %v3084, %v3212
        %v3214 = vpop.f32.mrf.mxu0
        %v3215 = vadd.f32 %v3086, %v3214
        %3216 = vmatmul.bf16.gmra.mxu0 %v1589
        %v3217 = vpop.f32.mrf.mxu0
        %v3218 = vadd.f32 %v3089, %v3217
        %v3219 = vpop.f32.mrf.mxu0
        %v3220 = vadd.f32 %v3091, %v3219
        %3221 = vmatmul.bf16.gmra.mxu0 %v1600
        %v3222 = vpop.f32.mrf.mxu0
        %v3223 = vadd.f32 %v3094, %v3222
        %v3224 = vpop.f32.mrf.mxu0
        %v3225 = vadd.f32 %v3096, %v3224
        %3226 = vmatmul.bf16.gmra.mxu0 %v1611
        %v3227 = vpop.f32.mrf.mxu0
        %v3228 = vadd.f32 %v3099, %v3227
        %v3229 = vpop.f32.mrf.mxu0
        %v3230 = vadd.f32 %v3101, %v3229
        %3231 = vmatmul.bf16.gmra.mxu0 %v1622
        %v3232 = vpop.f32.mrf.mxu0
        %v3233 = vadd.f32 %v3104, %v3232
        %v3234 = vpop.f32.mrf.mxu0
        %v3235 = vadd.f32 %v3106, %v3234
        %3236 = vmatmul.bf16.gmra.mxu0 %v1633
        %v3237 = vpop.f32.mrf.mxu0
        %v3238 = vadd.f32 %v3109, %v3237
        %v3239 = vpop.f32.mrf.mxu0
        %v3240 = vadd.f32 %v3111, %v3239
        %3241 = vmatmul.bf16.gmra.mxu0 %v1644
        %v3242 = vpop.f32.mrf.mxu0
        %v3243 = vadd.f32 %v3114, %v3242
        %v3244 = vpop.f32.mrf.mxu0
        %v3245 = vadd.f32 %v3116, %v3244
        %3246 = vmatmul.bf16.gmra.mxu0 %v1655
        %v3247 = vpop.f32.mrf.mxu0
        %v3248 = vadd.f32 %v3119, %v3247
        %v3249 = vpop.f32.mrf.mxu0
        %v3250 = vadd.f32 %v3121, %v3249
        %3251 = vmatmul.bf16.gmra.mxu0 %v1666
        %v3252 = vpop.f32.mrf.mxu0
        %v3253 = vadd.f32 %v3124, %v3252
        %v3254 = vpop.f32.mrf.mxu0
        %v3255 = vadd.f32 %v3126, %v3254
        %3256 = vmatmul.bf16.gmra.mxu0 %v1677
        %v3257 = vpop.f32.mrf.mxu0
        %v3258 = vadd.f32 %v3129, %v3257
        %v3259 = vpop.f32.mrf.mxu0
        %v3260 = vadd.f32 %v3131, %v3259
        %3261 = vmatmul.bf16.gmra.mxu0 %v1688
        %v3262 = vpop.f32.mrf.mxu0
        %v3263 = vadd.f32 %v3134, %v3262
        %v3264 = vpop.f32.mrf.mxu0
        %v3265 = vadd.f32 %v3136, %v3264
        %3266 = vmatmul.bf16.gmra.mxu0 %v1699
        %v3267 = vpop.f32.mrf.mxu0
        %v3268 = vadd.f32 %v3139, %v3267
        %v3269 = vpop.f32.mrf.mxu0
        %v3270 = vadd.f32 %v3141, %v3269
        %3271 = vmatmul.bf16.gmra.mxu0 %v1710
        %v3272 = vpop.f32.mrf.mxu0
        %v3273 = vadd.f32 %v3144, %v3272
        %v3274 = vpop.f32.mrf.mxu0
        %v3275 = vadd.f32 %v3146, %v3274
        %3276 = vmatmul.bf16.gmra.mxu0 %v1721
        %v3277 = vpop.f32.mrf.mxu0
        %v3278 = vadd.f32 %v3149, %v3277
        %v3279 = vpop.f32.mrf.mxu0
        %v3280 = vadd.f32 %v3151, %v3279
        %3281 = vmatmul.bf16.gmra.mxu0 %v1732
        %v3282 = vpop.f32.mrf.mxu0
        %v3283 = vadd.f32 %v3154, %v3282
        %v3284 = vpop.f32.mrf.mxu0
        %v3285 = vadd.f32 %v3156, %v3284
        %3286 = vmatmul.bf16.gmra.mxu0 %v1743
        %v3287 = vpop.f32.mrf.mxu0
        %v3288 = vadd.f32 %v3159, %v3287
        %v3289 = vpop.f32.mrf.mxu0
        %v3290 = vadd.f32 %v3161, %v3289
        %3291 = vdwg.mxu0
        %3292 = vmatpush.bf16.msra.mxu0 %v2558
        %3293 = vmatpush.bf16.msra.mxu0 %v2556
        %3294 = vmatpush.bf16.msra.mxu0 %v2554
        %3295 = vmatpush.bf16.msra.mxu0 %v2552
        %3296 = vmatpush.bf16.msra.mxu0 %v2550
        %3297 = vmatpush.bf16.msra.mxu0 %v2548
        %3298 = vmatpush.bf16.msra.mxu0 %v2546
        %3299 = vmatpush.bf16.msra.mxu0 %v2544
        %3300 = vmatmul.bf16.gmra.mxu0 %v1491
        %v3301 = vpop.f32.mrf.mxu0
        %v3302 = vadd.f32 %v3173, %v3301
        %v3303 = vpop.f32.mrf.mxu0
        %v3304 = vadd.f32 %v3175, %v3303
        %3305 = vmatmul.bf16.gmra.mxu0 %v1502
        %v3306 = vpop.f32.mrf.mxu0
        %v3307 = vadd.f32 %v3178, %v3306
        %v3308 = vpop.f32.mrf.mxu0
        %v3309 = vadd.f32 %v3180, %v3308
        %3310 = vmatmul.bf16.gmra.mxu0 %v1513
        %v3311 = vpop.f32.mrf.mxu0
        %v3312 = vadd.f32 %v3183, %v3311
        %v3313 = vpop.f32.mrf.mxu0
        %v3314 = vadd.f32 %v3185, %v3313
        %3315 = vmatmul.bf16.gmra.mxu0 %v1524
        %v3316 = vpop.f32.mrf.mxu0
        %v3317 = vadd.f32 %v3188, %v3316
        %v3318 = vpop.f32.mrf.mxu0
        %v3319 = vadd.f32 %v3190, %v3318
        %3320 = vmatmul.bf16.gmra.mxu0 %v1535
        %v3321 = vpop.f32.mrf.mxu0
        %v3322 = vadd.f32 %v3193, %v3321
        %v3323 = vpop.f32.mrf.mxu0
        %v3324 = vadd.f32 %v3195, %v3323
        %3325 = vmatmul.bf16.gmra.mxu0 %v1546
        %v3326 = vpop.f32.mrf.mxu0
        %v3327 = vadd.f32 %v3198, %v3326
        %v3328 = vpop.f32.mrf.mxu0
        %v3329 = vadd.f32 %v3200, %v3328
        %3330 = vmatmul.bf16.gmra.mxu0 %v1557
        %v3331 = vpop.f32.mrf.mxu0
        %v3332 = vadd.f32 %v3203, %v3331
        %v3333 = vpop.f32.mrf.mxu0
        %v3334 = vadd.f32 %v3205, %v3333
        %3335 = vmatmul.bf16.gmra.mxu0 %v1568
        %v3336 = vpop.f32.mrf.mxu0
        %v3337 = vadd.f32 %v3208, %v3336
        %v3338 = vpop.f32.mrf.mxu0
        %v3339 = vadd.f32 %v3210, %v3338
        %3340 = vmatmul.bf16.gmra.mxu0 %v1579
        %v3341 = vpop.f32.mrf.mxu0
        %v3342 = vadd.f32 %v3213, %v3341
        %v3343 = vpop.f32.mrf.mxu0
        %v3344 = vadd.f32 %v3215, %v3343
        %3345 = vmatmul.bf16.gmra.mxu0 %v1590
        %v3346 = vpop.f32.mrf.mxu0
        %v3347 = vadd.f32 %v3218, %v3346
        %v3348 = vpop.f32.mrf.mxu0
        %v3349 = vadd.f32 %v3220, %v3348
        %3350 = vmatmul.bf16.gmra.mxu0 %v1601
        %v3351 = vpop.f32.mrf.mxu0
        %v3352 = vadd.f32 %v3223, %v3351
        %v3353 = vpop.f32.mrf.mxu0
        %v3354 = vadd.f32 %v3225, %v3353
        %3355 = vmatmul.bf16.gmra.mxu0 %v1612
        %v3356 = vpop.f32.mrf.mxu0
        %v3357 = vadd.f32 %v3228, %v3356
        %v3358 = vpop.f32.mrf.mxu0
        %v3359 = vadd.f32 %v3230, %v3358
        %3360 = vmatmul.bf16.gmra.mxu0 %v1623
        %v3361 = vpop.f32.mrf.mxu0
        %v3362 = vadd.f32 %v3233, %v3361
        %v3363 = vpop.f32.mrf.mxu0
        %v3364 = vadd.f32 %v3235, %v3363
        %3365 = vmatmul.bf16.gmra.mxu0 %v1634
        %v3366 = vpop.f32.mrf.mxu0
        %v3367 = vadd.f32 %v3238, %v3366
        %v3368 = vpop.f32.mrf.mxu0
        %v3369 = vadd.f32 %v3240, %v3368
        %3370 = vmatmul.bf16.gmra.mxu0 %v1645
        %v3371 = vpop.f32.mrf.mxu0
        %v3372 = vadd.f32 %v3243, %v3371
        %v3373 = vpop.f32.mrf.mxu0
        %v3374 = vadd.f32 %v3245, %v3373
        %3375 = vmatmul.bf16.gmra.mxu0 %v1656
        %v3376 = vpop.f32.mrf.mxu0
        %v3377 = vadd.f32 %v3248, %v3376
        %v3378 = vpop.f32.mrf.mxu0
        %v3379 = vadd.f32 %v3250, %v3378
        %3380 = vmatmul.bf16.gmra.mxu0 %v1667
        %v3381 = vpop.f32.mrf.mxu0
        %v3382 = vadd.f32 %v3253, %v3381
        %v3383 = vpop.f32.mrf.mxu0
        %v3384 = vadd.f32 %v3255, %v3383
        %3385 = vmatmul.bf16.gmra.mxu0 %v1678
        %v3386 = vpop.f32.mrf.mxu0
        %v3387 = vadd.f32 %v3258, %v3386
        %v3388 = vpop.f32.mrf.mxu0
        %v3389 = vadd.f32 %v3260, %v3388
        %3390 = vmatmul.bf16.gmra.mxu0 %v1689
        %v3391 = vpop.f32.mrf.mxu0
        %v3392 = vadd.f32 %v3263, %v3391
        %v3393 = vpop.f32.mrf.mxu0
        %v3394 = vadd.f32 %v3265, %v3393
        %3395 = vmatmul.bf16.gmra.mxu0 %v1700
        %v3396 = vpop.f32.mrf.mxu0
        %v3397 = vadd.f32 %v3268, %v3396
        %v3398 = vpop.f32.mrf.mxu0
        %v3399 = vadd.f32 %v3270, %v3398
        %3400 = vmatmul.bf16.gmra.mxu0 %v1711
        %v3401 = vpop.f32.mrf.mxu0
        %v3402 = vadd.f32 %v3273, %v3401
        %v3403 = vpop.f32.mrf.mxu0
        %v3404 = vadd.f32 %v3275, %v3403
        %3405 = vmatmul.bf16.gmra.mxu0 %v1722
        %v3406 = vpop.f32.mrf.mxu0
        %v3407 = vadd.f32 %v3278, %v3406
        %v3408 = vpop.f32.mrf.mxu0
        %v3409 = vadd.f32 %v3280, %v3408
        %3410 = vmatmul.bf16.gmra.mxu0 %v1733
        %v3411 = vpop.f32.mrf.mxu0
        %v3412 = vadd.f32 %v3283, %v3411
        %v3413 = vpop.f32.mrf.mxu0
        %v3414 = vadd.f32 %v3285, %v3413
        %3415 = vmatmul.bf16.gmra.mxu0 %v1744
        %v3416 = vpop.f32.mrf.mxu0
        %v3417 = vadd.f32 %v3288, %v3416
        %v3418 = vpop.f32.mrf.mxu0
        %v3419 = vadd.f32 %v3290, %v3418
        %3420 = vdwg.mxu0
        %3421 = vmatpush.bf16.msra.mxu0 %v2574
        %3422 = vmatpush.bf16.msra.mxu0 %v2572
        %3423 = vmatpush.bf16.msra.mxu0 %v2570
        %3424 = vmatpush.bf16.msra.mxu0 %v2568
        %3425 = vmatpush.bf16.msra.mxu0 %v2566
        %3426 = vmatpush.bf16.msra.mxu0 %v2564
        %3427 = vmatpush.bf16.msra.mxu0 %v2562
        %3428 = vmatpush.bf16.msra.mxu0 %v2560
        %3429 = vmatmul.bf16.gmra.mxu0 %v1492
        %v3430 = vpop.f32.mrf.mxu0
        %v3431 = vadd.f32 %v3302, %v3430
        %v3432 = vpop.f32.mrf.mxu0
        %v3433 = vadd.f32 %v3304, %v3432
        %3434 = vmatmul.bf16.gmra.mxu0 %v1503
        %v3435 = vpop.f32.mrf.mxu0
        %v3436 = vadd.f32 %v3307, %v3435
        %v3437 = vpop.f32.mrf.mxu0
        %v3438 = vadd.f32 %v3309, %v3437
        %3439 = vmatmul.bf16.gmra.mxu0 %v1514
        %v3440 = vpop.f32.mrf.mxu0
        %v3441 = vadd.f32 %v3312, %v3440
        %v3442 = vpop.f32.mrf.mxu0
        %v3443 = vadd.f32 %v3314, %v3442
        %3444 = vmatmul.bf16.gmra.mxu0 %v1525
        %v3445 = vpop.f32.mrf.mxu0
        %v3446 = vadd.f32 %v3317, %v3445
        %v3447 = vpop.f32.mrf.mxu0
        %v3448 = vadd.f32 %v3319, %v3447
        %3449 = vmatmul.bf16.gmra.mxu0 %v1536
        %v3450 = vpop.f32.mrf.mxu0
        %v3451 = vadd.f32 %v3322, %v3450
        %v3452 = vpop.f32.mrf.mxu0
        %v3453 = vadd.f32 %v3324, %v3452
        %3454 = vmatmul.bf16.gmra.mxu0 %v1547
        %v3455 = vpop.f32.mrf.mxu0
        %v3456 = vadd.f32 %v3327, %v3455
        %v3457 = vpop.f32.mrf.mxu0
        %v3458 = vadd.f32 %v3329, %v3457
        %3459 = vmatmul.bf16.gmra.mxu0 %v1558
        %v3460 = vpop.f32.mrf.mxu0
        %v3461 = vadd.f32 %v3332, %v3460
        %v3462 = vpop.f32.mrf.mxu0
        %v3463 = vadd.f32 %v3334, %v3462
        %3464 = vmatmul.bf16.gmra.mxu0 %v1569
        %v3465 = vpop.f32.mrf.mxu0
        %v3466 = vadd.f32 %v3337, %v3465
        %v3467 = vpop.f32.mrf.mxu0
        %v3468 = vadd.f32 %v3339, %v3467
        %3469 = vmatmul.bf16.gmra.mxu0 %v1580
        %v3470 = vpop.f32.mrf.mxu0
        %v3471 = vadd.f32 %v3342, %v3470
        %v3472 = vpop.f32.mrf.mxu0
        %v3473 = vadd.f32 %v3344, %v3472
        %3474 = vmatmul.bf16.gmra.mxu0 %v1591
        %v3475 = vpop.f32.mrf.mxu0
        %v3476 = vadd.f32 %v3347, %v3475
        %v3477 = vpop.f32.mrf.mxu0
        %v3478 = vadd.f32 %v3349, %v3477
        %3479 = vmatmul.bf16.gmra.mxu0 %v1602
        %v3480 = vpop.f32.mrf.mxu0
        %v3481 = vadd.f32 %v3352, %v3480
        %v3482 = vpop.f32.mrf.mxu0
        %v3483 = vadd.f32 %v3354, %v3482
        %3484 = vmatmul.bf16.gmra.mxu0 %v1613
        %v3485 = vpop.f32.mrf.mxu0
        %v3486 = vadd.f32 %v3357, %v3485
        %v3487 = vpop.f32.mrf.mxu0
        %v3488 = vadd.f32 %v3359, %v3487
        %3489 = vmatmul.bf16.gmra.mxu0 %v1624
        %v3490 = vpop.f32.mrf.mxu0
        %v3491 = vadd.f32 %v3362, %v3490
        %v3492 = vpop.f32.mrf.mxu0
        %v3493 = vadd.f32 %v3364, %v3492
        %3494 = vmatmul.bf16.gmra.mxu0 %v1635
        %v3495 = vpop.f32.mrf.mxu0
        %v3496 = vadd.f32 %v3367, %v3495
        %v3497 = vpop.f32.mrf.mxu0
        %v3498 = vadd.f32 %v3369, %v3497
        %3499 = vmatmul.bf16.gmra.mxu0 %v1646
        %v3500 = vpop.f32.mrf.mxu0
        %v3501 = vadd.f32 %v3372, %v3500
        %v3502 = vpop.f32.mrf.mxu0
        %v3503 = vadd.f32 %v3374, %v3502
        %3504 = vmatmul.bf16.gmra.mxu0 %v1657
        %v3505 = vpop.f32.mrf.mxu0
        %v3506 = vadd.f32 %v3377, %v3505
        %v3507 = vpop.f32.mrf.mxu0
        %v3508 = vadd.f32 %v3379, %v3507
        %3509 = vmatmul.bf16.gmra.mxu0 %v1668
        %v3510 = vpop.f32.mrf.mxu0
        %v3511 = vadd.f32 %v3382, %v3510
        %v3512 = vpop.f32.mrf.mxu0
        %v3513 = vadd.f32 %v3384, %v3512
        %3514 = vmatmul.bf16.gmra.mxu0 %v1679
        %v3515 = vpop.f32.mrf.mxu0
        %v3516 = vadd.f32 %v3387, %v3515
        %v3517 = vpop.f32.mrf.mxu0
        %v3518 = vadd.f32 %v3389, %v3517
        %3519 = vmatmul.bf16.gmra.mxu0 %v1690
        %v3520 = vpop.f32.mrf.mxu0
        %v3521 = vadd.f32 %v3392, %v3520
        %v3522 = vpop.f32.mrf.mxu0
        %v3523 = vadd.f32 %v3394, %v3522
        %3524 = vmatmul.bf16.gmra.mxu0 %v1701
        %v3525 = vpop.f32.mrf.mxu0
        %v3526 = vadd.f32 %v3397, %v3525
        %v3527 = vpop.f32.mrf.mxu0
        %v3528 = vadd.f32 %v3399, %v3527
        %3529 = vmatmul.bf16.gmra.mxu0 %v1712
        %v3530 = vpop.f32.mrf.mxu0
        %v3531 = vadd.f32 %v3402, %v3530
        %v3532 = vpop.f32.mrf.mxu0
        %v3533 = vadd.f32 %v3404, %v3532
        %3534 = vmatmul.bf16.gmra.mxu0 %v1723
        %v3535 = vpop.f32.mrf.mxu0
        %v3536 = vadd.f32 %v3407, %v3535
        %v3537 = vpop.f32.mrf.mxu0
        %v3538 = vadd.f32 %v3409, %v3537
        %3539 = vmatmul.bf16.gmra.mxu0 %v1734
        %v3540 = vpop.f32.mrf.mxu0
        %v3541 = vadd.f32 %v3412, %v3540
        %v3542 = vpop.f32.mrf.mxu0
        %v3543 = vadd.f32 %v3414, %v3542
        %3544 = vmatmul.bf16.gmra.mxu0 %v1745
        %v3545 = vpop.f32.mrf.mxu0
        %v3546 = vadd.f32 %v3417, %v3545
        %v3547 = vpop.f32.mrf.mxu0
        %v3548 = vadd.f32 %v3419, %v3547
        %3549 = vdwg.mxu0
        %3550 = vmatpush.bf16.msra.mxu0 %v2590
        %3551 = vmatpush.bf16.msra.mxu0 %v2588
        %3552 = vmatpush.bf16.msra.mxu0 %v2586
        %3553 = vmatpush.bf16.msra.mxu0 %v2584
        %3554 = vmatpush.bf16.msra.mxu0 %v2582
        %3555 = vmatpush.bf16.msra.mxu0 %v2580
        %3556 = vmatpush.bf16.msra.mxu0 %v2578
        %3557 = vmatpush.bf16.msra.mxu0 %v2576
        %3558 = vmatmul.bf16.gmra.mxu0 %v1493
        %v3559 = vpop.f32.mrf.mxu0
        %v3560 = vadd.f32 %v3431, %v3559
        %v3561 = vpop.f32.mrf.mxu0
        %v3562 = vadd.f32 %v3433, %v3561
        %3563 = vmatmul.bf16.gmra.mxu0 %v1504
        %v3564 = vpop.f32.mrf.mxu0
        %v3565 = vadd.f32 %v3436, %v3564
        %v3566 = vpop.f32.mrf.mxu0
        %v3567 = vadd.f32 %v3438, %v3566
        %3568 = vmatmul.bf16.gmra.mxu0 %v1515
        %v3569 = vpop.f32.mrf.mxu0
        %v3570 = vadd.f32 %v3441, %v3569
        %v3571 = vpop.f32.mrf.mxu0
        %v3572 = vadd.f32 %v3443, %v3571
        %3573 = vmatmul.bf16.gmra.mxu0 %v1526
        %v3574 = vpop.f32.mrf.mxu0
        %v3575 = vadd.f32 %v3446, %v3574
        %v3576 = vpop.f32.mrf.mxu0
        %v3577 = vadd.f32 %v3448, %v3576
        %3578 = vmatmul.bf16.gmra.mxu0 %v1537
        %v3579 = vpop.f32.mrf.mxu0
        %v3580 = vadd.f32 %v3451, %v3579
        %v3581 = vpop.f32.mrf.mxu0
        %v3582 = vadd.f32 %v3453, %v3581
        %3583 = vmatmul.bf16.gmra.mxu0 %v1548
        %v3584 = vpop.f32.mrf.mxu0
        %v3585 = vadd.f32 %v3456, %v3584
        %v3586 = vpop.f32.mrf.mxu0
        %v3587 = vadd.f32 %v3458, %v3586
        %3588 = vmatmul.bf16.gmra.mxu0 %v1559
        %v3589 = vpop.f32.mrf.mxu0
        %v3590 = vadd.f32 %v3461, %v3589
        %v3591 = vpop.f32.mrf.mxu0
        %v3592 = vadd.f32 %v3463, %v3591
        %3593 = vmatmul.bf16.gmra.mxu0 %v1570
        %v3594 = vpop.f32.mrf.mxu0
        %v3595 = vadd.f32 %v3466, %v3594
        %v3596 = vpop.f32.mrf.mxu0
        %v3597 = vadd.f32 %v3468, %v3596
        %3598 = vmatmul.bf16.gmra.mxu0 %v1581
        %v3599 = vpop.f32.mrf.mxu0
        %v3600 = vadd.f32 %v3471, %v3599
        %v3601 = vpop.f32.mrf.mxu0
        %v3602 = vadd.f32 %v3473, %v3601
        %3603 = vmatmul.bf16.gmra.mxu0 %v1592
        %v3604 = vpop.f32.mrf.mxu0
        %v3605 = vadd.f32 %v3476, %v3604
        %v3606 = vpop.f32.mrf.mxu0
        %v3607 = vadd.f32 %v3478, %v3606
        %3608 = vmatmul.bf16.gmra.mxu0 %v1603
        %v3609 = vpop.f32.mrf.mxu0
        %v3610 = vadd.f32 %v3481, %v3609
        %v3611 = vpop.f32.mrf.mxu0
        %v3612 = vadd.f32 %v3483, %v3611
        %3613 = vmatmul.bf16.gmra.mxu0 %v1614
        %v3614 = vpop.f32.mrf.mxu0
        %v3615 = vadd.f32 %v3486, %v3614
        %v3616 = vpop.f32.mrf.mxu0
        %v3617 = vadd.f32 %v3488, %v3616
        %3618 = vmatmul.bf16.gmra.mxu0 %v1625
        %v3619 = vpop.f32.mrf.mxu0
        %v3620 = vadd.f32 %v3491, %v3619
        %v3621 = vpop.f32.mrf.mxu0
        %v3622 = vadd.f32 %v3493, %v3621
        %3623 = vmatmul.bf16.gmra.mxu0 %v1636
        %v3624 = vpop.f32.mrf.mxu0
        %v3625 = vadd.f32 %v3496, %v3624
        %v3626 = vpop.f32.mrf.mxu0
        %v3627 = vadd.f32 %v3498, %v3626
        %3628 = vmatmul.bf16.gmra.mxu0 %v1647
        %v3629 = vpop.f32.mrf.mxu0
        %v3630 = vadd.f32 %v3501, %v3629
        %v3631 = vpop.f32.mrf.mxu0
        %v3632 = vadd.f32 %v3503, %v3631
        %3633 = vmatmul.bf16.gmra.mxu0 %v1658
        %v3634 = vpop.f32.mrf.mxu0
        %v3635 = vadd.f32 %v3506, %v3634
        %v3636 = vpop.f32.mrf.mxu0
        %v3637 = vadd.f32 %v3508, %v3636
        %3638 = vmatmul.bf16.gmra.mxu0 %v1669
        %v3639 = vpop.f32.mrf.mxu0
        %v3640 = vadd.f32 %v3511, %v3639
        %v3641 = vpop.f32.mrf.mxu0
        %v3642 = vadd.f32 %v3513, %v3641
        %3643 = vmatmul.bf16.gmra.mxu0 %v1680
        %v3644 = vpop.f32.mrf.mxu0
        %v3645 = vadd.f32 %v3516, %v3644
        %v3646 = vpop.f32.mrf.mxu0
        %v3647 = vadd.f32 %v3518, %v3646
        %3648 = vmatmul.bf16.gmra.mxu0 %v1691
        %v3649 = vpop.f32.mrf.mxu0
        %v3650 = vadd.f32 %v3521, %v3649
        %v3651 = vpop.f32.mrf.mxu0
        %v3652 = vadd.f32 %v3523, %v3651
        %3653 = vmatmul.bf16.gmra.mxu0 %v1702
        %v3654 = vpop.f32.mrf.mxu0
        %v3655 = vadd.f32 %v3526, %v3654
        %v3656 = vpop.f32.mrf.mxu0
        %v3657 = vadd.f32 %v3528, %v3656
        %3658 = vmatmul.bf16.gmra.mxu0 %v1713
        %v3659 = vpop.f32.mrf.mxu0
        %v3660 = vadd.f32 %v3531, %v3659
        %v3661 = vpop.f32.mrf.mxu0
        %v3662 = vadd.f32 %v3533, %v3661
        %3663 = vmatmul.bf16.gmra.mxu0 %v1724
        %v3664 = vpop.f32.mrf.mxu0
        %v3665 = vadd.f32 %v3536, %v3664
        %v3666 = vpop.f32.mrf.mxu0
        %v3667 = vadd.f32 %v3538, %v3666
        %3668 = vmatmul.bf16.gmra.mxu0 %v1735
        %v3669 = vpop.f32.mrf.mxu0
        %v3670 = vadd.f32 %v3541, %v3669
        %v3671 = vpop.f32.mrf.mxu0
        %v3672 = vadd.f32 %v3543, %v3671
        %3673 = vmatmul.bf16.gmra.mxu0 %v1746
        %v3674 = vpop.f32.mrf.mxu0
        %v3675 = vadd.f32 %v3546, %v3674
        %v3676 = vpop.f32.mrf.mxu0
        %v3677 = vadd.f32 %v3548, %v3676
        %3678 = vdwg.mxu0
        %3679 = vmatpush.bf16.msra.mxu0 %v2606
        %3680 = vmatpush.bf16.msra.mxu0 %v2604
        %3681 = vmatpush.bf16.msra.mxu0 %v2602
        %3682 = vmatpush.bf16.msra.mxu0 %v2600
        %3683 = vmatpush.bf16.msra.mxu0 %v2598
        %3684 = vmatpush.bf16.msra.mxu0 %v2596
        %3685 = vmatpush.bf16.msra.mxu0 %v2594
        %3686 = vmatpush.bf16.msra.mxu0 %v2592
        %3687 = vmatmul.bf16.gmra.mxu0 %v1494
        %v3688 = vpop.f32.mrf.mxu0
        %v3689 = vadd.f32 %v3560, %v3688
        %v3690 = vpop.f32.mrf.mxu0
        %v3691 = vadd.f32 %v3562, %v3690
        %3692 = vmatmul.bf16.gmra.mxu0 %v1505
        %v3693 = vpop.f32.mrf.mxu0
        %v3694 = vadd.f32 %v3565, %v3693
        %v3695 = vpop.f32.mrf.mxu0
        %v3696 = vadd.f32 %v3567, %v3695
        %3697 = vmatmul.bf16.gmra.mxu0 %v1516
        %v3698 = vpop.f32.mrf.mxu0
        %v3699 = vadd.f32 %v3570, %v3698
        %v3700 = vpop.f32.mrf.mxu0
        %v3701 = vadd.f32 %v3572, %v3700
        %3702 = vmatmul.bf16.gmra.mxu0 %v1527
        %v3703 = vpop.f32.mrf.mxu0
        %v3704 = vadd.f32 %v3575, %v3703
        %v3705 = vpop.f32.mrf.mxu0
        %v3706 = vadd.f32 %v3577, %v3705
        %3707 = vmatmul.bf16.gmra.mxu0 %v1538
        %v3708 = vpop.f32.mrf.mxu0
        %v3709 = vadd.f32 %v3580, %v3708
        %v3710 = vpop.f32.mrf.mxu0
        %v3711 = vadd.f32 %v3582, %v3710
        %3712 = vmatmul.bf16.gmra.mxu0 %v1549
        %v3713 = vpop.f32.mrf.mxu0
        %v3714 = vadd.f32 %v3585, %v3713
        %v3715 = vpop.f32.mrf.mxu0
        %v3716 = vadd.f32 %v3587, %v3715
        %3717 = vmatmul.bf16.gmra.mxu0 %v1560
        %v3718 = vpop.f32.mrf.mxu0
        %v3719 = vadd.f32 %v3590, %v3718
        %v3720 = vpop.f32.mrf.mxu0
        %v3721 = vadd.f32 %v3592, %v3720
        %3722 = vmatmul.bf16.gmra.mxu0 %v1571
        %v3723 = vpop.f32.mrf.mxu0
        %v3724 = vadd.f32 %v3595, %v3723
        %v3725 = vpop.f32.mrf.mxu0
        %v3726 = vadd.f32 %v3597, %v3725
        %3727 = vmatmul.bf16.gmra.mxu0 %v1582
        %v3728 = vpop.f32.mrf.mxu0
        %v3729 = vadd.f32 %v3600, %v3728
        %v3730 = vpop.f32.mrf.mxu0
        %v3731 = vadd.f32 %v3602, %v3730
        %3732 = vmatmul.bf16.gmra.mxu0 %v1593
        %v3733 = vpop.f32.mrf.mxu0
        %v3734 = vadd.f32 %v3605, %v3733
        %v3735 = vpop.f32.mrf.mxu0
        %v3736 = vadd.f32 %v3607, %v3735
        %3737 = vmatmul.bf16.gmra.mxu0 %v1604
        %v3738 = vpop.f32.mrf.mxu0
        %v3739 = vadd.f32 %v3610, %v3738
        %v3740 = vpop.f32.mrf.mxu0
        %v3741 = vadd.f32 %v3612, %v3740
        %3742 = vmatmul.bf16.gmra.mxu0 %v1615
        %v3743 = vpop.f32.mrf.mxu0
        %v3744 = vadd.f32 %v3615, %v3743
        %v3745 = vpop.f32.mrf.mxu0
        %v3746 = vadd.f32 %v3617, %v3745
        %3747 = vmatmul.bf16.gmra.mxu0 %v1626
        %v3748 = vpop.f32.mrf.mxu0
        %v3749 = vadd.f32 %v3620, %v3748
        %v3750 = vpop.f32.mrf.mxu0
        %v3751 = vadd.f32 %v3622, %v3750
        %3752 = vmatmul.bf16.gmra.mxu0 %v1637
        %v3753 = vpop.f32.mrf.mxu0
        %v3754 = vadd.f32 %v3625, %v3753
        %v3755 = vpop.f32.mrf.mxu0
        %v3756 = vadd.f32 %v3627, %v3755
        %3757 = vmatmul.bf16.gmra.mxu0 %v1648
        %v3758 = vpop.f32.mrf.mxu0
        %v3759 = vadd.f32 %v3630, %v3758
        %v3760 = vpop.f32.mrf.mxu0
        %v3761 = vadd.f32 %v3632, %v3760
        %3762 = vmatmul.bf16.gmra.mxu0 %v1659
        %v3763 = vpop.f32.mrf.mxu0
        %v3764 = vadd.f32 %v3635, %v3763
        %v3765 = vpop.f32.mrf.mxu0
        %v3766 = vadd.f32 %v3637, %v3765
        %3767 = vmatmul.bf16.gmra.mxu0 %v1670
        %v3768 = vpop.f32.mrf.mxu0
        %v3769 = vadd.f32 %v3640, %v3768
        %v3770 = vpop.f32.mrf.mxu0
        %v3771 = vadd.f32 %v3642, %v3770
        %3772 = vmatmul.bf16.gmra.mxu0 %v1681
        %v3773 = vpop.f32.mrf.mxu0
        %v3774 = vadd.f32 %v3645, %v3773
        %v3775 = vpop.f32.mrf.mxu0
        %v3776 = vadd.f32 %v3647, %v3775
        %3777 = vmatmul.bf16.gmra.mxu0 %v1692
        %v3778 = vpop.f32.mrf.mxu0
        %v3779 = vadd.f32 %v3650, %v3778
        %v3780 = vpop.f32.mrf.mxu0
        %v3781 = vadd.f32 %v3652, %v3780
        %3782 = vmatmul.bf16.gmra.mxu0 %v1703
        %v3783 = vpop.f32.mrf.mxu0
        %v3784 = vadd.f32 %v3655, %v3783
        %v3785 = vpop.f32.mrf.mxu0
        %v3786 = vadd.f32 %v3657, %v3785
        %3787 = vmatmul.bf16.gmra.mxu0 %v1714
        %v3788 = vpop.f32.mrf.mxu0
        %v3789 = vadd.f32 %v3660, %v3788
        %v3790 = vpop.f32.mrf.mxu0
        %v3791 = vadd.f32 %v3662, %v3790
        %3792 = vmatmul.bf16.gmra.mxu0 %v1725
        %v3793 = vpop.f32.mrf.mxu0
        %v3794 = vadd.f32 %v3665, %v3793
        %v3795 = vpop.f32.mrf.mxu0
        %v3796 = vadd.f32 %v3667, %v3795
        %3797 = vmatmul.bf16.gmra.mxu0 %v1736
        %v3798 = vpop.f32.mrf.mxu0
        %v3799 = vadd.f32 %v3670, %v3798
        %v3800 = vpop.f32.mrf.mxu0
        %v3801 = vadd.f32 %v3672, %v3800
        %3802 = vmatmul.bf16.gmra.mxu0 %v1747
        %v3803 = vpop.f32.mrf.mxu0
        %v3804 = vadd.f32 %v3675, %v3803
        %v3805 = vpop.f32.mrf.mxu0
        %v3806 = vadd.f32 %v3677, %v3805
        %3807 = vdwg.mxu0
        %3808 = vmatpush.bf16.msra.mxu0 %v2622
        %3809 = vmatpush.bf16.msra.mxu0 %v2620
        %3810 = vmatpush.bf16.msra.mxu0 %v2618
        %3811 = vmatpush.bf16.msra.mxu0 %v2616
        %3812 = vmatpush.bf16.msra.mxu0 %v2614
        %3813 = vmatpush.bf16.msra.mxu0 %v2612
        %3814 = vmatpush.bf16.msra.mxu0 %v2610
        %3815 = vmatpush.bf16.msra.mxu0 %v2608
        %3816 = vmatmul.bf16.gmra.mxu0 %v1495
        %v3817 = vpop.f32.mrf.mxu0
        %v3818 = vadd.f32 %v3689, %v3817
        %v3819 = vpop.f32.mrf.mxu0
        %v3820 = vadd.f32 %v3691, %v3819
        %3821 = vmatmul.bf16.gmra.mxu0 %v1506
        %v3822 = vpop.f32.mrf.mxu0
        %v3823 = vadd.f32 %v3694, %v3822
        %v3824 = vpop.f32.mrf.mxu0
        %v3825 = vadd.f32 %v3696, %v3824
        %3826 = vmatmul.bf16.gmra.mxu0 %v1517
        %v3827 = vpop.f32.mrf.mxu0
        %v3828 = vadd.f32 %v3699, %v3827
        %v3829 = vpop.f32.mrf.mxu0
        %v3830 = vadd.f32 %v3701, %v3829
        %3831 = vmatmul.bf16.gmra.mxu0 %v1528
        %v3832 = vpop.f32.mrf.mxu0
        %v3833 = vadd.f32 %v3704, %v3832
        %v3834 = vpop.f32.mrf.mxu0
        %v3835 = vadd.f32 %v3706, %v3834
        %3836 = vmatmul.bf16.gmra.mxu0 %v1539
        %v3837 = vpop.f32.mrf.mxu0
        %v3838 = vadd.f32 %v3709, %v3837
        %v3839 = vpop.f32.mrf.mxu0
        %v3840 = vadd.f32 %v3711, %v3839
        %3841 = vmatmul.bf16.gmra.mxu0 %v1550
        %v3842 = vpop.f32.mrf.mxu0
        %v3843 = vadd.f32 %v3714, %v3842
        %v3844 = vpop.f32.mrf.mxu0
        %v3845 = vadd.f32 %v3716, %v3844
        %3846 = vmatmul.bf16.gmra.mxu0 %v1561
        %v3847 = vpop.f32.mrf.mxu0
        %v3848 = vadd.f32 %v3719, %v3847
        %v3849 = vpop.f32.mrf.mxu0
        %v3850 = vadd.f32 %v3721, %v3849
        %3851 = vmatmul.bf16.gmra.mxu0 %v1572
        %v3852 = vpop.f32.mrf.mxu0
        %v3853 = vadd.f32 %v3724, %v3852
        %v3854 = vpop.f32.mrf.mxu0
        %v3855 = vadd.f32 %v3726, %v3854
        %3856 = vmatmul.bf16.gmra.mxu0 %v1583
        %v3857 = vpop.f32.mrf.mxu0
        %v3858 = vadd.f32 %v3729, %v3857
        %v3859 = vpop.f32.mrf.mxu0
        %v3860 = vadd.f32 %v3731, %v3859
        %3861 = vmatmul.bf16.gmra.mxu0 %v1594
        %v3862 = vpop.f32.mrf.mxu0
        %v3863 = vadd.f32 %v3734, %v3862
        %v3864 = vpop.f32.mrf.mxu0
        %v3865 = vadd.f32 %v3736, %v3864
        %3866 = vmatmul.bf16.gmra.mxu0 %v1605
        %v3867 = vpop.f32.mrf.mxu0
        %v3868 = vadd.f32 %v3739, %v3867
        %v3869 = vpop.f32.mrf.mxu0
        %v3870 = vadd.f32 %v3741, %v3869
        %3871 = vmatmul.bf16.gmra.mxu0 %v1616
        %v3872 = vpop.f32.mrf.mxu0
        %v3873 = vadd.f32 %v3744, %v3872
        %v3874 = vpop.f32.mrf.mxu0
        %v3875 = vadd.f32 %v3746, %v3874
        %3876 = vmatmul.bf16.gmra.mxu0 %v1627
        %v3877 = vpop.f32.mrf.mxu0
        %v3878 = vadd.f32 %v3749, %v3877
        %v3879 = vpop.f32.mrf.mxu0
        %v3880 = vadd.f32 %v3751, %v3879
        %3881 = vmatmul.bf16.gmra.mxu0 %v1638
        %v3882 = vpop.f32.mrf.mxu0
        %v3883 = vadd.f32 %v3754, %v3882
        %v3884 = vpop.f32.mrf.mxu0
        %v3885 = vadd.f32 %v3756, %v3884
        %3886 = vmatmul.bf16.gmra.mxu0 %v1649
        %v3887 = vpop.f32.mrf.mxu0
        %v3888 = vadd.f32 %v3759, %v3887
        %v3889 = vpop.f32.mrf.mxu0
        %v3890 = vadd.f32 %v3761, %v3889
        %3891 = vmatmul.bf16.gmra.mxu0 %v1660
        %v3892 = vpop.f32.mrf.mxu0
        %v3893 = vadd.f32 %v3764, %v3892
        %v3894 = vpop.f32.mrf.mxu0
        %v3895 = vadd.f32 %v3766, %v3894
        %3896 = vmatmul.bf16.gmra.mxu0 %v1671
        %v3897 = vpop.f32.mrf.mxu0
        %v3898 = vadd.f32 %v3769, %v3897
        %v3899 = vpop.f32.mrf.mxu0
        %v3900 = vadd.f32 %v3771, %v3899
        %3901 = vmatmul.bf16.gmra.mxu0 %v1682
        %v3902 = vpop.f32.mrf.mxu0
        %v3903 = vadd.f32 %v3774, %v3902
        %v3904 = vpop.f32.mrf.mxu0
        %v3905 = vadd.f32 %v3776, %v3904
        %3906 = vmatmul.bf16.gmra.mxu0 %v1693
        %v3907 = vpop.f32.mrf.mxu0
        %v3908 = vadd.f32 %v3779, %v3907
        %v3909 = vpop.f32.mrf.mxu0
        %v3910 = vadd.f32 %v3781, %v3909
        %3911 = vmatmul.bf16.gmra.mxu0 %v1704
        %v3912 = vpop.f32.mrf.mxu0
        %v3913 = vadd.f32 %v3784, %v3912
        %v3914 = vpop.f32.mrf.mxu0
        %v3915 = vadd.f32 %v3786, %v3914
        %3916 = vmatmul.bf16.gmra.mxu0 %v1715
        %v3917 = vpop.f32.mrf.mxu0
        %v3918 = vadd.f32 %v3789, %v3917
        %v3919 = vpop.f32.mrf.mxu0
        %v3920 = vadd.f32 %v3791, %v3919
        %3921 = vmatmul.bf16.gmra.mxu0 %v1726
        %v3922 = vpop.f32.mrf.mxu0
        %v3923 = vadd.f32 %v3794, %v3922
        %v3924 = vpop.f32.mrf.mxu0
        %v3925 = vadd.f32 %v3796, %v3924
        %3926 = vmatmul.bf16.gmra.mxu0 %v1737
        %v3927 = vpop.f32.mrf.mxu0
        %v3928 = vadd.f32 %v3799, %v3927
        %v3929 = vpop.f32.mrf.mxu0
        %v3930 = vadd.f32 %v3801, %v3929
        %3931 = vmatmul.bf16.gmra.mxu0 %v1748
        %v3932 = vpop.f32.mrf.mxu0
        %v3933 = vadd.f32 %v3804, %v3932
        %v3934 = vpop.f32.mrf.mxu0
        %v3935 = vadd.f32 %v3806, %v3934
        %3936 = vdwg.mxu0
        %3937 = vmatpush.bf16.msra.mxu0 %v2638
        %3938 = vmatpush.bf16.msra.mxu0 %v2636
        %3939 = vmatpush.bf16.msra.mxu0 %v2634
        %3940 = vmatpush.bf16.msra.mxu0 %v2632
        %3941 = vmatpush.bf16.msra.mxu0 %v2630
        %3942 = vmatpush.bf16.msra.mxu0 %v2628
        %3943 = vmatpush.bf16.msra.mxu0 %v2626
        %3944 = vmatpush.bf16.msra.mxu0 %v2624
        %3945 = vmatmul.bf16.gmra.mxu0 %v1496
        %v3946 = vpop.f32.mrf.mxu0
        %v3947 = vadd.f32 %v3818, %v3946
        %v3948 = vpop.f32.mrf.mxu0
        %v3949 = vadd.f32 %v3820, %v3948
        %3950 = vmatmul.bf16.gmra.mxu0 %v1507
        %v3951 = vpop.f32.mrf.mxu0
        %v3952 = vadd.f32 %v3823, %v3951
        %v3953 = vpop.f32.mrf.mxu0
        %v3954 = vadd.f32 %v3825, %v3953
        %3955 = vmatmul.bf16.gmra.mxu0 %v1518
        %v3956 = vpop.f32.mrf.mxu0
        %v3957 = vadd.f32 %v3828, %v3956
        %v3958 = vpop.f32.mrf.mxu0
        %v3959 = vadd.f32 %v3830, %v3958
        %3960 = vmatmul.bf16.gmra.mxu0 %v1529
        %v3961 = vpop.f32.mrf.mxu0
        %v3962 = vadd.f32 %v3833, %v3961
        %v3963 = vpop.f32.mrf.mxu0
        %v3964 = vadd.f32 %v3835, %v3963
        %3965 = vmatmul.bf16.gmra.mxu0 %v1540
        %v3966 = vpop.f32.mrf.mxu0
        %v3967 = vadd.f32 %v3838, %v3966
        %v3968 = vpop.f32.mrf.mxu0
        %v3969 = vadd.f32 %v3840, %v3968
        %3970 = vmatmul.bf16.gmra.mxu0 %v1551
        %v3971 = vpop.f32.mrf.mxu0
        %v3972 = vadd.f32 %v3843, %v3971
        %v3973 = vpop.f32.mrf.mxu0
        %v3974 = vadd.f32 %v3845, %v3973
        %3975 = vmatmul.bf16.gmra.mxu0 %v1562
        %v3976 = vpop.f32.mrf.mxu0
        %v3977 = vadd.f32 %v3848, %v3976
        %v3978 = vpop.f32.mrf.mxu0
        %v3979 = vadd.f32 %v3850, %v3978
        %3980 = vmatmul.bf16.gmra.mxu0 %v1573
        %v3981 = vpop.f32.mrf.mxu0
        %v3982 = vadd.f32 %v3853, %v3981
        %v3983 = vpop.f32.mrf.mxu0
        %v3984 = vadd.f32 %v3855, %v3983
        %3985 = vmatmul.bf16.gmra.mxu0 %v1584
        %v3986 = vpop.f32.mrf.mxu0
        %v3987 = vadd.f32 %v3858, %v3986
        %v3988 = vpop.f32.mrf.mxu0
        %v3989 = vadd.f32 %v3860, %v3988
        %3990 = vmatmul.bf16.gmra.mxu0 %v1595
        %v3991 = vpop.f32.mrf.mxu0
        %v3992 = vadd.f32 %v3863, %v3991
        %v3993 = vpop.f32.mrf.mxu0
        %v3994 = vadd.f32 %v3865, %v3993
        %3995 = vmatmul.bf16.gmra.mxu0 %v1606
        %v3996 = vpop.f32.mrf.mxu0
        %v3997 = vadd.f32 %v3868, %v3996
        %v3998 = vpop.f32.mrf.mxu0
        %v3999 = vadd.f32 %v3870, %v3998
        %4000 = vmatmul.bf16.gmra.mxu0 %v1617
        %v4001 = vpop.f32.mrf.mxu0
        %v4002 = vadd.f32 %v3873, %v4001
        %v4003 = vpop.f32.mrf.mxu0
        %v4004 = vadd.f32 %v3875, %v4003
        %4005 = vmatmul.bf16.gmra.mxu0 %v1628
        %v4006 = vpop.f32.mrf.mxu0
        %v4007 = vadd.f32 %v3878, %v4006
        %v4008 = vpop.f32.mrf.mxu0
        %v4009 = vadd.f32 %v3880, %v4008
        %4010 = vmatmul.bf16.gmra.mxu0 %v1639
        %v4011 = vpop.f32.mrf.mxu0
        %v4012 = vadd.f32 %v3883, %v4011
        %v4013 = vpop.f32.mrf.mxu0
        %v4014 = vadd.f32 %v3885, %v4013
        %4015 = vmatmul.bf16.gmra.mxu0 %v1650
        %v4016 = vpop.f32.mrf.mxu0
        %v4017 = vadd.f32 %v3888, %v4016
        %v4018 = vpop.f32.mrf.mxu0
        %v4019 = vadd.f32 %v3890, %v4018
        %4020 = vmatmul.bf16.gmra.mxu0 %v1661
        %v4021 = vpop.f32.mrf.mxu0
        %v4022 = vadd.f32 %v3893, %v4021
        %v4023 = vpop.f32.mrf.mxu0
        %v4024 = vadd.f32 %v3895, %v4023
        %4025 = vmatmul.bf16.gmra.mxu0 %v1672
        %v4026 = vpop.f32.mrf.mxu0
        %v4027 = vadd.f32 %v3898, %v4026
        %v4028 = vpop.f32.mrf.mxu0
        %v4029 = vadd.f32 %v3900, %v4028
        %4030 = vmatmul.bf16.gmra.mxu0 %v1683
        %v4031 = vpop.f32.mrf.mxu0
        %v4032 = vadd.f32 %v3903, %v4031
        %v4033 = vpop.f32.mrf.mxu0
        %v4034 = vadd.f32 %v3905, %v4033
        %4035 = vmatmul.bf16.gmra.mxu0 %v1694
        %v4036 = vpop.f32.mrf.mxu0
        %v4037 = vadd.f32 %v3908, %v4036
        %v4038 = vpop.f32.mrf.mxu0
        %v4039 = vadd.f32 %v3910, %v4038
        %4040 = vmatmul.bf16.gmra.mxu0 %v1705
        %v4041 = vpop.f32.mrf.mxu0
        %v4042 = vadd.f32 %v3913, %v4041
        %v4043 = vpop.f32.mrf.mxu0
        %v4044 = vadd.f32 %v3915, %v4043
        %4045 = vmatmul.bf16.gmra.mxu0 %v1716
        %v4046 = vpop.f32.mrf.mxu0
        %v4047 = vadd.f32 %v3918, %v4046
        %v4048 = vpop.f32.mrf.mxu0
        %v4049 = vadd.f32 %v3920, %v4048
        %4050 = vmatmul.bf16.gmra.mxu0 %v1727
        %v4051 = vpop.f32.mrf.mxu0
        %v4052 = vadd.f32 %v3923, %v4051
        %v4053 = vpop.f32.mrf.mxu0
        %v4054 = vadd.f32 %v3925, %v4053
        %4055 = vmatmul.bf16.gmra.mxu0 %v1738
        %v4056 = vpop.f32.mrf.mxu0
        %v4057 = vadd.f32 %v3928, %v4056
        %v4058 = vpop.f32.mrf.mxu0
        %v4059 = vadd.f32 %v3930, %v4058
        %4060 = vmatmul.bf16.gmra.mxu0 %v1749
        %v4061 = vpop.f32.mrf.mxu0
        %v4062 = vadd.f32 %v3933, %v4061
        %v4063 = vpop.f32.mrf.mxu0
        %v4064 = vadd.f32 %v3935, %v4063
        %4065 = vdwg.mxu0
        %4066 = vmatpush.bf16.msra.mxu0 %v2654
        %4067 = vmatpush.bf16.msra.mxu0 %v2652
        %4068 = vmatpush.bf16.msra.mxu0 %v2650
        %4069 = vmatpush.bf16.msra.mxu0 %v2648
        %4070 = vmatpush.bf16.msra.mxu0 %v2646
        %4071 = vmatpush.bf16.msra.mxu0 %v2644
        %4072 = vmatpush.bf16.msra.mxu0 %v2642
        %4073 = vmatpush.bf16.msra.mxu0 %v2640
        %4074 = vmatmul.bf16.gmra.mxu0 %v1497
        %v4075 = vpop.f32.mrf.mxu0
        %v4076 = vadd.f32 %v3947, %v4075
        %v4077 = vpop.f32.mrf.mxu0
        %v4078 = vadd.f32 %v3949, %v4077
        %4079 = vmatmul.bf16.gmra.mxu0 %v1508
        %v4080 = vpop.f32.mrf.mxu0
        %v4081 = vadd.f32 %v3952, %v4080
        %v4082 = vpop.f32.mrf.mxu0
        %v4083 = vadd.f32 %v3954, %v4082
        %4084 = vmatmul.bf16.gmra.mxu0 %v1519
        %v4085 = vpop.f32.mrf.mxu0
        %v4086 = vadd.f32 %v3957, %v4085
        %v4087 = vpop.f32.mrf.mxu0
        %v4088 = vadd.f32 %v3959, %v4087
        %4089 = vmatmul.bf16.gmra.mxu0 %v1530
        %v4090 = vpop.f32.mrf.mxu0
        %v4091 = vadd.f32 %v3962, %v4090
        %v4092 = vpop.f32.mrf.mxu0
        %v4093 = vadd.f32 %v3964, %v4092
        %4094 = vmatmul.bf16.gmra.mxu0 %v1541
        %v4095 = vpop.f32.mrf.mxu0
        %v4096 = vadd.f32 %v3967, %v4095
        %v4097 = vpop.f32.mrf.mxu0
        %v4098 = vadd.f32 %v3969, %v4097
        %4099 = vmatmul.bf16.gmra.mxu0 %v1552
        %v4100 = vpop.f32.mrf.mxu0
        %v4101 = vadd.f32 %v3972, %v4100
        %v4102 = vpop.f32.mrf.mxu0
        %v4103 = vadd.f32 %v3974, %v4102
        %4104 = vmatmul.bf16.gmra.mxu0 %v1563
        %v4105 = vpop.f32.mrf.mxu0
        %v4106 = vadd.f32 %v3977, %v4105
        %v4107 = vpop.f32.mrf.mxu0
        %v4108 = vadd.f32 %v3979, %v4107
        %4109 = vmatmul.bf16.gmra.mxu0 %v1574
        %v4110 = vpop.f32.mrf.mxu0
        %v4111 = vadd.f32 %v3982, %v4110
        %v4112 = vpop.f32.mrf.mxu0
        %v4113 = vadd.f32 %v3984, %v4112
        %4114 = vmatmul.bf16.gmra.mxu0 %v1585
        %v4115 = vpop.f32.mrf.mxu0
        %v4116 = vadd.f32 %v3987, %v4115
        %v4117 = vpop.f32.mrf.mxu0
        %v4118 = vadd.f32 %v3989, %v4117
        %4119 = vmatmul.bf16.gmra.mxu0 %v1596
        %v4120 = vpop.f32.mrf.mxu0
        %v4121 = vadd.f32 %v3992, %v4120
        %v4122 = vpop.f32.mrf.mxu0
        %v4123 = vadd.f32 %v3994, %v4122
        %4124 = vmatmul.bf16.gmra.mxu0 %v1607
        %v4125 = vpop.f32.mrf.mxu0
        %v4126 = vadd.f32 %v3997, %v4125
        %v4127 = vpop.f32.mrf.mxu0
        %v4128 = vadd.f32 %v3999, %v4127
        %4129 = vmatmul.bf16.gmra.mxu0 %v1618
        %v4130 = vpop.f32.mrf.mxu0
        %v4131 = vadd.f32 %v4002, %v4130
        %v4132 = vpop.f32.mrf.mxu0
        %v4133 = vadd.f32 %v4004, %v4132
        %4134 = vmatmul.bf16.gmra.mxu0 %v1629
        %v4135 = vpop.f32.mrf.mxu0
        %v4136 = vadd.f32 %v4007, %v4135
        %v4137 = vpop.f32.mrf.mxu0
        %v4138 = vadd.f32 %v4009, %v4137
        %4139 = vmatmul.bf16.gmra.mxu0 %v1640
        %v4140 = vpop.f32.mrf.mxu0
        %v4141 = vadd.f32 %v4012, %v4140
        %v4142 = vpop.f32.mrf.mxu0
        %v4143 = vadd.f32 %v4014, %v4142
        %4144 = vmatmul.bf16.gmra.mxu0 %v1651
        %v4145 = vpop.f32.mrf.mxu0
        %v4146 = vadd.f32 %v4017, %v4145
        %v4147 = vpop.f32.mrf.mxu0
        %v4148 = vadd.f32 %v4019, %v4147
        %4149 = vmatmul.bf16.gmra.mxu0 %v1662
        %v4150 = vpop.f32.mrf.mxu0
        %v4151 = vadd.f32 %v4022, %v4150
        %v4152 = vpop.f32.mrf.mxu0
        %v4153 = vadd.f32 %v4024, %v4152
        %4154 = vmatmul.bf16.gmra.mxu0 %v1673
        %v4155 = vpop.f32.mrf.mxu0
        %v4156 = vadd.f32 %v4027, %v4155
        %v4157 = vpop.f32.mrf.mxu0
        %v4158 = vadd.f32 %v4029, %v4157
        %4159 = vmatmul.bf16.gmra.mxu0 %v1684
        %v4160 = vpop.f32.mrf.mxu0
        %v4161 = vadd.f32 %v4032, %v4160
        %v4162 = vpop.f32.mrf.mxu0
        %v4163 = vadd.f32 %v4034, %v4162
        %4164 = vmatmul.bf16.gmra.mxu0 %v1695
        %v4165 = vpop.f32.mrf.mxu0
        %v4166 = vadd.f32 %v4037, %v4165
        %v4167 = vpop.f32.mrf.mxu0
        %v4168 = vadd.f32 %v4039, %v4167
        %4169 = vmatmul.bf16.gmra.mxu0 %v1706
        %v4170 = vpop.f32.mrf.mxu0
        %v4171 = vadd.f32 %v4042, %v4170
        %v4172 = vpop.f32.mrf.mxu0
        %v4173 = vadd.f32 %v4044, %v4172
        %4174 = vmatmul.bf16.gmra.mxu0 %v1717
        %v4175 = vpop.f32.mrf.mxu0
        %v4176 = vadd.f32 %v4047, %v4175
        %v4177 = vpop.f32.mrf.mxu0
        %v4178 = vadd.f32 %v4049, %v4177
        %4179 = vmatmul.bf16.gmra.mxu0 %v1728
        %v4180 = vpop.f32.mrf.mxu0
        %v4181 = vadd.f32 %v4052, %v4180
        %v4182 = vpop.f32.mrf.mxu0
        %v4183 = vadd.f32 %v4054, %v4182
        %4184 = vmatmul.bf16.gmra.mxu0 %v1739
        %v4185 = vpop.f32.mrf.mxu0
        %v4186 = vadd.f32 %v4057, %v4185
        %v4187 = vpop.f32.mrf.mxu0
        %v4188 = vadd.f32 %v4059, %v4187
        %4189 = vmatmul.bf16.gmra.mxu0 %v1750
        %v4190 = vpop.f32.mrf.mxu0
        %v4191 = vadd.f32 %v4062, %v4190
        %v4192 = vpop.f32.mrf.mxu0
        %v4193 = vadd.f32 %v4064, %v4192
        %4194 = vdwg.mxu0
        %4195 = vmatpush.bf16.msra.mxu0 0
        %4196 = vmatpush.bf16.msra.mxu0 0
        %4197 = vmatpush.bf16.msra.mxu0 0
        %4198 = vmatpush.bf16.msra.mxu0 0
        %4199 = vmatpush.bf16.msra.mxu0 %v2662
        %4200 = vmatpush.bf16.msra.mxu0 %v2660
        %4201 = vmatpush.bf16.msra.mxu0 %v2658
        %4202 = vmatpush.bf16.msra.mxu0 %v2656
        %4203 = vmatmul.bf16.gmra.mxu0 %v2834
        %v4204 = vpop.f32.mrf.mxu0
        %v4205 = vadd.f32 %v4076, %v4204
        %v4206 = vpop.f32.mrf.mxu0
        %v4207 = vadd.f32 %v4078, %v4206
        %4208 = vmatmul.bf16.gmra.mxu0 %v2837
        %v4209 = vpop.f32.mrf.mxu0
        %v4210 = vadd.f32 %v4081, %v4209
        %v4211 = vpop.f32.mrf.mxu0
        %v4212 = vadd.f32 %v4083, %v4211
        %4213 = vmatmul.bf16.gmra.mxu0 %v2840
        %v4214 = vpop.f32.mrf.mxu0
        %v4215 = vadd.f32 %v4086, %v4214
        %v4216 = vpop.f32.mrf.mxu0
        %v4217 = vadd.f32 %v4088, %v4216
        %4218 = vmatmul.bf16.gmra.mxu0 %v2843
        %v4219 = vpop.f32.mrf.mxu0
        %v4220 = vadd.f32 %v4091, %v4219
        %v4221 = vpop.f32.mrf.mxu0
        %v4222 = vadd.f32 %v4093, %v4221
        %4223 = vmatmul.bf16.gmra.mxu0 %v2846
        %v4224 = vpop.f32.mrf.mxu0
        %v4225 = vadd.f32 %v4096, %v4224
        %v4226 = vpop.f32.mrf.mxu0
        %v4227 = vadd.f32 %v4098, %v4226
        %4228 = vmatmul.bf16.gmra.mxu0 %v2849
        %v4229 = vpop.f32.mrf.mxu0
        %v4230 = vadd.f32 %v4101, %v4229
        %v4231 = vpop.f32.mrf.mxu0
        %v4232 = vadd.f32 %v4103, %v4231
        %4233 = vmatmul.bf16.gmra.mxu0 %v2852
        %v4234 = vpop.f32.mrf.mxu0
        %v4235 = vadd.f32 %v4106, %v4234
        %v4236 = vpop.f32.mrf.mxu0
        %v4237 = vadd.f32 %v4108, %v4236
        %4238 = vmatmul.bf16.gmra.mxu0 %v2855
        %v4239 = vpop.f32.mrf.mxu0
        %v4240 = vadd.f32 %v4111, %v4239
        %v4241 = vpop.f32.mrf.mxu0
        %v4242 = vadd.f32 %v4113, %v4241
        %4243 = vmatmul.bf16.gmra.mxu0 %v2858
        %v4244 = vpop.f32.mrf.mxu0
        %v4245 = vadd.f32 %v4116, %v4244
        %v4246 = vpop.f32.mrf.mxu0
        %v4247 = vadd.f32 %v4118, %v4246
        %4248 = vmatmul.bf16.gmra.mxu0 %v2861
        %v4249 = vpop.f32.mrf.mxu0
        %v4250 = vadd.f32 %v4121, %v4249
        %v4251 = vpop.f32.mrf.mxu0
        %v4252 = vadd.f32 %v4123, %v4251
        %4253 = vmatmul.bf16.gmra.mxu0 %v2864
        %v4254 = vpop.f32.mrf.mxu0
        %v4255 = vadd.f32 %v4126, %v4254
        %v4256 = vpop.f32.mrf.mxu0
        %v4257 = vadd.f32 %v4128, %v4256
        %4258 = vmatmul.bf16.gmra.mxu0 %v2867
        %v4259 = vpop.f32.mrf.mxu0
        %v4260 = vadd.f32 %v4131, %v4259
        %v4261 = vpop.f32.mrf.mxu0
        %v4262 = vadd.f32 %v4133, %v4261
        %4263 = vmatmul.bf16.gmra.mxu0 %v2870
        %v4264 = vpop.f32.mrf.mxu0
        %v4265 = vadd.f32 %v4136, %v4264
        %v4266 = vpop.f32.mrf.mxu0
        %v4267 = vadd.f32 %v4138, %v4266
        %4268 = vmatmul.bf16.gmra.mxu0 %v2873
        %v4269 = vpop.f32.mrf.mxu0
        %v4270 = vadd.f32 %v4141, %v4269
        %v4271 = vpop.f32.mrf.mxu0
        %v4272 = vadd.f32 %v4143, %v4271
        %4273 = vmatmul.bf16.gmra.mxu0 %v2876
        %v4274 = vpop.f32.mrf.mxu0
        %v4275 = vadd.f32 %v4146, %v4274
        %v4276 = vpop.f32.mrf.mxu0
        %v4277 = vadd.f32 %v4148, %v4276
        %4278 = vmatmul.bf16.gmra.mxu0 %v2879
        %v4279 = vpop.f32.mrf.mxu0
        %v4280 = vadd.f32 %v4151, %v4279
        %v4281 = vpop.f32.mrf.mxu0
        %v4282 = vadd.f32 %v4153, %v4281
        %4283 = vmatmul.bf16.gmra.mxu0 %v2882
        %v4284 = vpop.f32.mrf.mxu0
        %v4285 = vadd.f32 %v4156, %v4284
        %v4286 = vpop.f32.mrf.mxu0
        %v4287 = vadd.f32 %v4158, %v4286
        %4288 = vmatmul.bf16.gmra.mxu0 %v2885
        %v4289 = vpop.f32.mrf.mxu0
        %v4290 = vadd.f32 %v4161, %v4289
        %v4291 = vpop.f32.mrf.mxu0
        %v4292 = vadd.f32 %v4163, %v4291
        %4293 = vmatmul.bf16.gmra.mxu0 %v2888
        %v4294 = vpop.f32.mrf.mxu0
        %v4295 = vadd.f32 %v4166, %v4294
        %v4296 = vpop.f32.mrf.mxu0
        %v4297 = vadd.f32 %v4168, %v4296
        %4298 = vmatmul.bf16.gmra.mxu0 %v2891
        %v4299 = vpop.f32.mrf.mxu0
        %v4300 = vadd.f32 %v4171, %v4299
        %v4301 = vpop.f32.mrf.mxu0
        %v4302 = vadd.f32 %v4173, %v4301
        %4303 = vmatmul.bf16.gmra.mxu0 %v2894
        %v4304 = vpop.f32.mrf.mxu0
        %v4305 = vadd.f32 %v4176, %v4304
        %v4306 = vpop.f32.mrf.mxu0
        %v4307 = vadd.f32 %v4178, %v4306
        %4308 = vmatmul.bf16.gmra.mxu0 %v2897
        %v4309 = vpop.f32.mrf.mxu0
        %v4310 = vadd.f32 %v4181, %v4309
        %v4311 = vpop.f32.mrf.mxu0
        %v4312 = vadd.f32 %v4183, %v4311
        %4313 = vmatmul.bf16.gmra.mxu0 %v2900
        %v4314 = vpop.f32.mrf.mxu0
        %v4315 = vadd.f32 %v4186, %v4314
        %v4316 = vpop.f32.mrf.mxu0
        %v4317 = vadd.f32 %v4188, %v4316
        %4318 = vmatmul.bf16.gmra.mxu0 %v2903
        %v4319 = vpop.f32.mrf.mxu0
        %v4320 = vadd.f32 %v4191, %v4319
        %v4321 = vpop.f32.mrf.mxu0
        %v4322 = vadd.f32 %v4193, %v4321
        %4323 = vdwg.mxu0
        %4324 = vmatpush.bf16.msra.mxu0 %v2511
        %4325 = vmatpush.bf16.msra.mxu0 %v2509
        %4326 = vmatpush.bf16.msra.mxu0 %v2507
        %4327 = vmatpush.bf16.msra.mxu0 %v2505
        %4328 = vmatpush.bf16.msra.mxu0 %v2503
        %4329 = vmatpush.bf16.msra.mxu0 %v2501
        %4330 = vmatpush.bf16.msra.mxu0 %v2499
        %4331 = vmatpush.bf16.msra.mxu0 %v2497
        %4332 = vmatmul.bf16.gmra.mxu0 %v1488
        %v4333 = vpop.f32.mrf.mxu0
        %v4334 = vadd.f32 0.0, %v4333
        %v4335 = vpop.f32.mrf.mxu0
        %v4336 = vadd.f32 0.0, %v4335
        %4337 = vmatmul.bf16.gmra.mxu0 %v1499
        %v4338 = vpop.f32.mrf.mxu0
        %v4339 = vadd.f32 0.0, %v4338
        %v4340 = vpop.f32.mrf.mxu0
        %v4341 = vadd.f32 0.0, %v4340
        %4342 = vmatmul.bf16.gmra.mxu0 %v1510
        %v4343 = vpop.f32.mrf.mxu0
        %v4344 = vadd.f32 0.0, %v4343
        %v4345 = vpop.f32.mrf.mxu0
        %v4346 = vadd.f32 0.0, %v4345
        %4347 = vmatmul.bf16.gmra.mxu0 %v1521
        %v4348 = vpop.f32.mrf.mxu0
        %v4349 = vadd.f32 0.0, %v4348
        %v4350 = vpop.f32.mrf.mxu0
        %v4351 = vadd.f32 0.0, %v4350
        %4352 = vmatmul.bf16.gmra.mxu0 %v1532
        %v4353 = vpop.f32.mrf.mxu0
        %v4354 = vadd.f32 0.0, %v4353
        %v4355 = vpop.f32.mrf.mxu0
        %v4356 = vadd.f32 0.0, %v4355
        %4357 = vmatmul.bf16.gmra.mxu0 %v1543
        %v4358 = vpop.f32.mrf.mxu0
        %v4359 = vadd.f32 0.0, %v4358
        %v4360 = vpop.f32.mrf.mxu0
        %v4361 = vadd.f32 0.0, %v4360
        %4362 = vmatmul.bf16.gmra.mxu0 %v1554
        %v4363 = vpop.f32.mrf.mxu0
        %v4364 = vadd.f32 0.0, %v4363
        %v4365 = vpop.f32.mrf.mxu0
        %v4366 = vadd.f32 0.0, %v4365
        %4367 = vmatmul.bf16.gmra.mxu0 %v1565
        %v4368 = vpop.f32.mrf.mxu0
        %v4369 = vadd.f32 0.0, %v4368
        %v4370 = vpop.f32.mrf.mxu0
        %v4371 = vadd.f32 0.0, %v4370
        %4372 = vmatmul.bf16.gmra.mxu0 %v1576
        %v4373 = vpop.f32.mrf.mxu0
        %v4374 = vadd.f32 0.0, %v4373
        %v4375 = vpop.f32.mrf.mxu0
        %v4376 = vadd.f32 0.0, %v4375
        %4377 = vmatmul.bf16.gmra.mxu0 %v1587
        %v4378 = vpop.f32.mrf.mxu0
        %v4379 = vadd.f32 0.0, %v4378
        %v4380 = vpop.f32.mrf.mxu0
        %v4381 = vadd.f32 0.0, %v4380
        %4382 = vmatmul.bf16.gmra.mxu0 %v1598
        %v4383 = vpop.f32.mrf.mxu0
        %v4384 = vadd.f32 0.0, %v4383
        %v4385 = vpop.f32.mrf.mxu0
        %v4386 = vadd.f32 0.0, %v4385
        %4387 = vmatmul.bf16.gmra.mxu0 %v1609
        %v4388 = vpop.f32.mrf.mxu0
        %v4389 = vadd.f32 0.0, %v4388
        %v4390 = vpop.f32.mrf.mxu0
        %v4391 = vadd.f32 0.0, %v4390
        %4392 = vmatmul.bf16.gmra.mxu0 %v1620
        %v4393 = vpop.f32.mrf.mxu0
        %v4394 = vadd.f32 0.0, %v4393
        %v4395 = vpop.f32.mrf.mxu0
        %v4396 = vadd.f32 0.0, %v4395
        %4397 = vmatmul.bf16.gmra.mxu0 %v1631
        %v4398 = vpop.f32.mrf.mxu0
        %v4399 = vadd.f32 0.0, %v4398
        %v4400 = vpop.f32.mrf.mxu0
        %v4401 = vadd.f32 0.0, %v4400
        %4402 = vmatmul.bf16.gmra.mxu0 %v1642
        %v4403 = vpop.f32.mrf.mxu0
        %v4404 = vadd.f32 0.0, %v4403
        %v4405 = vpop.f32.mrf.mxu0
        %v4406 = vadd.f32 0.0, %v4405
        %4407 = vmatmul.bf16.gmra.mxu0 %v1653
        %v4408 = vpop.f32.mrf.mxu0
        %v4409 = vadd.f32 0.0, %v4408
        %v4410 = vpop.f32.mrf.mxu0
        %v4411 = vadd.f32 0.0, %v4410
        %4412 = vmatmul.bf16.gmra.mxu0 %v1664
        %v4413 = vpop.f32.mrf.mxu0
        %v4414 = vadd.f32 0.0, %v4413
        %v4415 = vpop.f32.mrf.mxu0
        %v4416 = vadd.f32 0.0, %v4415
        %4417 = vmatmul.bf16.gmra.mxu0 %v1675
        %v4418 = vpop.f32.mrf.mxu0
        %v4419 = vadd.f32 0.0, %v4418
        %v4420 = vpop.f32.mrf.mxu0
        %v4421 = vadd.f32 0.0, %v4420
        %4422 = vmatmul.bf16.gmra.mxu0 %v1686
        %v4423 = vpop.f32.mrf.mxu0
        %v4424 = vadd.f32 0.0, %v4423
        %v4425 = vpop.f32.mrf.mxu0
        %v4426 = vadd.f32 0.0, %v4425
        %4427 = vmatmul.bf16.gmra.mxu0 %v1697
        %v4428 = vpop.f32.mrf.mxu0
        %v4429 = vadd.f32 0.0, %v4428
        %v4430 = vpop.f32.mrf.mxu0
        %v4431 = vadd.f32 0.0, %v4430
        %4432 = vmatmul.bf16.gmra.mxu0 %v1708
        %v4433 = vpop.f32.mrf.mxu0
        %v4434 = vadd.f32 0.0, %v4433
        %v4435 = vpop.f32.mrf.mxu0
        %v4436 = vadd.f32 0.0, %v4435
        %4437 = vmatmul.bf16.gmra.mxu0 %v1719
        %v4438 = vpop.f32.mrf.mxu0
        %v4439 = vadd.f32 0.0, %v4438
        %v4440 = vpop.f32.mrf.mxu0
        %v4441 = vadd.f32 0.0, %v4440
        %4442 = vmatmul.bf16.gmra.mxu0 %v1730
        %v4443 = vpop.f32.mrf.mxu0
        %v4444 = vadd.f32 0.0, %v4443
        %v4445 = vpop.f32.mrf.mxu0
        %v4446 = vadd.f32 0.0, %v4445
        %4447 = vmatmul.bf16.gmra.mxu0 %v1741
        %v4448 = vpop.f32.mrf.mxu0
        %v4449 = vadd.f32 0.0, %v4448
        %v4450 = vpop.f32.mrf.mxu0
        %v4451 = vadd.f32 0.0, %v4450
        %4452 = vdwg.mxu0
        %4453 = vmatpush.bf16.msra.mxu0 %v2527
        %4454 = vmatpush.bf16.msra.mxu0 %v2525
        %4455 = vmatpush.bf16.msra.mxu0 %v2523
        %4456 = vmatpush.bf16.msra.mxu0 %v2521
        %4457 = vmatpush.bf16.msra.mxu0 %v2519
        %4458 = vmatpush.bf16.msra.mxu0 %v2517
        %4459 = vmatpush.bf16.msra.mxu0 %v2515
        %4460 = vmatpush.bf16.msra.mxu0 %v2513
        %4461 = vmatmul.bf16.gmra.mxu0 %v1489
        %v4462 = vpop.f32.mrf.mxu0
        %v4463 = vadd.f32 %v4334, %v4462
        %v4464 = vpop.f32.mrf.mxu0
        %v4465 = vadd.f32 %v4336, %v4464
        %4466 = vmatmul.bf16.gmra.mxu0 %v1500
        %v4467 = vpop.f32.mrf.mxu0
        %v4468 = vadd.f32 %v4339, %v4467
        %v4469 = vpop.f32.mrf.mxu0
        %v4470 = vadd.f32 %v4341, %v4469
        %4471 = vmatmul.bf16.gmra.mxu0 %v1511
        %v4472 = vpop.f32.mrf.mxu0
        %v4473 = vadd.f32 %v4344, %v4472
        %v4474 = vpop.f32.mrf.mxu0
        %v4475 = vadd.f32 %v4346, %v4474
        %4476 = vmatmul.bf16.gmra.mxu0 %v1522
        %v4477 = vpop.f32.mrf.mxu0
        %v4478 = vadd.f32 %v4349, %v4477
        %v4479 = vpop.f32.mrf.mxu0
        %v4480 = vadd.f32 %v4351, %v4479
        %4481 = vmatmul.bf16.gmra.mxu0 %v1533
        %v4482 = vpop.f32.mrf.mxu0
        %v4483 = vadd.f32 %v4354, %v4482
        %v4484 = vpop.f32.mrf.mxu0
        %v4485 = vadd.f32 %v4356, %v4484
        %4486 = vmatmul.bf16.gmra.mxu0 %v1544
        %v4487 = vpop.f32.mrf.mxu0
        %v4488 = vadd.f32 %v4359, %v4487
        %v4489 = vpop.f32.mrf.mxu0
        %v4490 = vadd.f32 %v4361, %v4489
        %4491 = vmatmul.bf16.gmra.mxu0 %v1555
        %v4492 = vpop.f32.mrf.mxu0
        %v4493 = vadd.f32 %v4364, %v4492
        %v4494 = vpop.f32.mrf.mxu0
        %v4495 = vadd.f32 %v4366, %v4494
        %4496 = vmatmul.bf16.gmra.mxu0 %v1566
        %v4497 = vpop.f32.mrf.mxu0
        %v4498 = vadd.f32 %v4369, %v4497
        %v4499 = vpop.f32.mrf.mxu0
        %v4500 = vadd.f32 %v4371, %v4499
        %4501 = vmatmul.bf16.gmra.mxu0 %v1577
        %v4502 = vpop.f32.mrf.mxu0
        %v4503 = vadd.f32 %v4374, %v4502
        %v4504 = vpop.f32.mrf.mxu0
        %v4505 = vadd.f32 %v4376, %v4504
        %4506 = vmatmul.bf16.gmra.mxu0 %v1588
        %v4507 = vpop.f32.mrf.mxu0
        %v4508 = vadd.f32 %v4379, %v4507
        %v4509 = vpop.f32.mrf.mxu0
        %v4510 = vadd.f32 %v4381, %v4509
        %4511 = vmatmul.bf16.gmra.mxu0 %v1599
        %v4512 = vpop.f32.mrf.mxu0
        %v4513 = vadd.f32 %v4384, %v4512
        %v4514 = vpop.f32.mrf.mxu0
        %v4515 = vadd.f32 %v4386, %v4514
        %4516 = vmatmul.bf16.gmra.mxu0 %v1610
        %v4517 = vpop.f32.mrf.mxu0
        %v4518 = vadd.f32 %v4389, %v4517
        %v4519 = vpop.f32.mrf.mxu0
        %v4520 = vadd.f32 %v4391, %v4519
        %4521 = vmatmul.bf16.gmra.mxu0 %v1621
        %v4522 = vpop.f32.mrf.mxu0
        %v4523 = vadd.f32 %v4394, %v4522
        %v4524 = vpop.f32.mrf.mxu0
        %v4525 = vadd.f32 %v4396, %v4524
        %4526 = vmatmul.bf16.gmra.mxu0 %v1632
        %v4527 = vpop.f32.mrf.mxu0
        %v4528 = vadd.f32 %v4399, %v4527
        %v4529 = vpop.f32.mrf.mxu0
        %v4530 = vadd.f32 %v4401, %v4529
        %4531 = vmatmul.bf16.gmra.mxu0 %v1643
        %v4532 = vpop.f32.mrf.mxu0
        %v4533 = vadd.f32 %v4404, %v4532
        %v4534 = vpop.f32.mrf.mxu0
        %v4535 = vadd.f32 %v4406, %v4534
        %4536 = vmatmul.bf16.gmra.mxu0 %v1654
        %v4537 = vpop.f32.mrf.mxu0
        %v4538 = vadd.f32 %v4409, %v4537
        %v4539 = vpop.f32.mrf.mxu0
        %v4540 = vadd.f32 %v4411, %v4539
        %4541 = vmatmul.bf16.gmra.mxu0 %v1665
        %v4542 = vpop.f32.mrf.mxu0
        %v4543 = vadd.f32 %v4414, %v4542
        %v4544 = vpop.f32.mrf.mxu0
        %v4545 = vadd.f32 %v4416, %v4544
        %4546 = vmatmul.bf16.gmra.mxu0 %v1676
        %v4547 = vpop.f32.mrf.mxu0
        %v4548 = vadd.f32 %v4419, %v4547
        %v4549 = vpop.f32.mrf.mxu0
        %v4550 = vadd.f32 %v4421, %v4549
        %4551 = vmatmul.bf16.gmra.mxu0 %v1687
        %v4552 = vpop.f32.mrf.mxu0
        %v4553 = vadd.f32 %v4424, %v4552
        %v4554 = vpop.f32.mrf.mxu0
        %v4555 = vadd.f32 %v4426, %v4554
        %4556 = vmatmul.bf16.gmra.mxu0 %v1698
        %v4557 = vpop.f32.mrf.mxu0
        %v4558 = vadd.f32 %v4429, %v4557
        %v4559 = vpop.f32.mrf.mxu0
        %v4560 = vadd.f32 %v4431, %v4559
        %4561 = vmatmul.bf16.gmra.mxu0 %v1709
        %v4562 = vpop.f32.mrf.mxu0
        %v4563 = vadd.f32 %v4434, %v4562
        %v4564 = vpop.f32.mrf.mxu0
        %v4565 = vadd.f32 %v4436, %v4564
        %4566 = vmatmul.bf16.gmra.mxu0 %v1720
        %v4567 = vpop.f32.mrf.mxu0
        %v4568 = vadd.f32 %v4439, %v4567
        %v4569 = vpop.f32.mrf.mxu0
        %v4570 = vadd.f32 %v4441, %v4569
        %4571 = vmatmul.bf16.gmra.mxu0 %v1731
        %v4572 = vpop.f32.mrf.mxu0
        %v4573 = vadd.f32 %v4444, %v4572
        %v4574 = vpop.f32.mrf.mxu0
        %v4575 = vadd.f32 %v4446, %v4574
        %4576 = vmatmul.bf16.gmra.mxu0 %v1742
        %v4577 = vpop.f32.mrf.mxu0
        %v4578 = vadd.f32 %v4449, %v4577
        %v4579 = vpop.f32.mrf.mxu0
        %v4580 = vadd.f32 %v4451, %v4579
        %4581 = vdwg.mxu0
        %4582 = vmatpush.bf16.msra.mxu0 %v2543
        %4583 = vmatpush.bf16.msra.mxu0 %v2541
        %4584 = vmatpush.bf16.msra.mxu0 %v2539
        %4585 = vmatpush.bf16.msra.mxu0 %v2537
        %4586 = vmatpush.bf16.msra.mxu0 %v2535
        %4587 = vmatpush.bf16.msra.mxu0 %v2533
        %4588 = vmatpush.bf16.msra.mxu0 %v2531
        %4589 = vmatpush.bf16.msra.mxu0 %v2529
        %4590 = vmatmul.bf16.gmra.mxu0 %v1490
        %v4591 = vpop.f32.mrf.mxu0
        %v4592 = vadd.f32 %v4463, %v4591
        %v4593 = vpop.f32.mrf.mxu0
        %v4594 = vadd.f32 %v4465, %v4593
        %4595 = vmatmul.bf16.gmra.mxu0 %v1501
        %v4596 = vpop.f32.mrf.mxu0
        %v4597 = vadd.f32 %v4468, %v4596
        %v4598 = vpop.f32.mrf.mxu0
        %v4599 = vadd.f32 %v4470, %v4598
        %4600 = vmatmul.bf16.gmra.mxu0 %v1512
        %v4601 = vpop.f32.mrf.mxu0
        %v4602 = vadd.f32 %v4473, %v4601
        %v4603 = vpop.f32.mrf.mxu0
        %v4604 = vadd.f32 %v4475, %v4603
        %4605 = vmatmul.bf16.gmra.mxu0 %v1523
        %v4606 = vpop.f32.mrf.mxu0
        %v4607 = vadd.f32 %v4478, %v4606
        %v4608 = vpop.f32.mrf.mxu0
        %v4609 = vadd.f32 %v4480, %v4608
        %4610 = vmatmul.bf16.gmra.mxu0 %v1534
        %v4611 = vpop.f32.mrf.mxu0
        %v4612 = vadd.f32 %v4483, %v4611
        %v4613 = vpop.f32.mrf.mxu0
        %v4614 = vadd.f32 %v4485, %v4613
        %4615 = vmatmul.bf16.gmra.mxu0 %v1545
        %v4616 = vpop.f32.mrf.mxu0
        %v4617 = vadd.f32 %v4488, %v4616
        %v4618 = vpop.f32.mrf.mxu0
        %v4619 = vadd.f32 %v4490, %v4618
        %4620 = vmatmul.bf16.gmra.mxu0 %v1556
        %v4621 = vpop.f32.mrf.mxu0
        %v4622 = vadd.f32 %v4493, %v4621
        %v4623 = vpop.f32.mrf.mxu0
        %v4624 = vadd.f32 %v4495, %v4623
        %4625 = vmatmul.bf16.gmra.mxu0 %v1567
        %v4626 = vpop.f32.mrf.mxu0
        %v4627 = vadd.f32 %v4498, %v4626
        %v4628 = vpop.f32.mrf.mxu0
        %v4629 = vadd.f32 %v4500, %v4628
        %4630 = vmatmul.bf16.gmra.mxu0 %v1578
        %v4631 = vpop.f32.mrf.mxu0
        %v4632 = vadd.f32 %v4503, %v4631
        %v4633 = vpop.f32.mrf.mxu0
        %v4634 = vadd.f32 %v4505, %v4633
        %4635 = vmatmul.bf16.gmra.mxu0 %v1589
        %v4636 = vpop.f32.mrf.mxu0
        %v4637 = vadd.f32 %v4508, %v4636
        %v4638 = vpop.f32.mrf.mxu0
        %v4639 = vadd.f32 %v4510, %v4638
        %4640 = vmatmul.bf16.gmra.mxu0 %v1600
        %v4641 = vpop.f32.mrf.mxu0
        %v4642 = vadd.f32 %v4513, %v4641
        %v4643 = vpop.f32.mrf.mxu0
        %v4644 = vadd.f32 %v4515, %v4643
        %4645 = vmatmul.bf16.gmra.mxu0 %v1611
        %v4646 = vpop.f32.mrf.mxu0
        %v4647 = vadd.f32 %v4518, %v4646
        %v4648 = vpop.f32.mrf.mxu0
        %v4649 = vadd.f32 %v4520, %v4648
        %4650 = vmatmul.bf16.gmra.mxu0 %v1622
        %v4651 = vpop.f32.mrf.mxu0
        %v4652 = vadd.f32 %v4523, %v4651
        %v4653 = vpop.f32.mrf.mxu0
        %v4654 = vadd.f32 %v4525, %v4653
        %4655 = vmatmul.bf16.gmra.mxu0 %v1633
        %v4656 = vpop.f32.mrf.mxu0
        %v4657 = vadd.f32 %v4528, %v4656
        %v4658 = vpop.f32.mrf.mxu0
        %v4659 = vadd.f32 %v4530, %v4658
        %4660 = vmatmul.bf16.gmra.mxu0 %v1644
        %v4661 = vpop.f32.mrf.mxu0
        %v4662 = vadd.f32 %v4533, %v4661
        %v4663 = vpop.f32.mrf.mxu0
        %v4664 = vadd.f32 %v4535, %v4663
        %4665 = vmatmul.bf16.gmra.mxu0 %v1655
        %v4666 = vpop.f32.mrf.mxu0
        %v4667 = vadd.f32 %v4538, %v4666
        %v4668 = vpop.f32.mrf.mxu0
        %v4669 = vadd.f32 %v4540, %v4668
        %4670 = vmatmul.bf16.gmra.mxu0 %v1666
        %v4671 = vpop.f32.mrf.mxu0
        %v4672 = vadd.f32 %v4543, %v4671
        %v4673 = vpop.f32.mrf.mxu0
        %v4674 = vadd.f32 %v4545, %v4673
        %4675 = vmatmul.bf16.gmra.mxu0 %v1677
        %v4676 = vpop.f32.mrf.mxu0
        %v4677 = vadd.f32 %v4548, %v4676
        %v4678 = vpop.f32.mrf.mxu0
        %v4679 = vadd.f32 %v4550, %v4678
        %4680 = vmatmul.bf16.gmra.mxu0 %v1688
        %v4681 = vpop.f32.mrf.mxu0
        %v4682 = vadd.f32 %v4553, %v4681
        %v4683 = vpop.f32.mrf.mxu0
        %v4684 = vadd.f32 %v4555, %v4683
        %4685 = vmatmul.bf16.gmra.mxu0 %v1699
        %v4686 = vpop.f32.mrf.mxu0
        %v4687 = vadd.f32 %v4558, %v4686
        %v4688 = vpop.f32.mrf.mxu0
        %v4689 = vadd.f32 %v4560, %v4688
        %4690 = vmatmul.bf16.gmra.mxu0 %v1710
        %v4691 = vpop.f32.mrf.mxu0
        %v4692 = vadd.f32 %v4563, %v4691
        %v4693 = vpop.f32.mrf.mxu0
        %v4694 = vadd.f32 %v4565, %v4693
        %4695 = vmatmul.bf16.gmra.mxu0 %v1721
        %v4696 = vpop.f32.mrf.mxu0
        %v4697 = vadd.f32 %v4568, %v4696
        %v4698 = vpop.f32.mrf.mxu0
        %v4699 = vadd.f32 %v4570, %v4698
        %4700 = vmatmul.bf16.gmra.mxu0 %v1732
        %v4701 = vpop.f32.mrf.mxu0
        %v4702 = vadd.f32 %v4573, %v4701
        %v4703 = vpop.f32.mrf.mxu0
        %v4704 = vadd.f32 %v4575, %v4703
        %4705 = vmatmul.bf16.gmra.mxu0 %v1743
        %v4706 = vpop.f32.mrf.mxu0
        %v4707 = vadd.f32 %v4578, %v4706
        %v4708 = vpop.f32.mrf.mxu0
        %v4709 = vadd.f32 %v4580, %v4708
        %4710 = vdwg.mxu0
        %4711 = vmatpush.bf16.msra.mxu0 %v2559
        %4712 = vmatpush.bf16.msra.mxu0 %v2557
        %4713 = vmatpush.bf16.msra.mxu0 %v2555
        %4714 = vmatpush.bf16.msra.mxu0 %v2553
        %4715 = vmatpush.bf16.msra.mxu0 %v2551
        %4716 = vmatpush.bf16.msra.mxu0 %v2549
        %4717 = vmatpush.bf16.msra.mxu0 %v2547
        %4718 = vmatpush.bf16.msra.mxu0 %v2545
        %4719 = vmatmul.bf16.gmra.mxu0 %v1491
        %v4720 = vpop.f32.mrf.mxu0
        %v4721 = vadd.f32 %v4592, %v4720
        %v4722 = vpop.f32.mrf.mxu0
        %v4723 = vadd.f32 %v4594, %v4722
        %4724 = vmatmul.bf16.gmra.mxu0 %v1502
        %v4725 = vpop.f32.mrf.mxu0
        %v4726 = vadd.f32 %v4597, %v4725
        %v4727 = vpop.f32.mrf.mxu0
        %v4728 = vadd.f32 %v4599, %v4727
        %4729 = vmatmul.bf16.gmra.mxu0 %v1513
        %v4730 = vpop.f32.mrf.mxu0
        %v4731 = vadd.f32 %v4602, %v4730
        %v4732 = vpop.f32.mrf.mxu0
        %v4733 = vadd.f32 %v4604, %v4732
        %4734 = vmatmul.bf16.gmra.mxu0 %v1524
        %v4735 = vpop.f32.mrf.mxu0
        %v4736 = vadd.f32 %v4607, %v4735
        %v4737 = vpop.f32.mrf.mxu0
        %v4738 = vadd.f32 %v4609, %v4737
        %4739 = vmatmul.bf16.gmra.mxu0 %v1535
        %v4740 = vpop.f32.mrf.mxu0
        %v4741 = vadd.f32 %v4612, %v4740
        %v4742 = vpop.f32.mrf.mxu0
        %v4743 = vadd.f32 %v4614, %v4742
        %4744 = vmatmul.bf16.gmra.mxu0 %v1546
        %v4745 = vpop.f32.mrf.mxu0
        %v4746 = vadd.f32 %v4617, %v4745
        %v4747 = vpop.f32.mrf.mxu0
        %v4748 = vadd.f32 %v4619, %v4747
        %4749 = vmatmul.bf16.gmra.mxu0 %v1557
        %v4750 = vpop.f32.mrf.mxu0
        %v4751 = vadd.f32 %v4622, %v4750
        %v4752 = vpop.f32.mrf.mxu0
        %v4753 = vadd.f32 %v4624, %v4752
        %4754 = vmatmul.bf16.gmra.mxu0 %v1568
        %v4755 = vpop.f32.mrf.mxu0
        %v4756 = vadd.f32 %v4627, %v4755
        %v4757 = vpop.f32.mrf.mxu0
        %v4758 = vadd.f32 %v4629, %v4757
        %4759 = vmatmul.bf16.gmra.mxu0 %v1579
        %v4760 = vpop.f32.mrf.mxu0
        %v4761 = vadd.f32 %v4632, %v4760
        %v4762 = vpop.f32.mrf.mxu0
        %v4763 = vadd.f32 %v4634, %v4762
        %4764 = vmatmul.bf16.gmra.mxu0 %v1590
        %v4765 = vpop.f32.mrf.mxu0
        %v4766 = vadd.f32 %v4637, %v4765
        %v4767 = vpop.f32.mrf.mxu0
        %v4768 = vadd.f32 %v4639, %v4767
        %4769 = vmatmul.bf16.gmra.mxu0 %v1601
        %v4770 = vpop.f32.mrf.mxu0
        %v4771 = vadd.f32 %v4642, %v4770
        %v4772 = vpop.f32.mrf.mxu0
        %v4773 = vadd.f32 %v4644, %v4772
        %4774 = vmatmul.bf16.gmra.mxu0 %v1612
        %v4775 = vpop.f32.mrf.mxu0
        %v4776 = vadd.f32 %v4647, %v4775
        %v4777 = vpop.f32.mrf.mxu0
        %v4778 = vadd.f32 %v4649, %v4777
        %4779 = vmatmul.bf16.gmra.mxu0 %v1623
        %v4780 = vpop.f32.mrf.mxu0
        %v4781 = vadd.f32 %v4652, %v4780
        %v4782 = vpop.f32.mrf.mxu0
        %v4783 = vadd.f32 %v4654, %v4782
        %4784 = vmatmul.bf16.gmra.mxu0 %v1634
        %v4785 = vpop.f32.mrf.mxu0
        %v4786 = vadd.f32 %v4657, %v4785
        %v4787 = vpop.f32.mrf.mxu0
        %v4788 = vadd.f32 %v4659, %v4787
        %4789 = vmatmul.bf16.gmra.mxu0 %v1645
        %v4790 = vpop.f32.mrf.mxu0
        %v4791 = vadd.f32 %v4662, %v4790
        %v4792 = vpop.f32.mrf.mxu0
        %v4793 = vadd.f32 %v4664, %v4792
        %4794 = vmatmul.bf16.gmra.mxu0 %v1656
        %v4795 = vpop.f32.mrf.mxu0
        %v4796 = vadd.f32 %v4667, %v4795
        %v4797 = vpop.f32.mrf.mxu0
        %v4798 = vadd.f32 %v4669, %v4797
        %4799 = vmatmul.bf16.gmra.mxu0 %v1667
        %v4800 = vpop.f32.mrf.mxu0
        %v4801 = vadd.f32 %v4672, %v4800
        %v4802 = vpop.f32.mrf.mxu0
        %v4803 = vadd.f32 %v4674, %v4802
        %4804 = vmatmul.bf16.gmra.mxu0 %v1678
        %v4805 = vpop.f32.mrf.mxu0
        %v4806 = vadd.f32 %v4677, %v4805
        %v4807 = vpop.f32.mrf.mxu0
        %v4808 = vadd.f32 %v4679, %v4807
        %4809 = vmatmul.bf16.gmra.mxu0 %v1689
        %v4810 = vpop.f32.mrf.mxu0
        %v4811 = vadd.f32 %v4682, %v4810
        %v4812 = vpop.f32.mrf.mxu0
        %v4813 = vadd.f32 %v4684, %v4812
        %4814 = vmatmul.bf16.gmra.mxu0 %v1700
        %v4815 = vpop.f32.mrf.mxu0
        %v4816 = vadd.f32 %v4687, %v4815
        %v4817 = vpop.f32.mrf.mxu0
        %v4818 = vadd.f32 %v4689, %v4817
        %4819 = vmatmul.bf16.gmra.mxu0 %v1711
        %v4820 = vpop.f32.mrf.mxu0
        %v4821 = vadd.f32 %v4692, %v4820
        %v4822 = vpop.f32.mrf.mxu0
        %v4823 = vadd.f32 %v4694, %v4822
        %4824 = vmatmul.bf16.gmra.mxu0 %v1722
        %v4825 = vpop.f32.mrf.mxu0
        %v4826 = vadd.f32 %v4697, %v4825
        %v4827 = vpop.f32.mrf.mxu0
        %v4828 = vadd.f32 %v4699, %v4827
        %4829 = vmatmul.bf16.gmra.mxu0 %v1733
        %v4830 = vpop.f32.mrf.mxu0
        %v4831 = vadd.f32 %v4702, %v4830
        %v4832 = vpop.f32.mrf.mxu0
        %v4833 = vadd.f32 %v4704, %v4832
        %4834 = vmatmul.bf16.gmra.mxu0 %v1744
        %v4835 = vpop.f32.mrf.mxu0
        %v4836 = vadd.f32 %v4707, %v4835
        %v4837 = vpop.f32.mrf.mxu0
        %v4838 = vadd.f32 %v4709, %v4837
        %4839 = vdwg.mxu0
        %4840 = vmatpush.bf16.msra.mxu0 %v2575
        %4841 = vmatpush.bf16.msra.mxu0 %v2573
        %4842 = vmatpush.bf16.msra.mxu0 %v2571
        %4843 = vmatpush.bf16.msra.mxu0 %v2569
        %4844 = vmatpush.bf16.msra.mxu0 %v2567
        %4845 = vmatpush.bf16.msra.mxu0 %v2565
        %4846 = vmatpush.bf16.msra.mxu0 %v2563
        %4847 = vmatpush.bf16.msra.mxu0 %v2561
        %4848 = vmatmul.bf16.gmra.mxu0 %v1492
        %v4849 = vpop.f32.mrf.mxu0
        %v4850 = vadd.f32 %v4721, %v4849
        %v4851 = vpop.f32.mrf.mxu0
        %v4852 = vadd.f32 %v4723, %v4851
        %4853 = vmatmul.bf16.gmra.mxu0 %v1503
        %v4854 = vpop.f32.mrf.mxu0
        %v4855 = vadd.f32 %v4726, %v4854
        %v4856 = vpop.f32.mrf.mxu0
        %v4857 = vadd.f32 %v4728, %v4856
        %4858 = vmatmul.bf16.gmra.mxu0 %v1514
        %v4859 = vpop.f32.mrf.mxu0
        %v4860 = vadd.f32 %v4731, %v4859
        %v4861 = vpop.f32.mrf.mxu0
        %v4862 = vadd.f32 %v4733, %v4861
        %4863 = vmatmul.bf16.gmra.mxu0 %v1525
        %v4864 = vpop.f32.mrf.mxu0
        %v4865 = vadd.f32 %v4736, %v4864
        %v4866 = vpop.f32.mrf.mxu0
        %v4867 = vadd.f32 %v4738, %v4866
        %4868 = vmatmul.bf16.gmra.mxu0 %v1536
        %v4869 = vpop.f32.mrf.mxu0
        %v4870 = vadd.f32 %v4741, %v4869
        %v4871 = vpop.f32.mrf.mxu0
        %v4872 = vadd.f32 %v4743, %v4871
        %4873 = vmatmul.bf16.gmra.mxu0 %v1547
        %v4874 = vpop.f32.mrf.mxu0
        %v4875 = vadd.f32 %v4746, %v4874
        %v4876 = vpop.f32.mrf.mxu0
        %v4877 = vadd.f32 %v4748, %v4876
        %4878 = vmatmul.bf16.gmra.mxu0 %v1558
        %v4879 = vpop.f32.mrf.mxu0
        %v4880 = vadd.f32 %v4751, %v4879
        %v4881 = vpop.f32.mrf.mxu0
        %v4882 = vadd.f32 %v4753, %v4881
        %4883 = vmatmul.bf16.gmra.mxu0 %v1569
        %v4884 = vpop.f32.mrf.mxu0
        %v4885 = vadd.f32 %v4756, %v4884
        %v4886 = vpop.f32.mrf.mxu0
        %v4887 = vadd.f32 %v4758, %v4886
        %4888 = vmatmul.bf16.gmra.mxu0 %v1580
        %v4889 = vpop.f32.mrf.mxu0
        %v4890 = vadd.f32 %v4761, %v4889
        %v4891 = vpop.f32.mrf.mxu0
        %v4892 = vadd.f32 %v4763, %v4891
        %4893 = vmatmul.bf16.gmra.mxu0 %v1591
        %v4894 = vpop.f32.mrf.mxu0
        %v4895 = vadd.f32 %v4766, %v4894
        %v4896 = vpop.f32.mrf.mxu0
        %v4897 = vadd.f32 %v4768, %v4896
        %4898 = vmatmul.bf16.gmra.mxu0 %v1602
        %v4899 = vpop.f32.mrf.mxu0
        %v4900 = vadd.f32 %v4771, %v4899
        %v4901 = vpop.f32.mrf.mxu0
        %v4902 = vadd.f32 %v4773, %v4901
        %4903 = vmatmul.bf16.gmra.mxu0 %v1613
        %v4904 = vpop.f32.mrf.mxu0
        %v4905 = vadd.f32 %v4776, %v4904
        %v4906 = vpop.f32.mrf.mxu0
        %v4907 = vadd.f32 %v4778, %v4906
        %4908 = vmatmul.bf16.gmra.mxu0 %v1624
        %v4909 = vpop.f32.mrf.mxu0
        %v4910 = vadd.f32 %v4781, %v4909
        %v4911 = vpop.f32.mrf.mxu0
        %v4912 = vadd.f32 %v4783, %v4911
        %4913 = vmatmul.bf16.gmra.mxu0 %v1635
        %v4914 = vpop.f32.mrf.mxu0
        %v4915 = vadd.f32 %v4786, %v4914
        %v4916 = vpop.f32.mrf.mxu0
        %v4917 = vadd.f32 %v4788, %v4916
        %4918 = vmatmul.bf16.gmra.mxu0 %v1646
        %v4919 = vpop.f32.mrf.mxu0
        %v4920 = vadd.f32 %v4791, %v4919
        %v4921 = vpop.f32.mrf.mxu0
        %v4922 = vadd.f32 %v4793, %v4921
        %4923 = vmatmul.bf16.gmra.mxu0 %v1657
        %v4924 = vpop.f32.mrf.mxu0
        %v4925 = vadd.f32 %v4796, %v4924
        %v4926 = vpop.f32.mrf.mxu0
        %v4927 = vadd.f32 %v4798, %v4926
        %4928 = vmatmul.bf16.gmra.mxu0 %v1668
        %v4929 = vpop.f32.mrf.mxu0
        %v4930 = vadd.f32 %v4801, %v4929
        %v4931 = vpop.f32.mrf.mxu0
        %v4932 = vadd.f32 %v4803, %v4931
        %4933 = vmatmul.bf16.gmra.mxu0 %v1679
        %v4934 = vpop.f32.mrf.mxu0
        %v4935 = vadd.f32 %v4806, %v4934
        %v4936 = vpop.f32.mrf.mxu0
        %v4937 = vadd.f32 %v4808, %v4936
        %4938 = vmatmul.bf16.gmra.mxu0 %v1690
        %v4939 = vpop.f32.mrf.mxu0
        %v4940 = vadd.f32 %v4811, %v4939
        %v4941 = vpop.f32.mrf.mxu0
        %v4942 = vadd.f32 %v4813, %v4941
        %4943 = vmatmul.bf16.gmra.mxu0 %v1701
        %v4944 = vpop.f32.mrf.mxu0
        %v4945 = vadd.f32 %v4816, %v4944
        %v4946 = vpop.f32.mrf.mxu0
        %v4947 = vadd.f32 %v4818, %v4946
        %4948 = vmatmul.bf16.gmra.mxu0 %v1712
        %v4949 = vpop.f32.mrf.mxu0
        %v4950 = vadd.f32 %v4821, %v4949
        %v4951 = vpop.f32.mrf.mxu0
        %v4952 = vadd.f32 %v4823, %v4951
        %4953 = vmatmul.bf16.gmra.mxu0 %v1723
        %v4954 = vpop.f32.mrf.mxu0
        %v4955 = vadd.f32 %v4826, %v4954
        %v4956 = vpop.f32.mrf.mxu0
        %v4957 = vadd.f32 %v4828, %v4956
        %4958 = vmatmul.bf16.gmra.mxu0 %v1734
        %v4959 = vpop.f32.mrf.mxu0
        %v4960 = vadd.f32 %v4831, %v4959
        %v4961 = vpop.f32.mrf.mxu0
        %v4962 = vadd.f32 %v4833, %v4961
        %4963 = vmatmul.bf16.gmra.mxu0 %v1745
        %v4964 = vpop.f32.mrf.mxu0
        %v4965 = vadd.f32 %v4836, %v4964
        %v4966 = vpop.f32.mrf.mxu0
        %v4967 = vadd.f32 %v4838, %v4966
        %4968 = vdwg.mxu0
        %4969 = vmatpush.bf16.msra.mxu0 %v2591
        %4970 = vmatpush.bf16.msra.mxu0 %v2589
        %4971 = vmatpush.bf16.msra.mxu0 %v2587
        %4972 = vmatpush.bf16.msra.mxu0 %v2585
        %4973 = vmatpush.bf16.msra.mxu0 %v2583
        %4974 = vmatpush.bf16.msra.mxu0 %v2581
        %4975 = vmatpush.bf16.msra.mxu0 %v2579
        %4976 = vmatpush.bf16.msra.mxu0 %v2577
        %4977 = vmatmul.bf16.gmra.mxu0 %v1493
        %v4978 = vpop.f32.mrf.mxu0
        %v4979 = vadd.f32 %v4850, %v4978
        %v4980 = vpop.f32.mrf.mxu0
        %v4981 = vadd.f32 %v4852, %v4980
        %4982 = vmatmul.bf16.gmra.mxu0 %v1504
        %v4983 = vpop.f32.mrf.mxu0
        %v4984 = vadd.f32 %v4855, %v4983
        %v4985 = vpop.f32.mrf.mxu0
        %v4986 = vadd.f32 %v4857, %v4985
        %4987 = vmatmul.bf16.gmra.mxu0 %v1515
        %v4988 = vpop.f32.mrf.mxu0
        %v4989 = vadd.f32 %v4860, %v4988
        %v4990 = vpop.f32.mrf.mxu0
        %v4991 = vadd.f32 %v4862, %v4990
        %4992 = vmatmul.bf16.gmra.mxu0 %v1526
        %v4993 = vpop.f32.mrf.mxu0
        %v4994 = vadd.f32 %v4865, %v4993
        %v4995 = vpop.f32.mrf.mxu0
        %v4996 = vadd.f32 %v4867, %v4995
        %4997 = vmatmul.bf16.gmra.mxu0 %v1537
        %v4998 = vpop.f32.mrf.mxu0
        %v4999 = vadd.f32 %v4870, %v4998
        %v5000 = vpop.f32.mrf.mxu0
        %v5001 = vadd.f32 %v4872, %v5000
        %5002 = vmatmul.bf16.gmra.mxu0 %v1548
        %v5003 = vpop.f32.mrf.mxu0
        %v5004 = vadd.f32 %v4875, %v5003
        %v5005 = vpop.f32.mrf.mxu0
        %v5006 = vadd.f32 %v4877, %v5005
        %5007 = vmatmul.bf16.gmra.mxu0 %v1559
        %v5008 = vpop.f32.mrf.mxu0
        %v5009 = vadd.f32 %v4880, %v5008
        %v5010 = vpop.f32.mrf.mxu0
        %v5011 = vadd.f32 %v4882, %v5010
        %5012 = vmatmul.bf16.gmra.mxu0 %v1570
        %v5013 = vpop.f32.mrf.mxu0
        %v5014 = vadd.f32 %v4885, %v5013
        %v5015 = vpop.f32.mrf.mxu0
        %v5016 = vadd.f32 %v4887, %v5015
        %5017 = vmatmul.bf16.gmra.mxu0 %v1581
        %v5018 = vpop.f32.mrf.mxu0
        %v5019 = vadd.f32 %v4890, %v5018
        %v5020 = vpop.f32.mrf.mxu0
        %v5021 = vadd.f32 %v4892, %v5020
        %5022 = vmatmul.bf16.gmra.mxu0 %v1592
        %v5023 = vpop.f32.mrf.mxu0
        %v5024 = vadd.f32 %v4895, %v5023
        %v5025 = vpop.f32.mrf.mxu0
        %v5026 = vadd.f32 %v4897, %v5025
        %5027 = vmatmul.bf16.gmra.mxu0 %v1603
        %v5028 = vpop.f32.mrf.mxu0
        %v5029 = vadd.f32 %v4900, %v5028
        %v5030 = vpop.f32.mrf.mxu0
        %v5031 = vadd.f32 %v4902, %v5030
        %5032 = vmatmul.bf16.gmra.mxu0 %v1614
        %v5033 = vpop.f32.mrf.mxu0
        %v5034 = vadd.f32 %v4905, %v5033
        %v5035 = vpop.f32.mrf.mxu0
        %v5036 = vadd.f32 %v4907, %v5035
        %5037 = vmatmul.bf16.gmra.mxu0 %v1625
        %v5038 = vpop.f32.mrf.mxu0
        %v5039 = vadd.f32 %v4910, %v5038
        %v5040 = vpop.f32.mrf.mxu0
        %v5041 = vadd.f32 %v4912, %v5040
        %5042 = vmatmul.bf16.gmra.mxu0 %v1636
        %v5043 = vpop.f32.mrf.mxu0
        %v5044 = vadd.f32 %v4915, %v5043
        %v5045 = vpop.f32.mrf.mxu0
        %v5046 = vadd.f32 %v4917, %v5045
        %5047 = vmatmul.bf16.gmra.mxu0 %v1647
        %v5048 = vpop.f32.mrf.mxu0
        %v5049 = vadd.f32 %v4920, %v5048
        %v5050 = vpop.f32.mrf.mxu0
        %v5051 = vadd.f32 %v4922, %v5050
        %5052 = vmatmul.bf16.gmra.mxu0 %v1658
        %v5053 = vpop.f32.mrf.mxu0
        %v5054 = vadd.f32 %v4925, %v5053
        %v5055 = vpop.f32.mrf.mxu0
        %v5056 = vadd.f32 %v4927, %v5055
        %5057 = vmatmul.bf16.gmra.mxu0 %v1669
        %v5058 = vpop.f32.mrf.mxu0
        %v5059 = vadd.f32 %v4930, %v5058
        %v5060 = vpop.f32.mrf.mxu0
        %v5061 = vadd.f32 %v4932, %v5060
        %5062 = vmatmul.bf16.gmra.mxu0 %v1680
        %v5063 = vpop.f32.mrf.mxu0
        %v5064 = vadd.f32 %v4935, %v5063
        %v5065 = vpop.f32.mrf.mxu0
        %v5066 = vadd.f32 %v4937, %v5065
        %5067 = vmatmul.bf16.gmra.mxu0 %v1691
        %v5068 = vpop.f32.mrf.mxu0
        %v5069 = vadd.f32 %v4940, %v5068
        %v5070 = vpop.f32.mrf.mxu0
        %v5071 = vadd.f32 %v4942, %v5070
        %5072 = vmatmul.bf16.gmra.mxu0 %v1702
        %v5073 = vpop.f32.mrf.mxu0
        %v5074 = vadd.f32 %v4945, %v5073
        %v5075 = vpop.f32.mrf.mxu0
        %v5076 = vadd.f32 %v4947, %v5075
        %5077 = vmatmul.bf16.gmra.mxu0 %v1713
        %v5078 = vpop.f32.mrf.mxu0
        %v5079 = vadd.f32 %v4950, %v5078
        %v5080 = vpop.f32.mrf.mxu0
        %v5081 = vadd.f32 %v4952, %v5080
        %5082 = vmatmul.bf16.gmra.mxu0 %v1724
        %v5083 = vpop.f32.mrf.mxu0
        %v5084 = vadd.f32 %v4955, %v5083
        %v5085 = vpop.f32.mrf.mxu0
        %v5086 = vadd.f32 %v4957, %v5085
        %5087 = vmatmul.bf16.gmra.mxu0 %v1735
        %v5088 = vpop.f32.mrf.mxu0
        %v5089 = vadd.f32 %v4960, %v5088
        %v5090 = vpop.f32.mrf.mxu0
        %v5091 = vadd.f32 %v4962, %v5090
        %5092 = vmatmul.bf16.gmra.mxu0 %v1746
        %v5093 = vpop.f32.mrf.mxu0
        %v5094 = vadd.f32 %v4965, %v5093
        %v5095 = vpop.f32.mrf.mxu0
        %v5096 = vadd.f32 %v4967, %v5095
        %5097 = vdwg.mxu0
        %5098 = vmatpush.bf16.msra.mxu0 %v2607
        %5099 = vmatpush.bf16.msra.mxu0 %v2605
        %5100 = vmatpush.bf16.msra.mxu0 %v2603
        %5101 = vmatpush.bf16.msra.mxu0 %v2601
        %5102 = vmatpush.bf16.msra.mxu0 %v2599
        %5103 = vmatpush.bf16.msra.mxu0 %v2597
        %5104 = vmatpush.bf16.msra.mxu0 %v2595
        %5105 = vmatpush.bf16.msra.mxu0 %v2593
        %5106 = vmatmul.bf16.gmra.mxu0 %v1494
        %v5107 = vpop.f32.mrf.mxu0
        %v5108 = vadd.f32 %v4979, %v5107
        %v5109 = vpop.f32.mrf.mxu0
        %v5110 = vadd.f32 %v4981, %v5109
        %5111 = vmatmul.bf16.gmra.mxu0 %v1505
        %v5112 = vpop.f32.mrf.mxu0
        %v5113 = vadd.f32 %v4984, %v5112
        %v5114 = vpop.f32.mrf.mxu0
        %v5115 = vadd.f32 %v4986, %v5114
        %5116 = vmatmul.bf16.gmra.mxu0 %v1516
        %v5117 = vpop.f32.mrf.mxu0
        %v5118 = vadd.f32 %v4989, %v5117
        %v5119 = vpop.f32.mrf.mxu0
        %v5120 = vadd.f32 %v4991, %v5119
        %5121 = vmatmul.bf16.gmra.mxu0 %v1527
        %v5122 = vpop.f32.mrf.mxu0
        %v5123 = vadd.f32 %v4994, %v5122
        %v5124 = vpop.f32.mrf.mxu0
        %v5125 = vadd.f32 %v4996, %v5124
        %5126 = vmatmul.bf16.gmra.mxu0 %v1538
        %v5127 = vpop.f32.mrf.mxu0
        %v5128 = vadd.f32 %v4999, %v5127
        %v5129 = vpop.f32.mrf.mxu0
        %v5130 = vadd.f32 %v5001, %v5129
        %5131 = vmatmul.bf16.gmra.mxu0 %v1549
        %v5132 = vpop.f32.mrf.mxu0
        %v5133 = vadd.f32 %v5004, %v5132
        %v5134 = vpop.f32.mrf.mxu0
        %v5135 = vadd.f32 %v5006, %v5134
        %5136 = vmatmul.bf16.gmra.mxu0 %v1560
        %v5137 = vpop.f32.mrf.mxu0
        %v5138 = vadd.f32 %v5009, %v5137
        %v5139 = vpop.f32.mrf.mxu0
        %v5140 = vadd.f32 %v5011, %v5139
        %5141 = vmatmul.bf16.gmra.mxu0 %v1571
        %v5142 = vpop.f32.mrf.mxu0
        %v5143 = vadd.f32 %v5014, %v5142
        %v5144 = vpop.f32.mrf.mxu0
        %v5145 = vadd.f32 %v5016, %v5144
        %5146 = vmatmul.bf16.gmra.mxu0 %v1582
        %v5147 = vpop.f32.mrf.mxu0
        %v5148 = vadd.f32 %v5019, %v5147
        %v5149 = vpop.f32.mrf.mxu0
        %v5150 = vadd.f32 %v5021, %v5149
        %5151 = vmatmul.bf16.gmra.mxu0 %v1593
        %v5152 = vpop.f32.mrf.mxu0
        %v5153 = vadd.f32 %v5024, %v5152
        %v5154 = vpop.f32.mrf.mxu0
        %v5155 = vadd.f32 %v5026, %v5154
        %5156 = vmatmul.bf16.gmra.mxu0 %v1604
        %v5157 = vpop.f32.mrf.mxu0
        %v5158 = vadd.f32 %v5029, %v5157
        %v5159 = vpop.f32.mrf.mxu0
        %v5160 = vadd.f32 %v5031, %v5159
        %5161 = vmatmul.bf16.gmra.mxu0 %v1615
        %v5162 = vpop.f32.mrf.mxu0
        %v5163 = vadd.f32 %v5034, %v5162
        %v5164 = vpop.f32.mrf.mxu0
        %v5165 = vadd.f32 %v5036, %v5164
        %5166 = vmatmul.bf16.gmra.mxu0 %v1626
        %v5167 = vpop.f32.mrf.mxu0
        %v5168 = vadd.f32 %v5039, %v5167
        %v5169 = vpop.f32.mrf.mxu0
        %v5170 = vadd.f32 %v5041, %v5169
        %5171 = vmatmul.bf16.gmra.mxu0 %v1637
        %v5172 = vpop.f32.mrf.mxu0
        %v5173 = vadd.f32 %v5044, %v5172
        %v5174 = vpop.f32.mrf.mxu0
        %v5175 = vadd.f32 %v5046, %v5174
        %5176 = vmatmul.bf16.gmra.mxu0 %v1648
        %v5177 = vpop.f32.mrf.mxu0
        %v5178 = vadd.f32 %v5049, %v5177
        %v5179 = vpop.f32.mrf.mxu0
        %v5180 = vadd.f32 %v5051, %v5179
        %5181 = vmatmul.bf16.gmra.mxu0 %v1659
        %v5182 = vpop.f32.mrf.mxu0
        %v5183 = vadd.f32 %v5054, %v5182
        %v5184 = vpop.f32.mrf.mxu0
        %v5185 = vadd.f32 %v5056, %v5184
        %5186 = vmatmul.bf16.gmra.mxu0 %v1670
        %v5187 = vpop.f32.mrf.mxu0
        %v5188 = vadd.f32 %v5059, %v5187
        %v5189 = vpop.f32.mrf.mxu0
        %v5190 = vadd.f32 %v5061, %v5189
        %5191 = vmatmul.bf16.gmra.mxu0 %v1681
        %v5192 = vpop.f32.mrf.mxu0
        %v5193 = vadd.f32 %v5064, %v5192
        %v5194 = vpop.f32.mrf.mxu0
        %v5195 = vadd.f32 %v5066, %v5194
        %5196 = vmatmul.bf16.gmra.mxu0 %v1692
        %v5197 = vpop.f32.mrf.mxu0
        %v5198 = vadd.f32 %v5069, %v5197
        %v5199 = vpop.f32.mrf.mxu0
        %v5200 = vadd.f32 %v5071, %v5199
        %5201 = vmatmul.bf16.gmra.mxu0 %v1703
        %v5202 = vpop.f32.mrf.mxu0
        %v5203 = vadd.f32 %v5074, %v5202
        %v5204 = vpop.f32.mrf.mxu0
        %v5205 = vadd.f32 %v5076, %v5204
        %5206 = vmatmul.bf16.gmra.mxu0 %v1714
        %v5207 = vpop.f32.mrf.mxu0
        %v5208 = vadd.f32 %v5079, %v5207
        %v5209 = vpop.f32.mrf.mxu0
        %v5210 = vadd.f32 %v5081, %v5209
        %5211 = vmatmul.bf16.gmra.mxu0 %v1725
        %v5212 = vpop.f32.mrf.mxu0
        %v5213 = vadd.f32 %v5084, %v5212
        %v5214 = vpop.f32.mrf.mxu0
        %v5215 = vadd.f32 %v5086, %v5214
        %5216 = vmatmul.bf16.gmra.mxu0 %v1736
        %v5217 = vpop.f32.mrf.mxu0
        %v5218 = vadd.f32 %v5089, %v5217
        %v5219 = vpop.f32.mrf.mxu0
        %v5220 = vadd.f32 %v5091, %v5219
        %5221 = vmatmul.bf16.gmra.mxu0 %v1747
        %v5222 = vpop.f32.mrf.mxu0
        %v5223 = vadd.f32 %v5094, %v5222
        %v5224 = vpop.f32.mrf.mxu0
        %v5225 = vadd.f32 %v5096, %v5224
        %5226 = vdwg.mxu0
        %5227 = vmatpush.bf16.msra.mxu0 %v2623
        %5228 = vmatpush.bf16.msra.mxu0 %v2621
        %5229 = vmatpush.bf16.msra.mxu0 %v2619
        %5230 = vmatpush.bf16.msra.mxu0 %v2617
        %5231 = vmatpush.bf16.msra.mxu0 %v2615
        %5232 = vmatpush.bf16.msra.mxu0 %v2613
        %5233 = vmatpush.bf16.msra.mxu0 %v2611
        %5234 = vmatpush.bf16.msra.mxu0 %v2609
        %5235 = vmatmul.bf16.gmra.mxu0 %v1495
        %v5236 = vpop.f32.mrf.mxu0
        %v5237 = vadd.f32 %v5108, %v5236
        %v5238 = vpop.f32.mrf.mxu0
        %v5239 = vadd.f32 %v5110, %v5238
        %5240 = vmatmul.bf16.gmra.mxu0 %v1506
        %v5241 = vpop.f32.mrf.mxu0
        %v5242 = vadd.f32 %v5113, %v5241
        %v5243 = vpop.f32.mrf.mxu0
        %v5244 = vadd.f32 %v5115, %v5243
        %5245 = vmatmul.bf16.gmra.mxu0 %v1517
        %v5246 = vpop.f32.mrf.mxu0
        %v5247 = vadd.f32 %v5118, %v5246
        %v5248 = vpop.f32.mrf.mxu0
        %v5249 = vadd.f32 %v5120, %v5248
        %5250 = vmatmul.bf16.gmra.mxu0 %v1528
        %v5251 = vpop.f32.mrf.mxu0
        %v5252 = vadd.f32 %v5123, %v5251
        %v5253 = vpop.f32.mrf.mxu0
        %v5254 = vadd.f32 %v5125, %v5253
        %5255 = vmatmul.bf16.gmra.mxu0 %v1539
        %v5256 = vpop.f32.mrf.mxu0
        %v5257 = vadd.f32 %v5128, %v5256
        %v5258 = vpop.f32.mrf.mxu0
        %v5259 = vadd.f32 %v5130, %v5258
        %5260 = vmatmul.bf16.gmra.mxu0 %v1550
        %v5261 = vpop.f32.mrf.mxu0
        %v5262 = vadd.f32 %v5133, %v5261
        %v5263 = vpop.f32.mrf.mxu0
        %v5264 = vadd.f32 %v5135, %v5263
        %5265 = vmatmul.bf16.gmra.mxu0 %v1561
        %v5266 = vpop.f32.mrf.mxu0
        %v5267 = vadd.f32 %v5138, %v5266
        %v5268 = vpop.f32.mrf.mxu0
        %v5269 = vadd.f32 %v5140, %v5268
        %5270 = vmatmul.bf16.gmra.mxu0 %v1572
        %v5271 = vpop.f32.mrf.mxu0
        %v5272 = vadd.f32 %v5143, %v5271
        %v5273 = vpop.f32.mrf.mxu0
        %v5274 = vadd.f32 %v5145, %v5273
        %5275 = vmatmul.bf16.gmra.mxu0 %v1583
        %v5276 = vpop.f32.mrf.mxu0
        %v5277 = vadd.f32 %v5148, %v5276
        %v5278 = vpop.f32.mrf.mxu0
        %v5279 = vadd.f32 %v5150, %v5278
        %5280 = vmatmul.bf16.gmra.mxu0 %v1594
        %v5281 = vpop.f32.mrf.mxu0
        %v5282 = vadd.f32 %v5153, %v5281
        %v5283 = vpop.f32.mrf.mxu0
        %v5284 = vadd.f32 %v5155, %v5283
        %5285 = vmatmul.bf16.gmra.mxu0 %v1605
        %v5286 = vpop.f32.mrf.mxu0
        %v5287 = vadd.f32 %v5158, %v5286
        %v5288 = vpop.f32.mrf.mxu0
        %v5289 = vadd.f32 %v5160, %v5288
        %5290 = vmatmul.bf16.gmra.mxu0 %v1616
        %v5291 = vpop.f32.mrf.mxu0
        %v5292 = vadd.f32 %v5163, %v5291
        %v5293 = vpop.f32.mrf.mxu0
        %v5294 = vadd.f32 %v5165, %v5293
        %5295 = vmatmul.bf16.gmra.mxu0 %v1627
        %v5296 = vpop.f32.mrf.mxu0
        %v5297 = vadd.f32 %v5168, %v5296
        %v5298 = vpop.f32.mrf.mxu0
        %v5299 = vadd.f32 %v5170, %v5298
        %5300 = vmatmul.bf16.gmra.mxu0 %v1638
        %v5301 = vpop.f32.mrf.mxu0
        %v5302 = vadd.f32 %v5173, %v5301
        %v5303 = vpop.f32.mrf.mxu0
        %v5304 = vadd.f32 %v5175, %v5303
        %5305 = vmatmul.bf16.gmra.mxu0 %v1649
        %v5306 = vpop.f32.mrf.mxu0
        %v5307 = vadd.f32 %v5178, %v5306
        %v5308 = vpop.f32.mrf.mxu0
        %v5309 = vadd.f32 %v5180, %v5308
        %5310 = vmatmul.bf16.gmra.mxu0 %v1660
        %v5311 = vpop.f32.mrf.mxu0
        %v5312 = vadd.f32 %v5183, %v5311
        %v5313 = vpop.f32.mrf.mxu0
        %v5314 = vadd.f32 %v5185, %v5313
        %5315 = vmatmul.bf16.gmra.mxu0 %v1671
        %v5316 = vpop.f32.mrf.mxu0
        %v5317 = vadd.f32 %v5188, %v5316
        %v5318 = vpop.f32.mrf.mxu0
        %v5319 = vadd.f32 %v5190, %v5318
        %5320 = vmatmul.bf16.gmra.mxu0 %v1682
        %v5321 = vpop.f32.mrf.mxu0
        %v5322 = vadd.f32 %v5193, %v5321
        %v5323 = vpop.f32.mrf.mxu0
        %v5324 = vadd.f32 %v5195, %v5323
        %5325 = vmatmul.bf16.gmra.mxu0 %v1693
        %v5326 = vpop.f32.mrf.mxu0
        %v5327 = vadd.f32 %v5198, %v5326
        %v5328 = vpop.f32.mrf.mxu0
        %v5329 = vadd.f32 %v5200, %v5328
        %5330 = vmatmul.bf16.gmra.mxu0 %v1704
        %v5331 = vpop.f32.mrf.mxu0
        %v5332 = vadd.f32 %v5203, %v5331
        %v5333 = vpop.f32.mrf.mxu0
        %v5334 = vadd.f32 %v5205, %v5333
        %5335 = vmatmul.bf16.gmra.mxu0 %v1715
        %v5336 = vpop.f32.mrf.mxu0
        %v5337 = vadd.f32 %v5208, %v5336
        %v5338 = vpop.f32.mrf.mxu0
        %v5339 = vadd.f32 %v5210, %v5338
        %5340 = vmatmul.bf16.gmra.mxu0 %v1726
        %v5341 = vpop.f32.mrf.mxu0
        %v5342 = vadd.f32 %v5213, %v5341
        %v5343 = vpop.f32.mrf.mxu0
        %v5344 = vadd.f32 %v5215, %v5343
        %5345 = vmatmul.bf16.gmra.mxu0 %v1737
        %v5346 = vpop.f32.mrf.mxu0
        %v5347 = vadd.f32 %v5218, %v5346
        %v5348 = vpop.f32.mrf.mxu0
        %v5349 = vadd.f32 %v5220, %v5348
        %5350 = vmatmul.bf16.gmra.mxu0 %v1748
        %v5351 = vpop.f32.mrf.mxu0
        %v5352 = vadd.f32 %v5223, %v5351
        %v5353 = vpop.f32.mrf.mxu0
        %v5354 = vadd.f32 %v5225, %v5353
        %5355 = vdwg.mxu0
        %5356 = vmatpush.bf16.msra.mxu0 %v2639
        %5357 = vmatpush.bf16.msra.mxu0 %v2637
        %5358 = vmatpush.bf16.msra.mxu0 %v2635
        %5359 = vmatpush.bf16.msra.mxu0 %v2633
        %5360 = vmatpush.bf16.msra.mxu0 %v2631
        %5361 = vmatpush.bf16.msra.mxu0 %v2629
        %5362 = vmatpush.bf16.msra.mxu0 %v2627
        %5363 = vmatpush.bf16.msra.mxu0 %v2625
        %5364 = vmatmul.bf16.gmra.mxu0 %v1496
        %v5365 = vpop.f32.mrf.mxu0
        %v5366 = vadd.f32 %v5237, %v5365
        %v5367 = vpop.f32.mrf.mxu0
        %v5368 = vadd.f32 %v5239, %v5367
        %5369 = vmatmul.bf16.gmra.mxu0 %v1507
        %v5370 = vpop.f32.mrf.mxu0
        %v5371 = vadd.f32 %v5242, %v5370
        %v5372 = vpop.f32.mrf.mxu0
        %v5373 = vadd.f32 %v5244, %v5372
        %5374 = vmatmul.bf16.gmra.mxu0 %v1518
        %v5375 = vpop.f32.mrf.mxu0
        %v5376 = vadd.f32 %v5247, %v5375
        %v5377 = vpop.f32.mrf.mxu0
        %v5378 = vadd.f32 %v5249, %v5377
        %5379 = vmatmul.bf16.gmra.mxu0 %v1529
        %v5380 = vpop.f32.mrf.mxu0
        %v5381 = vadd.f32 %v5252, %v5380
        %v5382 = vpop.f32.mrf.mxu0
        %v5383 = vadd.f32 %v5254, %v5382
        %5384 = vmatmul.bf16.gmra.mxu0 %v1540
        %v5385 = vpop.f32.mrf.mxu0
        %v5386 = vadd.f32 %v5257, %v5385
        %v5387 = vpop.f32.mrf.mxu0
        %v5388 = vadd.f32 %v5259, %v5387
        %5389 = vmatmul.bf16.gmra.mxu0 %v1551
        %v5390 = vpop.f32.mrf.mxu0
        %v5391 = vadd.f32 %v5262, %v5390
        %v5392 = vpop.f32.mrf.mxu0
        %v5393 = vadd.f32 %v5264, %v5392
        %5394 = vmatmul.bf16.gmra.mxu0 %v1562
        %v5395 = vpop.f32.mrf.mxu0
        %v5396 = vadd.f32 %v5267, %v5395
        %v5397 = vpop.f32.mrf.mxu0
        %v5398 = vadd.f32 %v5269, %v5397
        %5399 = vmatmul.bf16.gmra.mxu0 %v1573
        %v5400 = vpop.f32.mrf.mxu0
        %v5401 = vadd.f32 %v5272, %v5400
        %v5402 = vpop.f32.mrf.mxu0
        %v5403 = vadd.f32 %v5274, %v5402
        %5404 = vmatmul.bf16.gmra.mxu0 %v1584
        %v5405 = vpop.f32.mrf.mxu0
        %v5406 = vadd.f32 %v5277, %v5405
        %v5407 = vpop.f32.mrf.mxu0
        %v5408 = vadd.f32 %v5279, %v5407
        %5409 = vmatmul.bf16.gmra.mxu0 %v1595
        %v5410 = vpop.f32.mrf.mxu0
        %v5411 = vadd.f32 %v5282, %v5410
        %v5412 = vpop.f32.mrf.mxu0
        %v5413 = vadd.f32 %v5284, %v5412
        %5414 = vmatmul.bf16.gmra.mxu0 %v1606
        %v5415 = vpop.f32.mrf.mxu0
        %v5416 = vadd.f32 %v5287, %v5415
        %v5417 = vpop.f32.mrf.mxu0
        %v5418 = vadd.f32 %v5289, %v5417
        %5419 = vmatmul.bf16.gmra.mxu0 %v1617
        %v5420 = vpop.f32.mrf.mxu0
        %v5421 = vadd.f32 %v5292, %v5420
        %v5422 = vpop.f32.mrf.mxu0
        %v5423 = vadd.f32 %v5294, %v5422
        %5424 = vmatmul.bf16.gmra.mxu0 %v1628
        %v5425 = vpop.f32.mrf.mxu0
        %v5426 = vadd.f32 %v5297, %v5425
        %v5427 = vpop.f32.mrf.mxu0
        %v5428 = vadd.f32 %v5299, %v5427
        %5429 = vmatmul.bf16.gmra.mxu0 %v1639
        %v5430 = vpop.f32.mrf.mxu0
        %v5431 = vadd.f32 %v5302, %v5430
        %v5432 = vpop.f32.mrf.mxu0
        %v5433 = vadd.f32 %v5304, %v5432
        %5434 = vmatmul.bf16.gmra.mxu0 %v1650
        %v5435 = vpop.f32.mrf.mxu0
        %v5436 = vadd.f32 %v5307, %v5435
        %v5437 = vpop.f32.mrf.mxu0
        %v5438 = vadd.f32 %v5309, %v5437
        %5439 = vmatmul.bf16.gmra.mxu0 %v1661
        %v5440 = vpop.f32.mrf.mxu0
        %v5441 = vadd.f32 %v5312, %v5440
        %v5442 = vpop.f32.mrf.mxu0
        %v5443 = vadd.f32 %v5314, %v5442
        %5444 = vmatmul.bf16.gmra.mxu0 %v1672
        %v5445 = vpop.f32.mrf.mxu0
        %v5446 = vadd.f32 %v5317, %v5445
        %v5447 = vpop.f32.mrf.mxu0
        %v5448 = vadd.f32 %v5319, %v5447
        %5449 = vmatmul.bf16.gmra.mxu0 %v1683
        %v5450 = vpop.f32.mrf.mxu0
        %v5451 = vadd.f32 %v5322, %v5450
        %v5452 = vpop.f32.mrf.mxu0
        %v5453 = vadd.f32 %v5324, %v5452
        %5454 = vmatmul.bf16.gmra.mxu0 %v1694
        %v5455 = vpop.f32.mrf.mxu0
        %v5456 = vadd.f32 %v5327, %v5455
        %v5457 = vpop.f32.mrf.mxu0
        %v5458 = vadd.f32 %v5329, %v5457
        %5459 = vmatmul.bf16.gmra.mxu0 %v1705
        %v5460 = vpop.f32.mrf.mxu0
        %v5461 = vadd.f32 %v5332, %v5460
        %v5462 = vpop.f32.mrf.mxu0
        %v5463 = vadd.f32 %v5334, %v5462
        %5464 = vmatmul.bf16.gmra.mxu0 %v1716
        %v5465 = vpop.f32.mrf.mxu0
        %v5466 = vadd.f32 %v5337, %v5465
        %v5467 = vpop.f32.mrf.mxu0
        %v5468 = vadd.f32 %v5339, %v5467
        %5469 = vmatmul.bf16.gmra.mxu0 %v1727
        %v5470 = vpop.f32.mrf.mxu0
        %v5471 = vadd.f32 %v5342, %v5470
        %v5472 = vpop.f32.mrf.mxu0
        %v5473 = vadd.f32 %v5344, %v5472
        %5474 = vmatmul.bf16.gmra.mxu0 %v1738
        %v5475 = vpop.f32.mrf.mxu0
        %v5476 = vadd.f32 %v5347, %v5475
        %v5477 = vpop.f32.mrf.mxu0
        %v5478 = vadd.f32 %v5349, %v5477
        %5479 = vmatmul.bf16.gmra.mxu0 %v1749
        %v5480 = vpop.f32.mrf.mxu0
        %v5481 = vadd.f32 %v5352, %v5480
        %v5482 = vpop.f32.mrf.mxu0
        %v5483 = vadd.f32 %v5354, %v5482
        %5484 = vdwg.mxu0
        %5485 = vmatpush.bf16.msra.mxu0 %v2655
        %5486 = vmatpush.bf16.msra.mxu0 %v2653
        %5487 = vmatpush.bf16.msra.mxu0 %v2651
        %5488 = vmatpush.bf16.msra.mxu0 %v2649
        %5489 = vmatpush.bf16.msra.mxu0 %v2647
        %5490 = vmatpush.bf16.msra.mxu0 %v2645
        %5491 = vmatpush.bf16.msra.mxu0 %v2643
        %5492 = vmatpush.bf16.msra.mxu0 %v2641
        %5493 = vmatmul.bf16.gmra.mxu0 %v1497
        %v5494 = vpop.f32.mrf.mxu0
        %v5495 = vadd.f32 %v5366, %v5494
        %v5496 = vpop.f32.mrf.mxu0
        %v5497 = vadd.f32 %v5368, %v5496
        %5498 = vmatmul.bf16.gmra.mxu0 %v1508
        %v5499 = vpop.f32.mrf.mxu0
        %v5500 = vadd.f32 %v5371, %v5499
        %v5501 = vpop.f32.mrf.mxu0
        %v5502 = vadd.f32 %v5373, %v5501
        %5503 = vmatmul.bf16.gmra.mxu0 %v1519
        %v5504 = vpop.f32.mrf.mxu0
        %v5505 = vadd.f32 %v5376, %v5504
        %v5506 = vpop.f32.mrf.mxu0
        %v5507 = vadd.f32 %v5378, %v5506
        %5508 = vmatmul.bf16.gmra.mxu0 %v1530
        %v5509 = vpop.f32.mrf.mxu0
        %v5510 = vadd.f32 %v5381, %v5509
        %v5511 = vpop.f32.mrf.mxu0
        %v5512 = vadd.f32 %v5383, %v5511
        %5513 = vmatmul.bf16.gmra.mxu0 %v1541
        %v5514 = vpop.f32.mrf.mxu0
        %v5515 = vadd.f32 %v5386, %v5514
        %v5516 = vpop.f32.mrf.mxu0
        %v5517 = vadd.f32 %v5388, %v5516
        %5518 = vmatmul.bf16.gmra.mxu0 %v1552
        %v5519 = vpop.f32.mrf.mxu0
        %v5520 = vadd.f32 %v5391, %v5519
        %v5521 = vpop.f32.mrf.mxu0
        %v5522 = vadd.f32 %v5393, %v5521
        %5523 = vmatmul.bf16.gmra.mxu0 %v1563
        %v5524 = vpop.f32.mrf.mxu0
        %v5525 = vadd.f32 %v5396, %v5524
        %v5526 = vpop.f32.mrf.mxu0
        %v5527 = vadd.f32 %v5398, %v5526
        %5528 = vmatmul.bf16.gmra.mxu0 %v1574
        %v5529 = vpop.f32.mrf.mxu0
        %v5530 = vadd.f32 %v5401, %v5529
        %v5531 = vpop.f32.mrf.mxu0
        %v5532 = vadd.f32 %v5403, %v5531
        %5533 = vmatmul.bf16.gmra.mxu0 %v1585
        %v5534 = vpop.f32.mrf.mxu0
        %v5535 = vadd.f32 %v5406, %v5534
        %v5536 = vpop.f32.mrf.mxu0
        %v5537 = vadd.f32 %v5408, %v5536
        %5538 = vmatmul.bf16.gmra.mxu0 %v1596
        %v5539 = vpop.f32.mrf.mxu0
        %v5540 = vadd.f32 %v5411, %v5539
        %v5541 = vpop.f32.mrf.mxu0
        %v5542 = vadd.f32 %v5413, %v5541
        %5543 = vmatmul.bf16.gmra.mxu0 %v1607
        %v5544 = vpop.f32.mrf.mxu0
        %v5545 = vadd.f32 %v5416, %v5544
        %v5546 = vpop.f32.mrf.mxu0
        %v5547 = vadd.f32 %v5418, %v5546
        %5548 = vmatmul.bf16.gmra.mxu0 %v1618
        %v5549 = vpop.f32.mrf.mxu0
        %v5550 = vadd.f32 %v5421, %v5549
        %v5551 = vpop.f32.mrf.mxu0
        %v5552 = vadd.f32 %v5423, %v5551
        %5553 = vmatmul.bf16.gmra.mxu0 %v1629
        %v5554 = vpop.f32.mrf.mxu0
        %v5555 = vadd.f32 %v5426, %v5554
        %v5556 = vpop.f32.mrf.mxu0
        %v5557 = vadd.f32 %v5428, %v5556
        %5558 = vmatmul.bf16.gmra.mxu0 %v1640
        %v5559 = vpop.f32.mrf.mxu0
        %v5560 = vadd.f32 %v5431, %v5559
        %v5561 = vpop.f32.mrf.mxu0
        %v5562 = vadd.f32 %v5433, %v5561
        %5563 = vmatmul.bf16.gmra.mxu0 %v1651
        %v5564 = vpop.f32.mrf.mxu0
        %v5565 = vadd.f32 %v5436, %v5564
        %v5566 = vpop.f32.mrf.mxu0
        %v5567 = vadd.f32 %v5438, %v5566
        %5568 = vmatmul.bf16.gmra.mxu0 %v1662
        %v5569 = vpop.f32.mrf.mxu0
        %v5570 = vadd.f32 %v5441, %v5569
        %v5571 = vpop.f32.mrf.mxu0
        %v5572 = vadd.f32 %v5443, %v5571
        %5573 = vmatmul.bf16.gmra.mxu0 %v1673
        %v5574 = vpop.f32.mrf.mxu0
        %v5575 = vadd.f32 %v5446, %v5574
        %v5576 = vpop.f32.mrf.mxu0
        %v5577 = vadd.f32 %v5448, %v5576
        %5578 = vmatmul.bf16.gmra.mxu0 %v1684
        %v5579 = vpop.f32.mrf.mxu0
        %v5580 = vadd.f32 %v5451, %v5579
        %v5581 = vpop.f32.mrf.mxu0
        %v5582 = vadd.f32 %v5453, %v5581
        %5583 = vmatmul.bf16.gmra.mxu0 %v1695
        %v5584 = vpop.f32.mrf.mxu0
        %v5585 = vadd.f32 %v5456, %v5584
        %v5586 = vpop.f32.mrf.mxu0
        %v5587 = vadd.f32 %v5458, %v5586
        %5588 = vmatmul.bf16.gmra.mxu0 %v1706
        %v5589 = vpop.f32.mrf.mxu0
        %v5590 = vadd.f32 %v5461, %v5589
        %v5591 = vpop.f32.mrf.mxu0
        %v5592 = vadd.f32 %v5463, %v5591
        %5593 = vmatmul.bf16.gmra.mxu0 %v1717
        %v5594 = vpop.f32.mrf.mxu0
        %v5595 = vadd.f32 %v5466, %v5594
        %v5596 = vpop.f32.mrf.mxu0
        %v5597 = vadd.f32 %v5468, %v5596
        %5598 = vmatmul.bf16.gmra.mxu0 %v1728
        %v5599 = vpop.f32.mrf.mxu0
        %v5600 = vadd.f32 %v5471, %v5599
        %v5601 = vpop.f32.mrf.mxu0
        %v5602 = vadd.f32 %v5473, %v5601
        %5603 = vmatmul.bf16.gmra.mxu0 %v1739
        %v5604 = vpop.f32.mrf.mxu0
        %v5605 = vadd.f32 %v5476, %v5604
        %v5606 = vpop.f32.mrf.mxu0
        %v5607 = vadd.f32 %v5478, %v5606
        %5608 = vmatmul.bf16.gmra.mxu0 %v1750
        %v5609 = vpop.f32.mrf.mxu0
        %v5610 = vadd.f32 %v5481, %v5609
        %v5611 = vpop.f32.mrf.mxu0
        %v5612 = vadd.f32 %v5483, %v5611
        %5613 = vdwg.mxu0
        %5614 = vmatpush.bf16.msra.mxu0 0
        %5615 = vmatpush.bf16.msra.mxu0 0
        %5616 = vmatpush.bf16.msra.mxu0 0
        %5617 = vmatpush.bf16.msra.mxu0 0
        %5618 = vmatpush.bf16.msra.mxu0 %v2663
        %5619 = vmatpush.bf16.msra.mxu0 %v2661
        %5620 = vmatpush.bf16.msra.mxu0 %v2659
        %5621 = vmatpush.bf16.msra.mxu0 %v2657
        %5622 = vmatmul.bf16.gmra.mxu0 %v2834
        %v5623 = vpop.f32.mrf.mxu0
        %v5624 = vadd.f32 %v5495, %v5623
        %v5625 = vpop.f32.mrf.mxu0
        %v5626 = vadd.f32 %v5497, %v5625
        %5627 = vmatmul.bf16.gmra.mxu0 %v2837
        %v5628 = vpop.f32.mrf.mxu0
        %v5629 = vadd.f32 %v5500, %v5628
        %v5630 = vpop.f32.mrf.mxu0
        %v5631 = vadd.f32 %v5502, %v5630
        %5632 = vmatmul.bf16.gmra.mxu0 %v2840
        %v5633 = vpop.f32.mrf.mxu0
        %v5634 = vadd.f32 %v5505, %v5633
        %v5635 = vpop.f32.mrf.mxu0
        %v5636 = vadd.f32 %v5507, %v5635
        %5637 = vmatmul.bf16.gmra.mxu0 %v2843
        %v5638 = vpop.f32.mrf.mxu0
        %v5639 = vadd.f32 %v5510, %v5638
        %v5640 = vpop.f32.mrf.mxu0
        %v5641 = vadd.f32 %v5512, %v5640
        %5642 = vmatmul.bf16.gmra.mxu0 %v2846
        %v5643 = vpop.f32.mrf.mxu0
        %v5644 = vadd.f32 %v5515, %v5643
        %v5645 = vpop.f32.mrf.mxu0
        %v5646 = vadd.f32 %v5517, %v5645
        %5647 = vmatmul.bf16.gmra.mxu0 %v2849
        %v5648 = vpop.f32.mrf.mxu0
        %v5649 = vadd.f32 %v5520, %v5648
        %v5650 = vpop.f32.mrf.mxu0
        %v5651 = vadd.f32 %v5522, %v5650
        %5652 = vmatmul.bf16.gmra.mxu0 %v2852
        %v5653 = vpop.f32.mrf.mxu0
        %v5654 = vadd.f32 %v5525, %v5653
        %v5655 = vpop.f32.mrf.mxu0
        %v5656 = vadd.f32 %v5527, %v5655
        %5657 = vmatmul.bf16.gmra.mxu0 %v2855
        %v5658 = vpop.f32.mrf.mxu0
        %v5659 = vadd.f32 %v5530, %v5658
        %v5660 = vpop.f32.mrf.mxu0
        %v5661 = vadd.f32 %v5532, %v5660
        %5662 = vmatmul.bf16.gmra.mxu0 %v2858
        %v5663 = vpop.f32.mrf.mxu0
        %v5664 = vadd.f32 %v5535, %v5663
        %v5665 = vpop.f32.mrf.mxu0
        %v5666 = vadd.f32 %v5537, %v5665
        %5667 = vmatmul.bf16.gmra.mxu0 %v2861
        %v5668 = vpop.f32.mrf.mxu0
        %v5669 = vadd.f32 %v5540, %v5668
        %v5670 = vpop.f32.mrf.mxu0
        %v5671 = vadd.f32 %v5542, %v5670
        %5672 = vmatmul.bf16.gmra.mxu0 %v2864
        %v5673 = vpop.f32.mrf.mxu0
        %v5674 = vadd.f32 %v5545, %v5673
        %v5675 = vpop.f32.mrf.mxu0
        %v5676 = vadd.f32 %v5547, %v5675
        %5677 = vmatmul.bf16.gmra.mxu0 %v2867
        %v5678 = vpop.f32.mrf.mxu0
        %v5679 = vadd.f32 %v5550, %v5678
        %v5680 = vpop.f32.mrf.mxu0
        %v5681 = vadd.f32 %v5552, %v5680
        %5682 = vmatmul.bf16.gmra.mxu0 %v2870
        %v5683 = vpop.f32.mrf.mxu0
        %v5684 = vadd.f32 %v5555, %v5683
        %v5685 = vpop.f32.mrf.mxu0
        %v5686 = vadd.f32 %v5557, %v5685
        %5687 = vmatmul.bf16.gmra.mxu0 %v2873
        %v5688 = vpop.f32.mrf.mxu0
        %v5689 = vadd.f32 %v5560, %v5688
        %v5690 = vpop.f32.mrf.mxu0
        %v5691 = vadd.f32 %v5562, %v5690
        %5692 = vmatmul.bf16.gmra.mxu0 %v2876
        %v5693 = vpop.f32.mrf.mxu0
        %v5694 = vadd.f32 %v5565, %v5693
        %v5695 = vpop.f32.mrf.mxu0
        %v5696 = vadd.f32 %v5567, %v5695
        %5697 = vmatmul.bf16.gmra.mxu0 %v2879
        %v5698 = vpop.f32.mrf.mxu0
        %v5699 = vadd.f32 %v5570, %v5698
        %v5700 = vpop.f32.mrf.mxu0
        %v5701 = vadd.f32 %v5572, %v5700
        %5702 = vmatmul.bf16.gmra.mxu0 %v2882
        %v5703 = vpop.f32.mrf.mxu0
        %v5704 = vadd.f32 %v5575, %v5703
        %v5705 = vpop.f32.mrf.mxu0
        %v5706 = vadd.f32 %v5577, %v5705
        %5707 = vmatmul.bf16.gmra.mxu0 %v2885
        %v5708 = vpop.f32.mrf.mxu0
        %v5709 = vadd.f32 %v5580, %v5708
        %v5710 = vpop.f32.mrf.mxu0
        %v5711 = vadd.f32 %v5582, %v5710
        %5712 = vmatmul.bf16.gmra.mxu0 %v2888
        %v5713 = vpop.f32.mrf.mxu0
        %v5714 = vadd.f32 %v5585, %v5713
        %v5715 = vpop.f32.mrf.mxu0
        %v5716 = vadd.f32 %v5587, %v5715
        %5717 = vmatmul.bf16.gmra.mxu0 %v2891
        %v5718 = vpop.f32.mrf.mxu0
        %v5719 = vadd.f32 %v5590, %v5718
        %v5720 = vpop.f32.mrf.mxu0
        %v5721 = vadd.f32 %v5592, %v5720
        %5722 = vmatmul.bf16.gmra.mxu0 %v2894
        %v5723 = vpop.f32.mrf.mxu0
        %v5724 = vadd.f32 %v5595, %v5723
        %v5725 = vpop.f32.mrf.mxu0
        %v5726 = vadd.f32 %v5597, %v5725
        %5727 = vmatmul.bf16.gmra.mxu0 %v2897
        %v5728 = vpop.f32.mrf.mxu0
        %v5729 = vadd.f32 %v5600, %v5728
        %v5730 = vpop.f32.mrf.mxu0
        %v5731 = vadd.f32 %v5602, %v5730
        %5732 = vmatmul.bf16.gmra.mxu0 %v2900
        %v5733 = vpop.f32.mrf.mxu0
        %v5734 = vadd.f32 %v5605, %v5733
        %v5735 = vpop.f32.mrf.mxu0
        %v5736 = vadd.f32 %v5607, %v5735
        %5737 = vmatmul.bf16.gmra.mxu0 %v2903
        %v5738 = vpop.f32.mrf.mxu0
        %v5739 = vadd.f32 %v5610, %v5738
        %v5740 = vpop.f32.mrf.mxu0
        %v5741 = vadd.f32 %v5612, %v5740
        %5742 = vdwg.mxu0
        %5743 = vst [vmem:[%s197] sm:$0xff] %v4205
        %vm5744 = vcmask 556032
        %5745 = vst.msk [vmem:[%s197 + $0x8] sm:$0xff] %vm5744, %v5624
        %5746 = vst [vmem:[%s197 + $0x10] sm:$0xff] %v4207
        %5747 = vst.msk [vmem:[%s197 + $0x18] sm:$0xff] %vm5744, %v5626
        %5748 = vst [vmem:[%s197 + $0x20] sm:$0xff] %v4210
        %5749 = vst.msk [vmem:[%s197 + $0x28] sm:$0xff] %vm5744, %v5629
        %5750 = vst [vmem:[%s197 + $0x30] sm:$0xff] %v4212
        %5751 = vst.msk [vmem:[%s197 + $0x38] sm:$0xff] %vm5744, %v5631
        %5752 = vst [vmem:[%s197 + $0x40] sm:$0xff] %v4215
        %5753 = vst.msk [vmem:[%s197 + $0x48] sm:$0xff] %vm5744, %v5634
        %5754 = vst [vmem:[%s197 + $0x50] sm:$0xff] %v4217
        %5755 = vst.msk [vmem:[%s197 + $0x58] sm:$0xff] %vm5744, %v5636
        %5756 = vst [vmem:[%s197 + $0x60] sm:$0xff] %v4220
        %5757 = vst.msk [vmem:[%s197 + $0x68] sm:$0xff] %vm5744, %v5639
        %5758 = vst [vmem:[%s197 + $0x70] sm:$0xff] %v4222
        %5759 = vst.msk [vmem:[%s197 + $0x78] sm:$0xff] %vm5744, %v5641
        %5760 = vst [vmem:[%s197 + $0x80] sm:$0xff] %v4225
        %5761 = vst.msk [vmem:[%s197 + $0x88] sm:$0xff] %vm5744, %v5644
        %5762 = vst [vmem:[%s197 + $0x90] sm:$0xff] %v4227
        %5763 = vst.msk [vmem:[%s197 + $0x98] sm:$0xff] %vm5744, %v5646
        %5764 = vst [vmem:[%s197 + $0xa0] sm:$0xff] %v4230
        %5765 = vst.msk [vmem:[%s197 + $0xa8] sm:$0xff] %vm5744, %v5649
        %5766 = vst [vmem:[%s197 + $0xb0] sm:$0xff] %v4232
        %5767 = vst.msk [vmem:[%s197 + $0xb8] sm:$0xff] %vm5744, %v5651
        %5768 = vst [vmem:[%s197 + $0xc0] sm:$0xff] %v4235
        %5769 = vst.msk [vmem:[%s197 + $0xc8] sm:$0xff] %vm5744, %v5654
        %5770 = vst [vmem:[%s197 + $0xd0] sm:$0xff] %v4237
        %5771 = vst.msk [vmem:[%s197 + $0xd8] sm:$0xff] %vm5744, %v5656
        %5772 = vst [vmem:[%s197 + $0xe0] sm:$0xff] %v4240
        %5773 = vst.msk [vmem:[%s197 + $0xe8] sm:$0xff] %vm5744, %v5659
        %5774 = vst [vmem:[%s197 + $0xf0] sm:$0xff] %v4242
        %5775 = vst.msk [vmem:[%s197 + $0xf8] sm:$0xff] %vm5744, %v5661
        %5776 = vst [vmem:[%s197 + $0x100] sm:$0xff] %v4245
        %5777 = vst.msk [vmem:[%s197 + $0x108] sm:$0xff] %vm5744, %v5664
        %5778 = vst [vmem:[%s197 + $0x110] sm:$0xff] %v4247
        %5779 = vst.msk [vmem:[%s197 + $0x118] sm:$0xff] %vm5744, %v5666
        %5780 = vst [vmem:[%s197 + $0x120] sm:$0xff] %v4250
        %5781 = vst.msk [vmem:[%s197 + $0x128] sm:$0xff] %vm5744, %v5669
        %5782 = vst [vmem:[%s197 + $0x130] sm:$0xff] %v4252
        %5783 = vst.msk [vmem:[%s197 + $0x138] sm:$0xff] %vm5744, %v5671
        %5784 = vst [vmem:[%s197 + $0x140] sm:$0xff] %v4255
        %5785 = vst.msk [vmem:[%s197 + $0x148] sm:$0xff] %vm5744, %v5674
        %5786 = vst [vmem:[%s197 + $0x150] sm:$0xff] %v4257
        %5787 = vst.msk [vmem:[%s197 + $0x158] sm:$0xff] %vm5744, %v5676
        %5788 = vst [vmem:[%s197 + $0x160] sm:$0xff] %v4260
        %5789 = vst.msk [vmem:[%s197 + $0x168] sm:$0xff] %vm5744, %v5679
        %5790 = vst [vmem:[%s197 + $0x170] sm:$0xff] %v4262
        %5791 = vst.msk [vmem:[%s197 + $0x178] sm:$0xff] %vm5744, %v5681
        %5792 = vst [vmem:[%s197 + $0x180] sm:$0xff] %v4265
        %5793 = vst.msk [vmem:[%s197 + $0x188] sm:$0xff] %vm5744, %v5684
        %5794 = vst [vmem:[%s197 + $0x190] sm:$0xff] %v4267
        %5795 = vst.msk [vmem:[%s197 + $0x198] sm:$0xff] %vm5744, %v5686
        %5796 = vst [vmem:[%s197 + $0x1a0] sm:$0xff] %v4270
        %5797 = vst.msk [vmem:[%s197 + $0x1a8] sm:$0xff] %vm5744, %v5689
        %5798 = vst [vmem:[%s197 + $0x1b0] sm:$0xff] %v4272
        %5799 = vst.msk [vmem:[%s197 + $0x1b8] sm:$0xff] %vm5744, %v5691
        %5800 = vst [vmem:[%s197 + $0x1c0] sm:$0xff] %v4275
        %5801 = vst.msk [vmem:[%s197 + $0x1c8] sm:$0xff] %vm5744, %v5694
        %5802 = vst [vmem:[%s197 + $0x1d0] sm:$0xff] %v4277
        %5803 = vst.msk [vmem:[%s197 + $0x1d8] sm:$0xff] %vm5744, %v5696
        %5804 = vst [vmem:[%s197 + $0x1e0] sm:$0xff] %v4280
        %5805 = vst.msk [vmem:[%s197 + $0x1e8] sm:$0xff] %vm5744, %v5699
        %5806 = vst [vmem:[%s197 + $0x1f0] sm:$0xff] %v4282
        %5807 = vst.msk [vmem:[%s197 + $0x1f8] sm:$0xff] %vm5744, %v5701
        %5808 = vst [vmem:[%s197 + $0x200] sm:$0xff] %v4285
        %5809 = vst.msk [vmem:[%s197 + $0x208] sm:$0xff] %vm5744, %v5704
        %5810 = vst [vmem:[%s197 + $0x210] sm:$0xff] %v4287
        %5811 = vst.msk [vmem:[%s197 + $0x218] sm:$0xff] %vm5744, %v5706
        %5812 = vst [vmem:[%s197 + $0x220] sm:$0xff] %v4290
        %5813 = vst.msk [vmem:[%s197 + $0x228] sm:$0xff] %vm5744, %v5709
        %5814 = vst [vmem:[%s197 + $0x230] sm:$0xff] %v4292
        %5815 = vst.msk [vmem:[%s197 + $0x238] sm:$0xff] %vm5744, %v5711
        %5816 = vst [vmem:[%s197 + $0x240] sm:$0xff] %v4295
        %5817 = vst.msk [vmem:[%s197 + $0x248] sm:$0xff] %vm5744, %v5714
        %5818 = vst [vmem:[%s197 + $0x250] sm:$0xff] %v4297
        %5819 = vst.msk [vmem:[%s197 + $0x258] sm:$0xff] %vm5744, %v5716
        %5820 = vst [vmem:[%s197 + $0x260] sm:$0xff] %v4300
        %5821 = vst.msk [vmem:[%s197 + $0x268] sm:$0xff] %vm5744, %v5719
        %5822 = vst [vmem:[%s197 + $0x270] sm:$0xff] %v4302
        %5823 = vst.msk [vmem:[%s197 + $0x278] sm:$0xff] %vm5744, %v5721
        %5824 = vst [vmem:[%s197 + $0x280] sm:$0xff] %v4305
        %5825 = vst.msk [vmem:[%s197 + $0x288] sm:$0xff] %vm5744, %v5724
        %5826 = vst [vmem:[%s197 + $0x290] sm:$0xff] %v4307
        %5827 = vst.msk [vmem:[%s197 + $0x298] sm:$0xff] %vm5744, %v5726
        %5828 = vst [vmem:[%s197 + $0x2a0] sm:$0xff] %v4310
        %5829 = vst.msk [vmem:[%s197 + $0x2a8] sm:$0xff] %vm5744, %v5729
        %5830 = vst [vmem:[%s197 + $0x2b0] sm:$0xff] %v4312
        %5831 = vst.msk [vmem:[%s197 + $0x2b8] sm:$0xff] %vm5744, %v5731
        %5832 = vst [vmem:[%s197 + $0x2c0] sm:$0xff] %v4315
        %5833 = vst.msk [vmem:[%s197 + $0x2c8] sm:$0xff] %vm5744, %v5734
        %5834 = vst [vmem:[%s197 + $0x2d0] sm:$0xff] %v4317
        %5835 = vst.msk [vmem:[%s197 + $0x2d8] sm:$0xff] %vm5744, %v5736
        %5836 = vst [vmem:[%s197 + $0x2e0] sm:$0xff] %v4320
        %5837 = vst.msk [vmem:[%s197 + $0x2e8] sm:$0xff] %vm5744, %v5739
        %5838 = vst [vmem:[%s197 + $0x2f0] sm:$0xff] %v4322
        %5839 = vst.msk [vmem:[%s197 + $0x2f8] sm:$0xff] %vm5744, %v5741
        %s5840 = sand.u32 %s90, 1
        %s5841 = sand.u32 %s90, 1
        %s5842 = smul.addr %s5841, 768
        %s5843 = scalar_lea.vmem [#allocation4], %s5842
        // Predicated region
        $region33: #{tpu_custom_call.1} parent=27 // pred_check
          %p5844 = pneg %p100
        $region34: #{tpu_custom_call.1} parent=27 // pred_check_branch
          %5846 = sbr.rel (%p5844) target = $region36
        $region35: #{tpu_custom_call.1} parent=27 // pred_region
          %s5847 = smul.u32 48, %s21
          %s5848 = ssub.s32 168, %s5847
          %p5849 = scmp.lt.s32.totalorder %s5848, 48
          %s5850 = scalar_select %p5849, %s5848, 48
          %s5851 = smul.u32 8, %s5850
          %s5852 = smul.u32 %s5851, 2
          %p5853 = scmp.ne.s32.totalorder 0, %s5852
          %s5854 = smul.addr %s5847, 2
          %s5855 = smul.addr %s20, 336
          %s5856 = sadd.s32 %s5854, %s5855
          %s5857 = smul.addr %s5856, 8
          %s5858 = scalar_lea.vmem %s2, %s5857
          // Predicated region
          $region37: #{tpu_custom_call.1} parent=35 // pred_check
            %p5859 = pneg %p5853
          $region38: #{tpu_custom_call.1} parent=35 // pred_check_branch
            %5861 = sbr.rel (%p5859) target = $region40
          $region39: #{tpu_custom_call.1} parent=35 // pred_region
            // Predicated region
            $region41: #{tpu_custom_call.1} parent=39 // pred_check
              _
            $region42: #{tpu_custom_call.1} parent=39 // pred_check_branch
              %5863 = sbr.rel (0) target = $region44
            $region43: #{tpu_custom_call.1} parent=39 // pred_region
              %s5864 = sshrl.u32 %s5850, 4
              // While loop
              $region45: #{tpu_custom_call.1} parent=43 // loop_pre_header
                _
              $region46: #{tpu_custom_call.1} parent=43 // loop_header
                %s5866 = sphi 0, %s5868
                %p5867 = scmp.ge.s32.totalorder %s5866, %s5864
                %s5871 = sphi 0, %s5940
                %s5872 = sphi %s5843, %s5943
                %s5873 = sphi %s5858, %s5944
              $region47: #{tpu_custom_call.1} parent=43 // loop_header_branch
                %5870 = sbr.rel (%p5867) target = $region51
              $region48: #{tpu_custom_call.1} parent=43 // loop_body
                %v5874 = vld [vmem:[%s5872] sm:$0xff]
                %5875 = vst [vmem:[%s5873] sm:$0xff] %v5874
                %v5876 = vld [vmem:[%s5872 + $0x10] sm:$0xff]
                %5877 = vst [vmem:[%s5873 + $0x10] sm:$0xff] %v5876
                %v5878 = vld [vmem:[%s5872 + $0x20] sm:$0xff]
                %5879 = vst [vmem:[%s5873 + $0x20] sm:$0xff] %v5878
                %v5880 = vld [vmem:[%s5872 + $0x30] sm:$0xff]
                %5881 = vst [vmem:[%s5873 + $0x30] sm:$0xff] %v5880
                %v5882 = vld [vmem:[%s5872 + $0x40] sm:$0xff]
                %5883 = vst [vmem:[%s5873 + $0x40] sm:$0xff] %v5882
                %v5884 = vld [vmem:[%s5872 + $0x50] sm:$0xff]
                %5885 = vst [vmem:[%s5873 + $0x50] sm:$0xff] %v5884
                %v5886 = vld [vmem:[%s5872 + $0x60] sm:$0xff]
                %5887 = vst [vmem:[%s5873 + $0x60] sm:$0xff] %v5886
                %v5888 = vld [vmem:[%s5872 + $0x70] sm:$0xff]
                %5889 = vst [vmem:[%s5873 + $0x70] sm:$0xff] %v5888
                %v5890 = vld [vmem:[%s5872 + $0x80] sm:$0xff]
                %5891 = vst [vmem:[%s5873 + $0x80] sm:$0xff] %v5890
                %v5892 = vld [vmem:[%s5872 + $0x90] sm:$0xff]
                %5893 = vst [vmem:[%s5873 + $0x90] sm:$0xff] %v5892
                %v5894 = vld [vmem:[%s5872 + $0xa0] sm:$0xff]
                %5895 = vst [vmem:[%s5873 + $0xa0] sm:$0xff] %v5894
                %v5896 = vld [vmem:[%s5872 + $0xb0] sm:$0xff]
                %5897 = vst [vmem:[%s5873 + $0xb0] sm:$0xff] %v5896
                %v5898 = vld [vmem:[%s5872 + $0xc0] sm:$0xff]
                %5899 = vst [vmem:[%s5873 + $0xc0] sm:$0xff] %v5898
                %v5900 = vld [vmem:[%s5872 + $0xd0] sm:$0xff]
                %5901 = vst [vmem:[%s5873 + $0xd0] sm:$0xff] %v5900
                %v5902 = vld [vmem:[%s5872 + $0xe0] sm:$0xff]
                %5903 = vst [vmem:[%s5873 + $0xe0] sm:$0xff] %v5902
                %v5904 = vld [vmem:[%s5872 + $0xf0] sm:$0xff]
                %5905 = vst [vmem:[%s5873 + $0xf0] sm:$0xff] %v5904
                %v5906 = vld [vmem:[%s5872 + $0x8] sm:$0xff]
                %5907 = vst [vmem:[%s5873 + $0x8] sm:$0xff] %v5906
                %v5908 = vld [vmem:[%s5872 + $0x18] sm:$0xff]
                %5909 = vst [vmem:[%s5873 + $0x18] sm:$0xff] %v5908
                %v5910 = vld [vmem:[%s5872 + $0x28] sm:$0xff]
                %5911 = vst [vmem:[%s5873 + $0x28] sm:$0xff] %v5910
                %v5912 = vld [vmem:[%s5872 + $0x38] sm:$0xff]
                %5913 = vst [vmem:[%s5873 + $0x38] sm:$0xff] %v5912
                %v5914 = vld [vmem:[%s5872 + $0x48] sm:$0xff]
                %5915 = vst [vmem:[%s5873 + $0x48] sm:$0xff] %v5914
                %v5916 = vld [vmem:[%s5872 + $0x58] sm:$0xff]
                %5917 = vst [vmem:[%s5873 + $0x58] sm:$0xff] %v5916
                %v5918 = vld [vmem:[%s5872 + $0x68] sm:$0xff]
                %5919 = vst [vmem:[%s5873 + $0x68] sm:$0xff] %v5918
                %v5920 = vld [vmem:[%s5872 + $0x78] sm:$0xff]
                %5921 = vst [vmem:[%s5873 + $0x78] sm:$0xff] %v5920
                %v5922 = vld [vmem:[%s5872 + $0x88] sm:$0xff]
                %5923 = vst [vmem:[%s5873 + $0x88] sm:$0xff] %v5922
                %v5924 = vld [vmem:[%s5872 + $0x98] sm:$0xff]
                %5925 = vst [vmem:[%s5873 + $0x98] sm:$0xff] %v5924
                %v5926 = vld [vmem:[%s5872 + $0xa8] sm:$0xff]
                %5927 = vst [vmem:[%s5873 + $0xa8] sm:$0xff] %v5926
                %v5928 = vld [vmem:[%s5872 + $0xb8] sm:$0xff]
                %5929 = vst [vmem:[%s5873 + $0xb8] sm:$0xff] %v5928
                %v5930 = vld [vmem:[%s5872 + $0xc8] sm:$0xff]
                %5931 = vst [vmem:[%s5873 + $0xc8] sm:$0xff] %v5930
                %v5932 = vld [vmem:[%s5872 + $0xd8] sm:$0xff]
                %5933 = vst [vmem:[%s5873 + $0xd8] sm:$0xff] %v5932
                %v5934 = vld [vmem:[%s5872 + $0xe8] sm:$0xff]
                %5935 = vst [vmem:[%s5873 + $0xe8] sm:$0xff] %v5934
                %v5936 = vld [vmem:[%s5872 + $0xf8] sm:$0xff]
                %5937 = vst [vmem:[%s5873 + $0xf8] sm:$0xff] %v5936
                %s5938 = sadd.s32 1, %s5871
                %p5939 = scmp.ge.s32.totalorder %s5938, %s5864
                %s5940 = scalar_select %p5939, 0, %s5938
                %s5941 = smul.u32 %s5940, 256
                %s5942 = smul.u32 %s5940, 256
                %s5943 = scalar_lea.vmem %s5843, %s5941 [#allocation4]
                %s5944 = scalar_lea.vmem %s5858, %s5942
              $region49: #{tpu_custom_call.1} parent=43 // loop_footer
                %s5868 = sadd.s32 %s5866, 1
              $region50: #{tpu_custom_call.1} parent=43 // loop_footer_branch
                %5865 = sbr.rel target = $region46
              $region51: #{tpu_custom_call.1} parent=43 // loop_exit
                _
              %s5945 = sshrl.u32 %s5850, 4
              %s5946 = sand.u32 %s5850, 15
              %s5947 = smul.u32 %s5945, 16
              %s5948 = smul.u32 16, %s5947
              %s5949 = scalar_lea.vmem %s5843, %s5948 [#allocation4]
              %s5950 = smul.u32 16, %s5947
              %s5951 = scalar_lea.vmem %s5858, %s5950
              // While loop
              $region52: #{tpu_custom_call.1} parent=43 // loop_pre_header
                _
              $region53: #{tpu_custom_call.1} parent=43 // loop_header
                %s5953 = sphi 0, %s5955
                %p5954 = scmp.ge.s32.totalorder %s5953, %s5946
                %s5958 = sphi 0, %s5967
                %s5959 = sphi %s5949, %s5970
                %s5960 = sphi %s5951, %s5971
              $region54: #{tpu_custom_call.1} parent=43 // loop_header_branch
                %5957 = sbr.rel (%p5954) target = $region58
              $region55: #{tpu_custom_call.1} parent=43 // loop_body
                %v5961 = vld [vmem:[%s5959] sm:$0xff]
                %5962 = vst [vmem:[%s5960] sm:$0xff] %v5961
                %v5963 = vld [vmem:[%s5959 + $0x8] sm:$0xff]
                %5964 = vst [vmem:[%s5960 + $0x8] sm:$0xff] %v5963
                %s5965 = sadd.s32 1, %s5958
                %p5966 = scmp.ge.s32.totalorder %s5965, %s5946
                %s5967 = scalar_select %p5966, 0, %s5965
                %s5968 = smul.u32 %s5967, 16
                %s5969 = smul.u32 %s5967, 16
                %s5970 = scalar_lea.vmem %s5949, %s5968 [#allocation4]
                %s5971 = scalar_lea.vmem %s5951, %s5969
              $region56: #{tpu_custom_call.1} parent=43 // loop_footer
                %s5955 = sadd.s32 %s5953, 1
              $region57: #{tpu_custom_call.1} parent=43 // loop_footer_branch
                %5952 = sbr.rel target = $region53
              $region58: #{tpu_custom_call.1} parent=43 // loop_exit
                _
            $region44: #{tpu_custom_call.1} parent=39 // pred_fallthru
              _
            // Predicated region
            $region59: #{tpu_custom_call.1} parent=39 // pred_check
              _
            $region60: #{tpu_custom_call.1} parent=39 // pred_check_branch
              %5973 = sbr.rel target = $region62
            $region61: #{tpu_custom_call.1} parent=39 // pred_region
              _
            $region62: #{tpu_custom_call.1} parent=39 // pred_fallthru
              _
          $region40: #{tpu_custom_call.1} parent=35 // pred_fallthru
            _
          %5974 = vnop
        $region36: #{tpu_custom_call.1} parent=27 // pred_fallthru
          _
      $region28: #{tpu_custom_call.1} parent=5 // pred_fallthru
        _
      %p5975 = scmp.le.s32.totalorder 2, %s11
      // Predicated region
      $region63: #{tpu_custom_call.1} parent=5 // pred_check
        %p5976 = pneg %p5975
      $region64: #{tpu_custom_call.1} parent=5 // pred_check_branch
        %5978 = sbr.rel (%p5976) target = $region66
      $region65: #{tpu_custom_call.1} parent=5 // pred_region
        %s5979 = ssub.s32 %s11, 2
        // Predicated region
        $region67: #{tpu_custom_call.1} parent=65 // pred_check
          %p5980 = pneg %p106
        $region68: #{tpu_custom_call.1} parent=65 // pred_check_branch
          %5982 = sbr.rel (%p5980) target = $region70
        $region69: #{tpu_custom_call.1} parent=65 // pred_region
          %s5983 = sand.u32 %s91, 1
          %s5984 = sand.u32 %s91, 1
          %s5985 = smul.addr %s5984, 768
          %s5986 = scalar_lea.vmem [#allocation4], %s5985
        $region70: #{tpu_custom_call.1} parent=65 // pred_fallthru
          _
      $region66: #{tpu_custom_call.1} parent=5 // pred_fallthru
        _
    $region6: #{tpu_custom_call.1} parent=1 // loop_footer
      %s15 = sadd.s32 1, %s11
    $region7: #{tpu_custom_call.1} parent=1 // loop_footer_branch
      %10 = sbr.rel target = $region3
    $region8: #{tpu_custom_call.1} parent=1 // loop_exit
      _
    %5987 = vsyncpa [#allocation3], 1
    %s5988 = scalar_lea.sflag [#allocation3], 1
    %5989 = vsyncpa %s5988, 1

</llo_original>
